<compile_context>
chip_gen: v7x
topology: tpu7x:2x2x1
jax: 0.10.0
libtpu: 0.0.40
codegen_flags: <defaults>
</compile_context>

<pallas_src>
import functools

import jax
import jax.numpy as jnp
import numpy as np
from jax import lax
from jax.experimental import pallas as pl
from jax.experimental.pallas import tpu as pltpu

EPS = 1e-5  # PyTorch BatchNorm1d default eps

NUM_BOND_TYPE = 6
NUM_BOND_DIRECTION = 3
NUM_ATOM_TYPE = 120
NUM_CHIRALITY_TAG = 3

TK = 512                    # contraction tile (columns of AP / rows of h_in)
TR = 256                    # row tile of AP / aggr (parallel grid axis)


def round_up(x, m):
    return (x + m - 1) // m * m


def pad2(x, rows, cols):
    return jnp.pad(x, ((0, rows - x.shape[0]), (0, cols - x.shape[1])))


def _vmem_limit_bytes():
    """Per-generation scoped VMEM limit (<= ~40 MiB on v7x's 64 MiB VMEM)."""
    try:
        info = pltpu.get_tpu_info()
        cap = int(getattr(info, "vmem_capacity_bytes", 128 * 1024 * 1024))
    except Exception:
        cap = 128 * 1024 * 1024
    return int(min(cap * 5 // 8, 48 * 1024 * 1024))


# --------------------------------------------------------------------------
# Pallas kernels
# --------------------------------------------------------------------------
def aggregate_kernel(ap_ref, h_ref, init_ref, acc_ref):
    """acc[i] = init[i] + sum_k AP[i, k] @ h_in[k]  (int8 AP cast to bf16 in-kernel).

    Grid = (row_tiles, k_tiles); rows are parallel, k is the reduction axis.
    Rows [0:N_pad) of AP hold edge counts (incl. self loops) -> GIN aggregation;
    rows [N_pad:N_pad+G_pad) hold graph membership -> global_add_pool.
    init = [ee_agg ; vn ; 0] so both accumulators start correctly.
    """
    k = pl.program_id(1)

    @pl.when(k == 0)
    def _init():
        acc_ref[...] = init_ref[...]

    # int8 -> f32 -> bf16: exact for counts <= 127, free VPU filler (mem-bound).
    ap = ap_ref[...].astype(jnp.float32).astype(jnp.bfloat16)
    acc_ref[...] += jnp.dot(ap, h_ref[...], preferred_element_type=jnp.float32)


def _bn_train(z, gamma, beta, n_valid):
    """Training-mode BatchNorm1d, masked, centered two-pass variance."""
    row = lax.broadcasted_iota(jnp.int32, z.shape, 0)
    mask = (row < n_valid).astype(jnp.float32)
    inv_n = 1.0 / float(n_valid)
    mean = jnp.sum(z * mask, axis=0, keepdims=True) * inv_n
    cen = (z - mean) * mask
    var = jnp.sum(cen * cen, axis=0, keepdims=True) * inv_n
    return (z - mean) * lax.rsqrt(var + EPS) * gamma + beta, mask


def _gin_node_update(aggr, w1, b1, w2, b2, gamma, beta, n_valid, apply_relu):
    hid = jnp.maximum(
        jnp.dot(aggr.astype(jnp.bfloat16), w1,
                preferred_element_type=jnp.float32) + b1, 0.0)
    out = jnp.dot(hid.astype(jnp.bfloat16), w2,
                  preferred_element_type=jnp.float32) + b2
    out, mask = _bn_train(out, gamma, beta, n_valid)
    if apply_relu:
        out = jnp.maximum(out, 0.0)
    # drop_ratio = 0 -> F.dropout is identity.  Zero padded rows (robust invariant).
    return out * mask


def gin_epilogue_kernel(aggr_ref, w1_ref, b1_ref, w2_ref, b2_ref, g_ref, be_ref,
                        out_ref, *, n_pad, n_valid, apply_relu):
    """Last layer: GIN MLP + BN (+no relu), no virtual-node MLP."""
    out_ref[...] = _gin_node_update(
        aggr_ref[0:n_pad, :], w1_ref[...], b1_ref[...], w2_ref[...], b2_ref[...],
        g_ref[...], be_ref[...], n_valid, apply_relu)


def gin_epilogue_vn_kernel(aggr_ref, w1_ref, b1_ref, w2_ref, b2_ref, g_ref, be_ref,
                           vw1_ref, vb1_ref, vg1_ref, vbe1_ref,
                           vw2_ref, vb2_ref, vg2_ref, vbe2_ref,
                           out_ref, vn_ref,
                           *, n_pad, g_pad, n_valid, n_graphs, apply_relu):
    """Intermediate layers: GIN MLP + BN + ReLU, fused virtual-node MLP."""
    out_ref[...] = _gin_node_update(
        aggr_ref[0:n_pad, :], w1_ref[...], b1_ref[...], w2_ref[...], b2_ref[...],
        g_ref[...], be_ref[...], n_valid, apply_relu)

    # pooled = global_add_pool(h_in, batch) + vn  (already resident in aggr)
    pooled = aggr_ref[n_pad:n_pad + g_pad, :]
    z = jnp.dot(pooled.astype(jnp.bfloat16), vw1_ref[...],
                preferred_element_type=jnp.float32) + vb1_ref[...]
    z, _ = _bn_train(z, vg1_ref[...], vbe1_ref[...], n_graphs)
    z = jnp.maximum(z, 0.0)
    z = jnp.dot(z.astype(jnp.bfloat16), vw2_ref[...],
                preferred_element_type=jnp.float32) + vb2_ref[...]
    z, gmask = _bn_train(z, vg2_ref[...], vbe2_ref[...], n_graphs)
    vn_ref[...] = jnp.maximum(z, 0.0) * gmask


# --------------------------------------------------------------------------
# Wrappers
# --------------------------------------------------------------------------
def aggregate(ap_i8, h_bf, init_f32, *, vmem_limit):
    R_pad, N_pad = ap_i8.shape
    D_pad = h_bf.shape[1]
    grid = (R_pad // TR, N_pad // TK)
    return pl.pallas_call(
        aggregate_kernel,
        out_shape=jax.ShapeDtypeStruct((R_pad, D_pad), jnp.float32),
        grid_spec=pltpu.PrefetchScalarGridSpec(
            num_scalar_prefetch=0,
            grid=grid,
            in_specs=[
                pl.BlockSpec((TR, TK), lambda i, k: (i, k)),     # AP int8 tile
                pl.BlockSpec((TK, D_pad), lambda i, k: (k, 0)),  # h_in bf16 tile
                pl.BlockSpec((TR, D_pad), lambda i, k: (i, 0)),  # [ee_agg ; vn] init
            ],
            out_specs=pl.BlockSpec((TR, D_pad), lambda i, k: (i, 0)),
        ),
        compiler_params=pltpu.CompilerParams(
            dimension_semantics=("parallel", "arbitrary"),
            vmem_limit_bytes=vmem_limit),
    )(ap_i8, h_bf, init_f32)


def gin_epilogue(aggr, lp, *, n_pad, n_valid, apply_relu, vmem_limit):
    D_pad = aggr.shape[1]
    vmem = pl.BlockSpec(memory_space=pltpu.MemorySpace.VMEM)
    kernel = functools.partial(gin_epilogue_kernel, n_pad=n_pad,
                               n_valid=n_valid, apply_relu=apply_relu)
    return pl.pallas_call(
        kernel,
        out_shape=jax.ShapeDtypeStruct((n_pad, D_pad), jnp.float32),
        in_specs=[vmem] * 7,
        out_specs=vmem,
        compiler_params=pltpu.CompilerParams(vmem_limit_bytes=vmem_limit),
    )(aggr, lp['w1'], lp['b1'], lp['w2'], lp['b2'], lp['gamma'], lp['beta'])


def gin_epilogue_vn(aggr, lp, vp, *, n_pad, g_pad, n_valid, n_graphs,
                    apply_relu, vmem_limit):
    D_pad = aggr.shape[1]
    vmem = pl.BlockSpec(memory_space=pltpu.MemorySpace.VMEM)
    kernel = functools.partial(gin_epilogue_vn_kernel, n_pad=n_pad, g_pad=g_pad,
                               n_valid=n_valid, n_graphs=n_graphs,
                               apply_relu=apply_relu)
    return pl.pallas_call(
        kernel,
        out_shape=(jax.ShapeDtypeStruct((n_pad, D_pad), jnp.float32),
                   jax.ShapeDtypeStruct((g_pad, D_pad), jnp.float32)),
        in_specs=[vmem] * 15,
        out_specs=[vmem, vmem],
        compiler_params=pltpu.CompilerParams(vmem_limit_bytes=vmem_limit),
    )(aggr, lp['w1'], lp['b1'], lp['w2'], lp['b2'], lp['gamma'], lp['beta'],
      vp['w1'], vp['b1'], vp['g1'], vp['be1'],
      vp['w2'], vp['b2'], vp['g2'], vp['be2'])


def pack_params(params, D_pad, H_pad):
    """Zero-pad channel dims to lane-dense widths, cast weights to bf16."""
    gnn = []
    for lp in params['gnn']:
        gnn.append({
            'w1': pad2(lp['w1'], D_pad, H_pad).astype(jnp.bfloat16),
            'b1': pad2(lp['b1'], 1, H_pad),
            'w2': pad2(lp['w2'], H_pad, D_pad).astype(jnp.bfloat16),
            'b2': pad2(lp['b2'], 1, D_pad),
            'gamma': pad2(lp['gamma'], 1, D_pad),
            'beta': pad2(lp['beta'], 1, D_pad),
        })
    vnm = []
    for mp in params['vn_mlp']:
        vnm.append({
            'w1': pad2(mp['w1'], D_pad, H_pad).astype(jnp.bfloat16),
            'b1': pad2(mp['b1'], 1, H_pad),
            'g1': pad2(mp['g1'], 1, H_pad),
            'be1': pad2(mp['be1'], 1, H_pad),
            'w2': pad2(mp['w2'], H_pad, D_pad).astype(jnp.bfloat16),
            'b2': pad2(mp['b2'], 1, D_pad),
            'g2': pad2(mp['g2'], 1, D_pad),
            'be2': pad2(mp['be2'], 1, D_pad),
        })
    return gnn, vnm


# --------------------------------------------------------------------------
# Full forward pass (glue in plain JAX, hot path in Pallas kernels)
# --------------------------------------------------------------------------
def gnn_virtualnode_forward(params, x_feat, edge_index, edge_attr, batch,
                            num_layer, num_graphs):
    N = x_feat.shape[0]
    D = params['x_emb1'].shape[1]
    D_pad = round_up(D, 128)
    H_pad = round_up(2 * D, 128)
    N_pad = round_up(N, TK)
    G_pad = round_up(num_graphs, 16)
    R_pad = round_up(N_pad + G_pad, TR)
    vmem_limit = _vmem_limit_bytes()

    gnn_p, vnm_p = pack_params(params, D_pad, H_pad)

    # node embeddings and zero-initialized virtual-node embedding
    h = params['x_emb1'][x_feat[:, 0]] + params['x_emb2'][x_feat[:, 1]]     # (N, D)
    h_pad = pad2(h, N_pad, D_pad)
    vn_pad = pad2(params['vn_emb'][jnp.zeros((num_graphs,), jnp.int32)], G_pad, D_pad)

    # add self loops; old-PyG convention: target = edge_index[0], source = edge_index[1]
    loop = jnp.arange(N, dtype=edge_index.dtype)
    dst = jnp.concatenate([edge_index[0], loop])
    src = jnp.concatenate([edge_index[1], loop])
    ea0 = jnp.concatenate([edge_attr[:, 0], jnp.full((N,), 4, edge_attr.dtype)])
    ea1 = jnp.concatenate([edge_attr[:, 1], jnp.zeros((N,), edge_attr.dtype)])

    # Stacked int8 structure matrix AP = [A ; P ; 0]:
    #   A[d, s]        = #edges s->d (incl. self loop)      (rows [0, N_pad))
    #   P[g, n]        = 1 if node n in graph g             (rows [N_pad, N_pad+G_pad))
    # int8 requires per-edge multiplicity (incl. self loop) <= 127 — checked host-side.
    AP = jnp.zeros((R_pad, N_pad), jnp.int32).at[dst, src].add(1)
    AP = AP.at[N_pad + batch, jnp.arange(N)].set(1).astype(jnp.int8)

    for layer in range(num_layer):
        lp_raw = params['gnn'][layer]
        lp = gnn_p[layer]

        # per-layer edge-embedding aggregate (scatter-add to target nodes)
        ee = lp_raw['edge_emb1'][ea0] + lp_raw['edge_emb2'][ea1]            # (E', D)
        ee_agg = jnp.zeros((N, D), jnp.float32).at[dst].add(ee)
        init = jnp.zeros((R_pad, D_pad), jnp.float32)
        init = init.at[:N, :D].set(ee_agg)                  # aggr accumulator start
        init = init.at[N_pad:N_pad + G_pad, :].set(vn_pad)  # pooled accumulator start

        # h_in = h + vn[batch]  (padded rows stay exactly zero; AP has zero
        # columns there anyway, so they never contribute)
        vnb = jnp.pad(vn_pad[batch], ((0, N_pad - N), (0, 0)))
        h_in_bf = (h_pad + vnb).astype(jnp.bfloat16)

        aggr = aggregate(AP, h_in_bf, init, vmem_limit=vmem_limit)

        if layer < num_layer - 1:
            h_pad, vn_pad = gin_epilogue_vn(
                aggr, lp, vnm_p[layer], n_pad=N_pad, g_pad=G_pad,
                n_valid=N, n_graphs=num_graphs, apply_relu=True,
                vmem_limit=vmem_limit)
        else:
            h_pad = gin_epilogue(aggr, lp, n_pad=N_pad, n_valid=N,
                                 apply_relu=False, vmem_limit=vmem_limit)

    # JK == 'last'
    return h_pad[:N, :D]


# --------------------------------------------------------------------------
# Pure-JAX reference (same math, same bf16-operand / f32-accumulate precision
# choice as the kernels, so the comparison isolates kernel correctness)
# --------------------------------------------------------------------------
def reference_forward(params, x_feat, edge_index, edge_attr, batch,
                      num_layer, num_graphs):
    N = x_feat.shape[0]
    D = params['x_emb1'].shape[1]
    h = params['x_emb1'][x_feat[:, 0]] + params['x_emb2'][x_feat[:, 1]]
    vn = params['vn_emb'][jnp.zeros((num_graphs,), jnp.int32)]

    loop = jnp.arange(N, dtype=edge_index.dtype)
    dst = jnp.concatenate([edge_index[0], loop])
    src = jnp.concatenate([edge_index[1], loop])
    ea0 = jnp.concatenate([edge_attr[:, 0], jnp.full((N,), 4, edge_attr.dtype)])
    ea1 = jnp.concatenate([edge_attr[:, 1], jnp.zeros((N,), edge_attr.dtype)])

    def mm(a, b):
        return jnp.dot(a.astype(jnp.bfloat16), b.astype(jnp.bfloat16),
                       preferred_element_type=jnp.float32)

    def bn(z, g, b):
        m = jnp.mean(z, axis=0, keepdims=True)
        c = z - m
        v = jnp.mean(c * c, axis=0, keepdims=True)
        return c * lax.rsqrt(v + EPS) * g + b

    for layer in range(num_layer):
        lp = params['gnn'][layer]
        ee = lp['edge_emb1'][ea0] + lp['edge_emb2'][ea1]
        h_in = h + vn[batch]
        hb = h_in.astype(jnp.bfloat16).astype(jnp.float32)   # kernel operand precision
        aggr = (jnp.zeros((N, D), jnp.float32).at[dst].add(hb[src])
                + jnp.zeros((N, D), jnp.float32).at[dst].add(ee))
        hid = jax.nn.relu(mm(aggr, lp['w1']) + lp['b1'])
        out = bn(mm(hid, lp['w2']) + lp['b2'], lp['gamma'], lp['beta'])
        if layer != num_layer - 1:
            out = jax.nn.relu(out)
        if layer < num_layer - 1:
            mp = params['vn_mlp'][layer]
            pooled = jnp.zeros((num_graphs, D), jnp.float32).at[batch].add(hb) + vn
            z = jax.nn.relu(bn(mm(pooled, mp['w1']) + mp['b1'], mp['g1'], mp['be1']))
            vn = jax.nn.relu(bn(mm(z, mp['w2']) + mp['b2'], mp['g2'], mp['be2']))
        h = out
    return h


# --------------------------------------------------------------------------
# Deterministic parameter init
# --------------------------------------------------------------------------
def xavier(key, shape):
    fan_in, fan_out = shape
    lim = float(np.sqrt(6.0 / (fan_in + fan_out)))
    return jax.random.uniform(key, shape, jnp.float32, -lim, lim)


def init_params(key, num_layer, emb_dim):
    keys = iter(jax.random.split(key, 64))
    params = {
        'x_emb1': xavier(next(keys), (NUM_ATOM_TYPE, emb_dim)),
        'x_emb2': xavier(next(keys), (NUM_CHIRALITY_TAG, emb_dim)),
        'vn_emb': jnp.zeros((1, emb_dim), jnp.float32),  # constant_(0)
        'gnn': [],
        'vn_mlp': [],
    }
    for _ in range(num_layer):
        params['gnn'].append({
            'edge_emb1': xavier(next(keys), (NUM_BOND_TYPE, emb_dim)),
            'edge_emb2': xavier(next(keys), (NUM_BOND_DIRECTION, emb_dim)),
            'w1': xavier(next(keys), (emb_dim, 2 * emb_dim)),
            'b1': 0.01 * jax.random.normal(next(keys), (1, 2 * emb_dim), jnp.float32),
            'w2': xavier(next(keys), (2 * emb_dim, emb_dim)),
            'b2': 0.01 * jax.random.normal(next(keys), (1, emb_dim), jnp.float32),
            'gamma': jnp.ones((1, emb_dim), jnp.float32),
            'beta': jnp.zeros((1, emb_dim), jnp.float32),
        })
    for _ in range(num_layer - 1):
        params['vn_mlp'].append({
            'w1': xavier(next(keys), (emb_dim, 2 * emb_dim)),
            'b1': 0.01 * jax.random.normal(next(keys), (1, 2 * emb_dim), jnp.float32),
            'g1': jnp.ones((1, 2 * emb_dim), jnp.float32),
            'be1': jnp.zeros((1, 2 * emb_dim), jnp.float32),
            'w2': xavier(next(keys), (2 * emb_dim, emb_dim)),
            'b2': 0.01 * jax.random.normal(next(keys), (1, emb_dim), jnp.float32),
            'g2': jnp.ones((1, emb_dim), jnp.float32),
            'be2': jnp.zeros((1, emb_dim), jnp.float32),
        })
    return params


# --------------------------------------------------------------------------
if __name__ == "__main__":
    num_layer = 2
    emb_dim = 32
    N = 16          # nodes (2 graphs of 8 nodes)
    E = 24          # directed edges before self loops
    num_graphs = 2

    key = jax.random.PRNGKey(0)
    k_par, k1, k2, k3, k4, k5 = jax.random.split(key, 6)

    params = init_params(k_par, num_layer, emb_dim)

    # synthetic graph data
    x_feat = jnp.stack([
        jax.random.randint(k1, (N,), 0, NUM_ATOM_TYPE),
        jax.random.randint(k2, (N,), 0, NUM_CHIRALITY_TAG),
    ], axis=1).astype(jnp.int32)                                      # (N, 2)

    src_a = jax.random.randint(k3, (E // 2,), 0, N // 2)
    dst_a = jax.random.randint(k4, (E // 2,), 0, N // 2)
    src_b = jax.random.randint(k3, (E // 2,), N // 2, N)
    dst_b = jax.random.randint(k4, (E // 2,), N // 2, N)
    edge_index = jnp.stack([jnp.concatenate([dst_a, dst_b]),
                            jnp.concatenate([src_a, src_b])]).astype(jnp.int32)  # (2, E)

    edge_attr = jnp.stack([
        jax.random.randint(k5, (E,), 0, NUM_BOND_TYPE),
        jax.random.randint(k5, (E,), 0, NUM_BOND_DIRECTION),
    ], axis=1).astype(jnp.int32)                                      # (E, 2)

    batch = jnp.concatenate([jnp.zeros((N // 2,), jnp.int32),
                             jnp.ones((N // 2,), jnp.int32)])         # (N,)

    # int8 adjacency guard: per-edge multiplicity incl. self loop must be <= 127
    ei_np = np.asarray(edge_index)
    dst_np = np.concatenate([ei_np[0], np.arange(N)])
    src_np = np.concatenate([ei_np[1], np.arange(N)])
    cnt = np.zeros((N, N), np.int64)
    np.add.at(cnt, (dst_np, src_np), 1)
    assert cnt.max() <= 127, "int8 adjacency overflow: edge multiplicity > 127"

    fwd = jax.jit(gnn_virtualnode_forward, static_argnums=(5, 6))
    out = jax.block_until_ready(
        fwd(params, x_feat, edge_index, edge_attr, batch, num_layer, num_graphs))

    ref = jax.block_until_ready(
        reference_forward(params, x_feat, edge_index, edge_attr, batch,
                          num_layer, num_graphs))

    np.testing.assert_allclose(np.asarray(out), np.asarray(ref),
                               rtol=5e-3, atol=5e-3)
    assert out.shape == (N, emb_dim)
    print("KERNEL_OK")
</pallas_src>

<mosaic_0001>
module attributes {stable_mosaic.version = 11 : i64} {
  func.func @aggregate_kernel(%arg0: i32, %arg1: i32, %arg2: memref<256x512xi8, #tpu.memory_space<vmem>>, %arg3: memref<512x128xbf16, #tpu.memory_space<vmem>>, %arg4: memref<256x128xf32, #tpu.memory_space<vmem>>, %arg5: memref<256x128xf32, #tpu.memory_space<vmem>>) attributes {dimension_semantics = [#tpu.dimension_semantics<parallel>, #tpu.dimension_semantics<arbitrary>], iteration_bounds = array<i64: 3, 1>, scalar_prefetch = 0 : i64, scratch_operands = 0 : i64, tpu.core_type = #tpu.core_type<tc>, window_params = [{transform_indices = @transform_0, window_bounds = array<i64: 256, 512>}, {transform_indices = @transform_1, window_bounds = array<i64: 512, 128>}, {transform_indices = @transform_2, window_bounds = array<i64: 256, 128>}, {transform_indices = @transform_3, window_bounds = array<i64: 256, 128>}]} {
    %c0_i32 = arith.constant 0 : i32
    %0 = arith.cmpi eq, %arg1, %c0_i32 : i32
    %1 = arith.extui %0 : i1 to i32
    %c0_i32_0 = arith.constant 0 : i32
    %2 = arith.cmpi ne, %1, %c0_i32_0 : i32
    scf.if %2 {
      %c0_8 = arith.constant 0 : index
      %c0_9 = arith.constant 0 : index
      %11 = vector.load %arg4[%c0_8, %c0_9] : memref<256x128xf32, #tpu.memory_space<vmem>>, vector<256x128xf32>
      %c0_10 = arith.constant 0 : index
      %c0_11 = arith.constant 0 : index
      %12 = vector.load %arg5[%c0_10, %c0_11] : memref<256x128xf32, #tpu.memory_space<vmem>>, vector<256x128xf32>
      tpu.vector_store %arg5[%c0_10, %c0_11], %11 {strides = array<i32>} : memref<256x128xf32, #tpu.memory_space<vmem>>, vector<256x128xf32>,
    } else {
    }
    %c0 = arith.constant 0 : index
    %c0_1 = arith.constant 0 : index
    %3 = vector.load %arg2[%c0, %c0_1] : memref<256x512xi8, #tpu.memory_space<vmem>>, vector<256x512xi8>
    %4 = arith.sitofp %3 : vector<256x512xi8> to vector<256x512xf32>
    %5 = arith.truncf %4 : vector<256x512xf32> to vector<256x512xbf16>
    %c0_2 = arith.constant 0 : index
    %c0_3 = arith.constant 0 : index
    %6 = vector.load %arg5[%c0_2, %c0_3] : memref<256x128xf32, #tpu.memory_space<vmem>>, vector<256x128xf32>
    %c0_4 = arith.constant 0 : index
    %c0_5 = arith.constant 0 : index
    %7 = vector.load %arg3[%c0_4, %c0_5] : memref<512x128xbf16, #tpu.memory_space<vmem>>, vector<512x128xbf16>
    %cst = arith.constant dense<0.000000e+00> : vector<256x128xf32>
    %8 = tpu.matmul %5, %7, %cst {dimension_numbers = #tpu.dot_dimension_numbers<[1], [0], [0], [1], [0, 0, 1, 1], [], []>} : vector<256x512xbf16>, vector<512x128xbf16>, vector<256x128xf32> -> vector<256x128xf32>
    %9 = arith.addf %6, %8 : vector<256x128xf32>
    %c0_6 = arith.constant 0 : index
    %c0_7 = arith.constant 0 : index
    %10 = vector.load %arg5[%c0_6, %c0_7] : memref<256x128xf32, #tpu.memory_space<vmem>>, vector<256x128xf32>
    tpu.vector_store %arg5[%c0_6, %c0_7], %9 {strides = array<i32>} : memref<256x128xf32, #tpu.memory_space<vmem>>, vector<256x128xf32>,
    return
  }
  func.func @transform_0(%arg0: i32, %arg1: i32) -> (i32, i32) {
    %c0_i32 = arith.constant 0 : i32
    return %arg0, %arg1 : i32, i32
  }
  func.func @transform_1(%arg0: i32, %arg1: i32) -> (i32, i32) {
    %c0_i32 = arith.constant 0 : i32
    %c0_i32_0 = arith.constant 0 : i32
    return %arg1, %c0_i32 : i32, i32
  }
  func.func @transform_2(%arg0: i32, %arg1: i32) -> (i32, i32) {
    %c0_i32 = arith.constant 0 : i32
    %c0_i32_0 = arith.constant 0 : i32
    return %arg0, %c0_i32 : i32, i32
  }
  func.func @transform_3(%arg0: i32, %arg1: i32) -> (i32, i32) {
    %c0_i32 = arith.constant 0 : i32
    %c0_i32_0 = arith.constant 0 : i32
    return %arg0, %c0_i32 : i32, i32
  }
}

module attributes {stable_mosaic.version = 11 : i64} {
  func.func @gin_epilogue_vn_kernel(%arg0: memref<768x128xf32, #tpu.memory_space<vmem>>, %arg1: memref<128x128xbf16, #tpu.memory_space<vmem>>, %arg2: memref<1x128xf32, #tpu.memory_space<vmem>>, %arg3: memref<128x128xbf16, #tpu.memory_space<vmem>>, %arg4: memref<1x128xf32, #tpu.memory_space<vmem>>, %arg5: memref<1x128xf32, #tpu.memory_space<vmem>>, %arg6: memref<1x128xf32, #tpu.memory_space<vmem>>, %arg7: memref<128x128xbf16, #tpu.memory_space<vmem>>, %arg8: memref<1x128xf32, #tpu.memory_space<vmem>>, %arg9: memref<1x128xf32, #tpu.memory_space<vmem>>, %arg10: memref<1x128xf32, #tpu.memory_space<vmem>>, %arg11: memref<128x128xbf16, #tpu.memory_space<vmem>>, %arg12: memref<1x128xf32, #tpu.memory_space<vmem>>, %arg13: memref<1x128xf32, #tpu.memory_space<vmem>>, %arg14: memref<1x128xf32, #tpu.memory_space<vmem>>, %arg15: memref<512x128xf32, #tpu.memory_space<vmem>>, %arg16: memref<16x128xf32, #tpu.memory_space<vmem>>) attributes {dimension_semantics = [], scalar_prefetch = 0 : i64, scratch_operands = 0 : i64, tpu.core_type = #tpu.core_type<tc>} {
    %c0 = arith.constant 0 : index
    %c0_0 = arith.constant 0 : index
    %0 = vector.load %arg0[%c0, %c0_0] : memref<768x128xf32, #tpu.memory_space<vmem>>, vector<512x128xf32>
    %c0_1 = arith.constant 0 : index
    %c0_2 = arith.constant 0 : index
    %1 = vector.load %arg1[%c0_1, %c0_2] : memref<128x128xbf16, #tpu.memory_space<vmem>>, vector<128x128xbf16>
    %c0_3 = arith.constant 0 : index
    %c0_4 = arith.constant 0 : index
    %2 = vector.load %arg2[%c0_3, %c0_4] : memref<1x128xf32, #tpu.memory_space<vmem>>, vector<1x128xf32>
    %c0_5 = arith.constant 0 : index
    %c0_6 = arith.constant 0 : index
    %3 = vector.load %arg3[%c0_5, %c0_6] : memref<128x128xbf16, #tpu.memory_space<vmem>>, vector<128x128xbf16>
    %c0_7 = arith.constant 0 : index
    %c0_8 = arith.constant 0 : index
    %4 = vector.load %arg4[%c0_7, %c0_8] : memref<1x128xf32, #tpu.memory_space<vmem>>, vector<1x128xf32>
    %c0_9 = arith.constant 0 : index
    %c0_10 = arith.constant 0 : index
    %5 = vector.load %arg5[%c0_9, %c0_10] : memref<1x128xf32, #tpu.memory_space<vmem>>, vector<1x128xf32>
    %c0_11 = arith.constant 0 : index
    %c0_12 = arith.constant 0 : index
    %6 = vector.load %arg6[%c0_11, %c0_12] : memref<1x128xf32, #tpu.memory_space<vmem>>, vector<1x128xf32>
    %7 = arith.truncf %0 : vector<512x128xf32> to vector<512x128xbf16>
    %cst = arith.constant dense<0.000000e+00> : vector<512x128xf32>
    %8 = tpu.matmul %7, %1, %cst {dimension_numbers = #tpu.dot_dimension_numbers<[1], [0], [0], [1], [0, 0, 1, 1], [], []>} : vector<512x128xbf16>, vector<128x128xbf16>, vector<512x128xf32> -> vector<512x128xf32>
    %9 = vector.broadcast %2 : vector<1x128xf32> to vector<512x128xf32>
    %10 = arith.addf %8, %9 : vector<512x128xf32>
    %cst_13 = arith.constant 0.000000e+00 : f32
    %11 = vector.broadcast %cst_13 : f32 to vector<512x128xf32>
    %12 = arith.maximumf %10, %11 : vector<512x128xf32>
    %13 = arith.truncf %12 : vector<512x128xf32> to vector<512x128xbf16>
    %cst_14 = arith.constant dense<0.000000e+00> : vector<512x128xf32>
    %14 = tpu.matmul %13, %3, %cst_14 {dimension_numbers = #tpu.dot_dimension_numbers<[1], [0], [0], [1], [0, 0, 1, 1], [], []>} : vector<512x128xbf16>, vector<128x128xbf16>, vector<512x128xf32> -> vector<512x128xf32>
    %15 = vector.broadcast %4 : vector<1x128xf32> to vector<512x128xf32>
    %16 = arith.addf %14, %15 : vector<512x128xf32>
    %17 = tpu.iota {dimensions = array<i32: 0>} : vector<512x128xi32>
    %c16_i32 = arith.constant 16 : i32
    %18 = vector.broadcast %c16_i32 : i32 to vector<512x128xi32>
    %19 = arith.cmpi slt, %17, %18 : vector<512x128xi32>
    %20 = arith.extui %19 : vector<512x128xi1> to vector<512x128xi32>
    %21 = arith.sitofp %20 : vector<512x128xi32> to vector<512x128xf32>
    %22 = arith.mulf %16, %21 : vector<512x128xf32>
    %cst_15 = arith.constant dense<0.000000e+00> : vector<128xf32>
    %23 = vector.multi_reduction <add>, %22, %cst_15 [0] : vector<512x128xf32> to vector<128xf32>
    %24 = vector.shape_cast %23 : vector<128xf32> to vector<1x128xf32>
    %cst_16 = arith.constant 6.250000e-02 : f32
    %25 = vector.broadcast %cst_16 : f32 to vector<1x128xf32>
    %26 = arith.mulf %24, %25 : vector<1x128xf32>
    %27 = vector.broadcast %26 : vector<1x128xf32> to vector<512x128xf32>
    %28 = arith.subf %16, %27 : vector<512x128xf32>
    %29 = arith.mulf %28, %21 : vector<512x128xf32>
    %30 = arith.mulf %29, %29 : vector<512x128xf32>
    %cst_17 = arith.constant dense<0.000000e+00> : vector<128xf32>
    %31 = vector.multi_reduction <add>, %30, %cst_17 [0] : vector<512x128xf32> to vector<128xf32>
    %32 = vector.shape_cast %31 : vector<128xf32> to vector<1x128xf32>
    %cst_18 = arith.constant 6.250000e-02 : f32
    %33 = vector.broadcast %cst_18 : f32 to vector<1x128xf32>
    %34 = arith.mulf %32, %33 : vector<1x128xf32>
    %35 = vector.broadcast %26 : vector<1x128xf32> to vector<512x128xf32>
    %36 = arith.subf %16, %35 : vector<512x128xf32>
    %cst_19 = arith.constant 9.99999974E-6 : f32
    %37 = vector.broadcast %cst_19 : f32 to vector<1x128xf32>
    %38 = arith.addf %34, %37 : vector<1x128xf32>
    %39 = math.rsqrt %38 : vector<1x128xf32>
    %40 = vector.broadcast %39 : vector<1x128xf32> to vector<512x128xf32>
    %41 = arith.mulf %36, %40 : vector<512x128xf32>
    %42 = vector.broadcast %5 : vector<1x128xf32> to vector<512x128xf32>
    %43 = arith.mulf %41, %42 : vector<512x128xf32>
    %44 = vector.broadcast %6 : vector<1x128xf32> to vector<512x128xf32>
    %45 = arith.addf %43, %44 : vector<512x128xf32>
    %cst_20 = arith.constant 0.000000e+00 : f32
    %46 = vector.broadcast %cst_20 : f32 to vector<512x128xf32>
    %47 = arith.maximumf %45, %46 : vector<512x128xf32>
    %48 = arith.mulf %47, %21 : vector<512x128xf32>
    %c0_21 = arith.constant 0 : index
    %c0_22 = arith.constant 0 : index
    %49 = vector.load %arg15[%c0_21, %c0_22] : memref<512x128xf32, #tpu.memory_space<vmem>>, vector<512x128xf32>
    tpu.vector_store %arg15[%c0_21, %c0_22], %48 {strides = array<i32>} : memref<512x128xf32, #tpu.memory_space<vmem>>, vector<512x128xf32>,
    %c512 = arith.constant 512 : index
    %c0_23 = arith.constant 0 : index
    %50 = vector.load %arg0[%c512, %c0_23] : memref<768x128xf32, #tpu.memory_space<vmem>>, vector<16x128xf32>
    %51 = arith.truncf %50 : vector<16x128xf32> to vector<16x128xbf16>
    %c0_24 = arith.constant 0 : index
    %c0_25 = arith.constant 0 : index
    %52 = vector.load %arg7[%c0_24, %c0_25] : memref<128x128xbf16, #tpu.memory_space<vmem>>, vector<128x128xbf16>
    %cst_26 = arith.constant dense<0.000000e+00> : vector<16x128xf32>
    %53 = tpu.matmul %51, %52, %cst_26 {dimension_numbers = #tpu.dot_dimension_numbers<[1], [0], [0], [1], [0, 0, 1, 1], [], []>} : vector<16x128xbf16>, vector<128x128xbf16>, vector<16x128xf32> -> vector<16x128xf32>
    %c0_27 = arith.constant 0 : index
    %c0_28 = arith.constant 0 : index
    %54 = vector.load %arg8[%c0_27, %c0_28] : memref<1x128xf32, #tpu.memory_space<vmem>>, vector<1x128xf32>
    %55 = vector.broadcast %54 : vector<1x128xf32> to vector<16x128xf32>
    %56 = arith.addf %53, %55 : vector<16x128xf32>
    %c0_29 = arith.constant 0 : index
    %c0_30 = arith.constant 0 : index
    %57 = vector.load %arg9[%c0_29, %c0_30] : memref<1x128xf32, #tpu.memory_space<vmem>>, vector<1x128xf32>
    %c0_31 = arith.constant 0 : index
    %c0_32 = arith.constant 0 : index
    %58 = vector.load %arg10[%c0_31, %c0_32] : memref<1x128xf32, #tpu.memory_space<vmem>>, vector<1x128xf32>
    %59 = tpu.iota {dimensions = array<i32: 0>} : vector<16x128xi32>
    %c2_i32 = arith.constant 2 : i32
    %60 = vector.broadcast %c2_i32 : i32 to vector<16x128xi32>
    %61 = arith.cmpi slt, %59, %60 : vector<16x128xi32>
    %62 = arith.extui %61 : vector<16x128xi1> to vector<16x128xi32>
    %63 = arith.sitofp %62 : vector<16x128xi32> to vector<16x128xf32>
    %64 = arith.mulf %56, %63 : vector<16x128xf32>
    %cst_33 = arith.constant dense<0.000000e+00> : vector<128xf32>
    %65 = vector.multi_reduction <add>, %64, %cst_33 [0] : vector<16x128xf32> to vector<128xf32>
    %66 = vector.shape_cast %65 : vector<128xf32> to vector<1x128xf32>
    %cst_34 = arith.constant 5.000000e-01 : f32
    %67 = vector.broadcast %cst_34 : f32 to vector<1x128xf32>
    %68 = arith.mulf %66, %67 : vector<1x128xf32>
    %69 = vector.broadcast %68 : vector<1x128xf32> to vector<16x128xf32>
    %70 = arith.subf %56, %69 : vector<16x128xf32>
    %71 = arith.mulf %70, %63 : vector<16x128xf32>
    %72 = arith.mulf %71, %71 : vector<16x128xf32>
    %cst_35 = arith.constant dense<0.000000e+00> : vector<128xf32>
    %73 = vector.multi_reduction <add>, %72, %cst_35 [0] : vector<16x128xf32> to vector<128xf32>
    %74 = vector.shape_cast %73 : vector<128xf32> to vector<1x128xf32>
    %cst_36 = arith.constant 5.000000e-01 : f32
    %75 = vector.broadcast %cst_36 : f32 to vector<1x128xf32>
    %76 = arith.mulf %74, %75 : vector<1x128xf32>
    %77 = vector.broadcast %68 : vector<1x128xf32> to vector<16x128xf32>
    %78 = arith.subf %56, %77 : vector<16x128xf32>
    %cst_37 = arith.constant 9.99999974E-6 : f32
    %79 = vector.broadcast %cst_37 : f32 to vector<1x128xf32>
    %80 = arith.addf %76, %79 : vector<1x128xf32>
    %81 = math.rsqrt %80 : vector<1x128xf32>
    %82 = vector.broadcast %81 : vector<1x128xf32> to vector<16x128xf32>
    %83 = arith.mulf %78, %82 : vector<16x128xf32>
    %84 = vector.broadcast %57 : vector<1x128xf32> to vector<16x128xf32>
    %85 = arith.mulf %83, %84 : vector<16x128xf32>
    %86 = vector.broadcast %58 : vector<1x128xf32> to vector<16x128xf32>
    %87 = arith.addf %85, %86 : vector<16x128xf32>
    %cst_38 = arith.constant 0.000000e+00 : f32
    %88 = vector.broadcast %cst_38 : f32 to vector<16x128xf32>
    %89 = arith.maximumf %87, %88 : vector<16x128xf32>
    %90 = arith.truncf %89 : vector<16x128xf32> to vector<16x128xbf16>
    %c0_39 = arith.constant 0 : index
    %c0_40 = arith.constant 0 : index
    %91 = vector.load %arg11[%c0_39, %c0_40] : memref<128x128xbf16, #tpu.memory_space<vmem>>, vector<128x128xbf16>
    %cst_41 = arith.constant dense<0.000000e+00> : vector<16x128xf32>
    %92 = tpu.matmul %90, %91, %cst_41 {dimension_numbers = #tpu.dot_dimension_numbers<[1], [0], [0], [1], [0, 0, 1, 1], [], []>} : vector<16x128xbf16>, vector<128x128xbf16>, vector<16x128xf32> -> vector<16x128xf32>
    %c0_42 = arith.constant 0 : index
    %c0_43 = arith.constant 0 : index
    %93 = vector.load %arg12[%c0_42, %c0_43] : memref<1x128xf32, #tpu.memory_space<vmem>>, vector<1x128xf32>
    %94 = vector.broadcast %93 : vector<1x128xf32> to vector<16x128xf32>
    %95 = arith.addf %92, %94 : vector<16x128xf32>
    %c0_44 = arith.constant 0 : index
    %c0_45 = arith.constant 0 : index
    %96 = vector.load %arg13[%c0_44, %c0_45] : memref<1x128xf32, #tpu.memory_space<vmem>>, vector<1x128xf32>
    %c0_46 = arith.constant 0 : index
    %c0_47 = arith.constant 0 : index
    %97 = vector.load %arg14[%c0_46, %c0_47] : memref<1x128xf32, #tpu.memory_space<vmem>>, vector<1x128xf32>
    %98 = tpu.iota {dimensions = array<i32: 0>} : vector<16x128xi32>
    %c2_i32_48 = arith.constant 2 : i32
    %99 = vector.broadcast %c2_i32_48 : i32 to vector<16x128xi32>
    %100 = arith.cmpi slt, %98, %99 : vector<16x128xi32>
    %101 = arith.extui %100 : vector<16x128xi1> to vector<16x128xi32>
    %102 = arith.sitofp %101 : vector<16x128xi32> to vector<16x128xf32>
    %103 = arith.mulf %95, %102 : vector<16x128xf32>
    %cst_49 = arith.constant dense<0.000000e+00> : vector<128xf32>
    %104 = vector.multi_reduction <add>, %103, %cst_49 [0] : vector<16x128xf32> to vector<128xf32>
    %105 = vector.shape_cast %104 : vector<128xf32> to vector<1x128xf32>
    %cst_50 = arith.constant 5.000000e-01 : f32
    %106 = vector.broadcast %cst_50 : f32 to vector<1x128xf32>
    %107 = arith.mulf %105, %106 : vector<1x128xf32>
    %108 = vector.broadcast %107 : vector<1x128xf32> to vector<16x128xf32>
    %109 = arith.subf %95, %108 : vector<16x128xf32>
    %110 = arith.mulf %109, %102 : vector<16x128xf32>
    %111 = arith.mulf %110, %110 : vector<16x128xf32>
    %cst_51 = arith.constant dense<0.000000e+00> : vector<128xf32>
    %112 = vector.multi_reduction <add>, %111, %cst_51 [0] : vector<16x128xf32> to vector<128xf32>
    %113 = vector.shape_cast %112 : vector<128xf32> to vector<1x128xf32>
    %cst_52 = arith.constant 5.000000e-01 : f32
    %114 = vector.broadcast %cst_52 : f32 to vector<1x128xf32>
    %115 = arith.mulf %113, %114 : vector<1x128xf32>
    %116 = vector.broadcast %107 : vector<1x128xf32> to vector<16x128xf32>
    %117 = arith.subf %95, %116 : vector<16x128xf32>
    %cst_53 = arith.constant 9.99999974E-6 : f32
    %118 = vector.broadcast %cst_53 : f32 to vector<1x128xf32>
    %119 = arith.addf %115, %118 : vector<1x128xf32>
    %120 = math.rsqrt %119 : vector<1x128xf32>
    %121 = vector.broadcast %120 : vector<1x128xf32> to vector<16x128xf32>
    %122 = arith.mulf %117, %121 : vector<16x128xf32>
    %123 = vector.broadcast %96 : vector<1x128xf32> to vector<16x128xf32>
    %124 = arith.mulf %122, %123 : vector<16x128xf32>
    %125 = vector.broadcast %97 : vector<1x128xf32> to vector<16x128xf32>
    %126 = arith.addf %124, %125 : vector<16x128xf32>
    %cst_54 = arith.constant 0.000000e+00 : f32
    %127 = vector.broadcast %cst_54 : f32 to vector<16x128xf32>
    %128 = arith.maximumf %126, %127 : vector<16x128xf32>
    %129 = arith.mulf %128, %102 : vector<16x128xf32>
    %c0_55 = arith.constant 0 : index
    %c0_56 = arith.constant 0 : index
    %130 = vector.load %arg16[%c0_55, %c0_56] : memref<16x128xf32, #tpu.memory_space<vmem>>, vector<16x128xf32>
    tpu.vector_store %arg16[%c0_55, %c0_56], %129 {strides = array<i32>} : memref<16x128xf32, #tpu.memory_space<vmem>>, vector<16x128xf32>,
    return
  }
}

module attributes {stable_mosaic.version = 11 : i64} {
  func.func @gin_epilogue_kernel(%arg0: memref<768x128xf32, #tpu.memory_space<vmem>>, %arg1: memref<128x128xbf16, #tpu.memory_space<vmem>>, %arg2: memref<1x128xf32, #tpu.memory_space<vmem>>, %arg3: memref<128x128xbf16, #tpu.memory_space<vmem>>, %arg4: memref<1x128xf32, #tpu.memory_space<vmem>>, %arg5: memref<1x128xf32, #tpu.memory_space<vmem>>, %arg6: memref<1x128xf32, #tpu.memory_space<vmem>>, %arg7: memref<512x128xf32, #tpu.memory_space<vmem>>) attributes {dimension_semantics = [], scalar_prefetch = 0 : i64, scratch_operands = 0 : i64, tpu.core_type = #tpu.core_type<tc>} {
    %c0 = arith.constant 0 : index
    %c0_0 = arith.constant 0 : index
    %0 = vector.load %arg0[%c0, %c0_0] : memref<768x128xf32, #tpu.memory_space<vmem>>, vector<512x128xf32>
    %c0_1 = arith.constant 0 : index
    %c0_2 = arith.constant 0 : index
    %1 = vector.load %arg1[%c0_1, %c0_2] : memref<128x128xbf16, #tpu.memory_space<vmem>>, vector<128x128xbf16>
    %c0_3 = arith.constant 0 : index
    %c0_4 = arith.constant 0 : index
    %2 = vector.load %arg2[%c0_3, %c0_4] : memref<1x128xf32, #tpu.memory_space<vmem>>, vector<1x128xf32>
    %c0_5 = arith.constant 0 : index
    %c0_6 = arith.constant 0 : index
    %3 = vector.load %arg3[%c0_5, %c0_6] : memref<128x128xbf16, #tpu.memory_space<vmem>>, vector<128x128xbf16>
    %c0_7 = arith.constant 0 : index
    %c0_8 = arith.constant 0 : index
    %4 = vector.load %arg4[%c0_7, %c0_8] : memref<1x128xf32, #tpu.memory_space<vmem>>, vector<1x128xf32>
    %c0_9 = arith.constant 0 : index
    %c0_10 = arith.constant 0 : index
    %5 = vector.load %arg5[%c0_9, %c0_10] : memref<1x128xf32, #tpu.memory_space<vmem>>, vector<1x128xf32>
    %c0_11 = arith.constant 0 : index
    %c0_12 = arith.constant 0 : index
    %6 = vector.load %arg6[%c0_11, %c0_12] : memref<1x128xf32, #tpu.memory_space<vmem>>, vector<1x128xf32>
    %7 = arith.truncf %0 : vector<512x128xf32> to vector<512x128xbf16>
    %cst = arith.constant dense<0.000000e+00> : vector<512x128xf32>
    %8 = tpu.matmul %7, %1, %cst {dimension_numbers = #tpu.dot_dimension_numbers<[1], [0], [0], [1], [0, 0, 1, 1], [], []>} : vector<512x128xbf16>, vector<128x128xbf16>, vector<512x128xf32> -> vector<512x128xf32>
    %9 = vector.broadcast %2 : vector<1x128xf32> to vector<512x128xf32>
    %10 = arith.addf %8, %9 : vector<512x128xf32>
    %cst_13 = arith.constant 0.000000e+00 : f32
    %11 = vector.broadcast %cst_13 : f32 to vector<512x128xf32>
    %12 = arith.maximumf %10, %11 : vector<512x128xf32>
    %13 = arith.truncf %12 : vector<512x128xf32> to vector<512x128xbf16>
    %cst_14 = arith.constant dense<0.000000e+00> : vector<512x128xf32>
    %14 = tpu.matmul %13, %3, %cst_14 {dimension_numbers = #tpu.dot_dimension_numbers<[1], [0], [0], [1], [0, 0, 1, 1], [], []>} : vector<512x128xbf16>, vector<128x128xbf16>, vector<512x128xf32> -> vector<512x128xf32>
    %15 = vector.broadcast %4 : vector<1x128xf32> to vector<512x128xf32>
    %16 = arith.addf %14, %15 : vector<512x128xf32>
    %17 = tpu.iota {dimensions = array<i32: 0>} : vector<512x128xi32>
    %c16_i32 = arith.constant 16 : i32
    %18 = vector.broadcast %c16_i32 : i32 to vector<512x128xi32>
    %19 = arith.cmpi slt, %17, %18 : vector<512x128xi32>
    %20 = arith.extui %19 : vector<512x128xi1> to vector<512x128xi32>
    %21 = arith.sitofp %20 : vector<512x128xi32> to vector<512x128xf32>
    %22 = arith.mulf %16, %21 : vector<512x128xf32>
    %cst_15 = arith.constant dense<0.000000e+00> : vector<128xf32>
    %23 = vector.multi_reduction <add>, %22, %cst_15 [0] : vector<512x128xf32> to vector<128xf32>
    %24 = vector.shape_cast %23 : vector<128xf32> to vector<1x128xf32>
    %cst_16 = arith.constant 6.250000e-02 : f32
    %25 = vector.broadcast %cst_16 : f32 to vector<1x128xf32>
    %26 = arith.mulf %24, %25 : vector<1x128xf32>
    %27 = vector.broadcast %26 : vector<1x128xf32> to vector<512x128xf32>
    %28 = arith.subf %16, %27 : vector<512x128xf32>
    %29 = arith.mulf %28, %21 : vector<512x128xf32>
    %30 = arith.mulf %29, %29 : vector<512x128xf32>
    %cst_17 = arith.constant dense<0.000000e+00> : vector<128xf32>
    %31 = vector.multi_reduction <add>, %30, %cst_17 [0] : vector<512x128xf32> to vector<128xf32>
    %32 = vector.shape_cast %31 : vector<128xf32> to vector<1x128xf32>
    %cst_18 = arith.constant 6.250000e-02 : f32
    %33 = vector.broadcast %cst_18 : f32 to vector<1x128xf32>
    %34 = arith.mulf %32, %33 : vector<1x128xf32>
    %35 = vector.broadcast %26 : vector<1x128xf32> to vector<512x128xf32>
    %36 = arith.subf %16, %35 : vector<512x128xf32>
    %cst_19 = arith.constant 9.99999974E-6 : f32
    %37 = vector.broadcast %cst_19 : f32 to vector<1x128xf32>
    %38 = arith.addf %34, %37 : vector<1x128xf32>
    %39 = math.rsqrt %38 : vector<1x128xf32>
    %40 = vector.broadcast %39 : vector<1x128xf32> to vector<512x128xf32>
    %41 = arith.mulf %36, %40 : vector<512x128xf32>
    %42 = vector.broadcast %5 : vector<1x128xf32> to vector<512x128xf32>
    %43 = arith.mulf %41, %42 : vector<512x128xf32>
    %44 = vector.broadcast %6 : vector<1x128xf32> to vector<512x128xf32>
    %45 = arith.addf %43, %44 : vector<512x128xf32>
    %46 = arith.mulf %45, %21 : vector<512x128xf32>
    %c0_20 = arith.constant 0 : index
    %c0_21 = arith.constant 0 : index
    %47 = vector.load %arg7[%c0_20, %c0_21] : memref<512x128xf32, #tpu.memory_space<vmem>>, vector<512x128xf32>
    tpu.vector_store %arg7[%c0_20, %c0_21], %46 {strides = array<i32>} : memref<512x128xf32, #tpu.memory_space<vmem>>, vector<512x128xf32>,
    return
  }
}

</mosaic_0001>

<llo_original>
// kernel: gnn_virtualnode_forward.4
$region0: #{gnn_virtualnode_forward.4}
  #allocation0 [shape = 'u32[]', space=smem, size = 0x4, offset = 0x4, fixed_abs, tag = 'smem constant byte address 0x4 - core index']
  #allocation1 [shape = 'u32[144,128]{1,0:T(1,128)}', space=vmem, size = 0x12000, scoped, tag = 'internal scratch']
  %s0 = inlined_call_operand.vmem [shape: s8[768,512], index: 0, kind: input, shape index: {}]
  %s1 = inlined_call_operand.vmem [shape: bf16[512,128], index: 1, kind: input, shape index: {}]
  %s2 = inlined_call_operand.vmem [shape: f32[768,128], index: 2, kind: input, shape index: {}]
  %s3 = inlined_call_operand.vmem [shape: f32[768,128], index: 3, kind: output, shape index: {}]
  %s4 = sld [smem:[#allocation0]]
  $region49: #{gnn_virtualnode_forward.4} parent=0
    _
  %s6 = ssub.s32 1, %s4
  %s7 = scalar_select 0, %s6, %s4
  loop: start=0, step=1, limit=5
  $region2: #{gnn_virtualnode_forward.4} parent=0 // loop_pre_header
    _
  $region3: #{gnn_virtualnode_forward.4} parent=0 // loop_header
    %s9 = sphi 0, %s13
    %p10 = scmp.ge.s32.totalorder %s9, 5
    %s16 = sphi 0, %s28
    %s17 = sphi 0, %s24
    %s18 = sphi 0, %s16
    %s19 = sphi 0, %s17
    %s20 = sphi 0, %s18
    %s21 = sphi 0, %s19
    %s33 = sphi 0, %s35
    %s36 = sphi 0, %s33
    %s37 = sphi 0, %s36
    %s53 = sphi 0, %s37
    %s59 = sphi 0, %s61
    %s62 = sphi 0, %s59
    %s63 = sphi 0, %s62
    %s79 = sphi 0, %s63
    %s85 = sphi 0, %s87
    %s88 = sphi 0, %s85
    %s89 = sphi 0, %s88
    %s105 = sphi 0, %s89
    %s111 = sphi 0, %s113
    %s114 = sphi 0, %s111
    %s115 = sphi 0, %s114
    %s131 = sphi 0, %s115
  $region4: #{gnn_virtualnode_forward.4} parent=0 // loop_header_branch
    %12 = sbr.rel (%p10) target = $region8
  $region5: #{gnn_virtualnode_forward.4} parent=0 // loop_body
    %s14 = ssub.s32 %s9, 1
    %s15 = ssub.s32 %s9, 2
    %s22 = sadd.s32 1, %s17
    %p23 = scmp.ge.s32.totalorder %s22, 1
    %s24 = scalar_select %p23, 0, %s22
    %s25 = sadd.s32 1, %s16
    %s26 = scalar_select %p23, %s25, %s16
    %p27 = scmp.ge.s32.totalorder %s26, 3
    %s28 = scalar_select %p27, 0, %s26
    %s29 = ssub.s32 %s16, %s28
    %s30 = ssub.s32 %s17, %s24
    %s31 = sor.u32 %s29, %s30
    %p32 = scmp.eq.s32.totalorder %s31, 0
    %s34 = sadd.s32 %s33, 1
    %s35 = scalar_select %p32, %s33, %s34
    %p38 = pneg %p32
    %p39 = scmp.eq.s32.totalorder %s9, 2
    %p40 = por %p38, %p39
    %p41 = scmp.ne.s32.totalorder %s33, %s36
    %p42 = scmp.eq.s32.totalorder %s9, 0
    %p43 = por %p41, %p42
    %p44 = scmp.ne.s32.totalorder %s33, %s36
    %p45 = scmp.eq.s32.totalorder %s14, 2
    %p46 = por %p44, %p45
    %p47 = scmp.ne.s32.totalorder %s36, %s37
    %p48 = scmp.eq.s32.totalorder %s14, 0
    %p49 = por %p47, %p48
    %p50 = scmp.ne.s32.totalorder %s36, %s37
    %p51 = scmp.eq.s32.totalorder %s15, 2
    %p52 = por %p50, %p51
    %p54 = scmp.ne.s32.totalorder %s37, %s53
    %p55 = scmp.eq.s32.totalorder %s15, 0
    %p56 = por %p54, %p55
    %s57 = ssub.s32 %s17, %s24
    %p58 = scmp.eq.s32.totalorder %s57, 0
    %s60 = sadd.s32 %s59, 1
    %s61 = scalar_select %p58, %s59, %s60
    %p64 = pneg %p58
    %p65 = scmp.eq.s32.totalorder %s9, 2
    %p66 = por %p64, %p65
    %p67 = scmp.ne.s32.totalorder %s59, %s62
    %p68 = scmp.eq.s32.totalorder %s9, 0
    %p69 = por %p67, %p68
    %p70 = scmp.ne.s32.totalorder %s59, %s62
    %p71 = scmp.eq.s32.totalorder %s14, 2
    %p72 = por %p70, %p71
    %p73 = scmp.ne.s32.totalorder %s62, %s63
    %p74 = scmp.eq.s32.totalorder %s14, 0
    %p75 = por %p73, %p74
    %p76 = scmp.ne.s32.totalorder %s62, %s63
    %p77 = scmp.eq.s32.totalorder %s15, 2
    %p78 = por %p76, %p77
    %p80 = scmp.ne.s32.totalorder %s63, %s79
    %p81 = scmp.eq.s32.totalorder %s15, 0
    %p82 = por %p80, %p81
    %s83 = ssub.s32 %s16, %s28
    %p84 = scmp.eq.s32.totalorder %s83, 0
    %s86 = sadd.s32 %s85, 1
    %s87 = scalar_select %p84, %s85, %s86
    %p90 = pneg %p84
    %p91 = scmp.eq.s32.totalorder %s9, 2
    %p92 = por %p90, %p91
    %p93 = scmp.ne.s32.totalorder %s85, %s88
    %p94 = scmp.eq.s32.totalorder %s9, 0
    %p95 = por %p93, %p94
    %p96 = scmp.ne.s32.totalorder %s85, %s88
    %p97 = scmp.eq.s32.totalorder %s14, 2
    %p98 = por %p96, %p97
    %p99 = scmp.ne.s32.totalorder %s88, %s89
    %p100 = scmp.eq.s32.totalorder %s14, 0
    %p101 = por %p99, %p100
    %p102 = scmp.ne.s32.totalorder %s88, %s89
    %p103 = scmp.eq.s32.totalorder %s15, 2
    %p104 = por %p102, %p103
    %p106 = scmp.ne.s32.totalorder %s89, %s105
    %p107 = scmp.eq.s32.totalorder %s15, 0
    %p108 = por %p106, %p107
    %s109 = ssub.s32 %s16, %s28
    %p110 = scmp.eq.s32.totalorder %s109, 0
    %s112 = sadd.s32 %s111, 1
    %s113 = scalar_select %p110, %s111, %s112
    %p116 = pneg %p110
    %p117 = scmp.eq.s32.totalorder %s9, 2
    %p118 = por %p116, %p117
    %p119 = scmp.ne.s32.totalorder %s111, %s114
    %p120 = scmp.eq.s32.totalorder %s9, 0
    %p121 = por %p119, %p120
    %p122 = scmp.ne.s32.totalorder %s111, %s114
    %p123 = scmp.eq.s32.totalorder %s14, 2
    %p124 = por %p122, %p123
    %p125 = scmp.ne.s32.totalorder %s114, %s115
    %p126 = scmp.eq.s32.totalorder %s14, 0
    %p127 = por %p125, %p126
    %p128 = scmp.ne.s32.totalorder %s114, %s115
    %p129 = scmp.eq.s32.totalorder %s15, 2
    %p130 = por %p128, %p129
    %p132 = scmp.ne.s32.totalorder %s115, %s131
    %p133 = scmp.eq.s32.totalorder %s15, 0
    %p134 = por %p132, %p133
    %p135 = scmp.le.s32.totalorder 1, %s9
    %p136 = scmp.lt.s32.totalorder %s9, 4
    %p137 = pnand %p135, %p136
    %p138 = pneg %p137
    // Predicated region
    $region9: #{gnn_virtualnode_forward.4} parent=5 // pred_check
      _
    $region10: #{gnn_virtualnode_forward.4} parent=5 // pred_check_branch
      %140 = sbr.rel (%p137) target = $region12
    $region11: #{gnn_virtualnode_forward.4} parent=5 // pred_region
      %s141 = ssub.s32 %s9, 1
      // Predicated region
      $region13: #{gnn_virtualnode_forward.4} parent=11 // pred_check
        %p142 = pneg %p75
      $region14: #{gnn_virtualnode_forward.4} parent=11 // pred_check_branch
        %144 = sbr.rel (%p142) target = $region16
      $region15: #{gnn_virtualnode_forward.4} parent=11 // pred_region
        %s145 = smul.u32 64, %s19
        %p146 = scmp.lt.s32.totalorder %s145, 63
        %s147 = scalar_select %p146, %s145, 63
        %s148 = smul.addr %s147, 4
        %s149 = scalar_lea.vmem %s1, %s148
        %s150 = smul.u32 64, %s19
      $region16: #{gnn_virtualnode_forward.4} parent=11 // pred_fallthru
        _
    $region12: #{gnn_virtualnode_forward.4} parent=5 // pred_fallthru
      _
    %p151 = scmp.lt.s32.totalorder %s9, 3
    // Predicated region
    $region17: #{gnn_virtualnode_forward.4} parent=5 // pred_check
      %p152 = pneg %p151
    $region18: #{gnn_virtualnode_forward.4} parent=5 // pred_check_branch
      %154 = sbr.rel (%p152) target = $region20
    $region19: #{gnn_virtualnode_forward.4} parent=5 // pred_region
      // Predicated region
      $region21: #{gnn_virtualnode_forward.4} parent=19 // pred_check
        %p155 = pneg %p43
      $region22: #{gnn_virtualnode_forward.4} parent=19 // pred_check_branch
        %157 = sbr.rel (%p155) target = $region24
      $region23: #{gnn_virtualnode_forward.4} parent=19 // pred_region
        %s158 = smul.u32 8, %s16
        %s159 = smul.u32 4, %s17
        %p160 = scmp.lt.s32.totalorder %s158, 23
        %s161 = scalar_select %p160, %s158, 23
        %p162 = scmp.lt.s32.totalorder %s159, 3
        %s163 = scalar_select %p162, %s159, 3
        %s164 = smul.addr %s161, 4
        %s165 = sadd.s32 %s163, %s164
        %s166 = smul.addr %s165, 8
        %s167 = scalar_lea.vmem %s0, %s166
        %s168 = smul.u32 8, %s16
        %s169 = smul.u32 4, %s17
      $region24: #{gnn_virtualnode_forward.4} parent=19 // pred_fallthru
        _
      // Predicated region
      $region25: #{gnn_virtualnode_forward.4} parent=19 // pred_check
        %p170 = pneg %p95
      $region26: #{gnn_virtualnode_forward.4} parent=19 // pred_check_branch
        %172 = sbr.rel (%p170) target = $region28
      $region27: #{gnn_virtualnode_forward.4} parent=19 // pred_region
        %s173 = smul.u32 32, %s16
        %p174 = scmp.lt.s32.totalorder %s173, 95
        %s175 = scalar_select %p174, %s173, 95
        %s176 = smul.addr %s175, 8
        %s177 = scalar_lea.vmem %s2, %s176
        %s178 = smul.u32 32, %s16
      $region28: #{gnn_virtualnode_forward.4} parent=19 // pred_fallthru
        _
    $region20: #{gnn_virtualnode_forward.4} parent=5 // pred_fallthru
      _
    %p179 = scmp.le.s32.totalorder 1, %s9
    %p180 = scmp.lt.s32.totalorder %s9, 4
    %p181 = pnand %p179, %p180
    %p182 = pneg %p181
    // Predicated region
    $region29: #{gnn_virtualnode_forward.4} parent=5 // pred_check
      _
    $region30: #{gnn_virtualnode_forward.4} parent=5 // pred_check_branch
      %184 = sbr.rel (%p181) target = $region32
    $region31: #{gnn_virtualnode_forward.4} parent=5 // pred_region
      %s185 = ssub.s32 %s9, 1
      %s186 = smul.u32 8, %s18
      %s187 = smul.u32 4, %s19
      %p188 = scmp.lt.s32.totalorder %s186, 23
      %s189 = scalar_select %p188, %s186, 23
      %p190 = scmp.lt.s32.totalorder %s187, 3
      %s191 = scalar_select %p190, %s187, 3
      %s192 = smul.addr %s189, 4
      %s193 = sadd.s32 %s191, %s192
      %s194 = smul.addr %s193, 8
      %s195 = scalar_lea.vmem %s0, %s194
      %p196 = pneg %p49
      %p197 = pneg %p46
      %s198 = smul.u32 64, %s19
      %p199 = scmp.lt.s32.totalorder %s198, 63
      %s200 = scalar_select %p199, %s198, 63
      %s201 = smul.addr %s200, 4
      %s202 = scalar_lea.vmem %s1, %s201
      %p203 = pneg %p75
      %p204 = pneg %p72
      %s205 = smul.u32 32, %s18
      %p206 = scmp.lt.s32.totalorder %s205, 95
      %s207 = scalar_select %p206, %s205, 95
      %s208 = smul.addr %s207, 8
      %s209 = scalar_lea.vmem %s2, %s208
      %p210 = pneg %p101
      %p211 = pneg %p98
      %p212 = pneg %p127
      %p213 = pneg %p124
      %s214 = smul.u32 32, %s18
      %p215 = scmp.lt.s32.totalorder %s214, 95
      %s216 = scalar_select %p215, %s214, 95
      %s217 = smul.addr %s216, 8
      %s218 = scalar_lea.vmem %s3, %s217
      %s219 = smul.u32 8, %s18
      %s220 = smul.u32 4, %s19
      %p221 = scmp.lt.s32.totalorder %s219, 23
      %s222 = scalar_select %p221, %s219, 23
      %p223 = scmp.lt.s32.totalorder %s220, 3
      %s224 = scalar_select %p223, %s220, 3
      %s225 = smul.addr %s222, 4
      %s226 = sadd.s32 %s224, %s225
      %s227 = smul.addr %s226, 8
      %s228 = scalar_lea.vmem %s0, %s227
      %s229 = smul.u32 8, %s18
      %s230 = smul.u32 4, %s19
      %s231 = smul.u32 64, %s19
      %p232 = scmp.lt.s32.totalorder %s231, 63
      %s233 = scalar_select %p232, %s231, 63
      %s234 = smul.addr %s233, 4
      %s235 = scalar_lea.vmem %s1, %s234
      %s236 = smul.u32 64, %s19
      %s237 = smul.u32 32, %s18
      %p238 = scmp.lt.s32.totalorder %s237, 95
      %s239 = scalar_select %p238, %s237, 95
      %s240 = smul.addr %s239, 8
      %s241 = scalar_lea.vmem %s2, %s240
      %s242 = smul.u32 32, %s18
      %s243 = smul.u32 32, %s18
      %p244 = scmp.lt.s32.totalorder %s243, 95
      %s245 = scalar_select %p244, %s243, 95
      %s246 = smul.addr %s245, 8
      %s247 = scalar_lea.vmem %s3, %s246
      %s248 = smul.u32 32, %s18
      %p250 = scmp.eq.s32.totalorder %s19, 0
      // Predicated region
      $region33: #{gnn_virtualnode_forward.4} parent=31 // pred_check
        %p251 = pneg %p250
      $region34: #{gnn_virtualnode_forward.4} parent=31 // pred_check_branch
        %253 = sbr.rel (%p251) target = $region36
      $region35: #{gnn_virtualnode_forward.4} parent=31 // pred_region
        %v254 = vld [vmem:[%s241] sm:$0xff]
        %v255 = vld [vmem:[%s241 + $0x8] sm:$0xff]
        %v256 = vld [vmem:[%s241 + $0x10] sm:$0xff]
        %v257 = vld [vmem:[%s241 + $0x18] sm:$0xff]
        %v258 = vld [vmem:[%s241 + $0x20] sm:$0xff]
        %v259 = vld [vmem:[%s241 + $0x28] sm:$0xff]
        %v260 = vld [vmem:[%s241 + $0x30] sm:$0xff]
        %v261 = vld [vmem:[%s241 + $0x38] sm:$0xff]
        %v262 = vld [vmem:[%s241 + $0x40] sm:$0xff]
        %v263 = vld [vmem:[%s241 + $0x48] sm:$0xff]
        %v264 = vld [vmem:[%s241 + $0x50] sm:$0xff]
        %v265 = vld [vmem:[%s241 + $0x58] sm:$0xff]
        %v266 = vld [vmem:[%s241 + $0x60] sm:$0xff]
        %v267 = vld [vmem:[%s241 + $0x68] sm:$0xff]
        %v268 = vld [vmem:[%s241 + $0x70] sm:$0xff]
        %v269 = vld [vmem:[%s241 + $0x78] sm:$0xff]
        %v270 = vld [vmem:[%s241 + $0x80] sm:$0xff]
        %v271 = vld [vmem:[%s241 + $0x88] sm:$0xff]
        %v272 = vld [vmem:[%s241 + $0x90] sm:$0xff]
        %v273 = vld [vmem:[%s241 + $0x98] sm:$0xff]
        %v274 = vld [vmem:[%s241 + $0xa0] sm:$0xff]
        %v275 = vld [vmem:[%s241 + $0xa8] sm:$0xff]
        %v276 = vld [vmem:[%s241 + $0xb0] sm:$0xff]
        %v277 = vld [vmem:[%s241 + $0xb8] sm:$0xff]
        %v278 = vld [vmem:[%s241 + $0xc0] sm:$0xff]
        %v279 = vld [vmem:[%s241 + $0xc8] sm:$0xff]
        %v280 = vld [vmem:[%s241 + $0xd0] sm:$0xff]
        %v281 = vld [vmem:[%s241 + $0xd8] sm:$0xff]
        %v282 = vld [vmem:[%s241 + $0xe0] sm:$0xff]
        %v283 = vld [vmem:[%s241 + $0xe8] sm:$0xff]
        %v284 = vld [vmem:[%s241 + $0xf0] sm:$0xff]
        %v285 = vld [vmem:[%s241 + $0xf8] sm:$0xff]
        %286 = vst [vmem:[%s247] sm:$0xff] %v254
        %287 = vst [vmem:[%s247 + $0x8] sm:$0xff] %v255
        %288 = vst [vmem:[%s247 + $0x10] sm:$0xff] %v256
        %289 = vst [vmem:[%s247 + $0x18] sm:$0xff] %v257
        %290 = vst [vmem:[%s247 + $0x20] sm:$0xff] %v258
        %291 = vst [vmem:[%s247 + $0x28] sm:$0xff] %v259
        %292 = vst [vmem:[%s247 + $0x30] sm:$0xff] %v260
        %293 = vst [vmem:[%s247 + $0x38] sm:$0xff] %v261
        %294 = vst [vmem:[%s247 + $0x40] sm:$0xff] %v262
        %295 = vst [vmem:[%s247 + $0x48] sm:$0xff] %v263
        %296 = vst [vmem:[%s247 + $0x50] sm:$0xff] %v264
        %297 = vst [vmem:[%s247 + $0x58] sm:$0xff] %v265
        %298 = vst [vmem:[%s247 + $0x60] sm:$0xff] %v266
        %299 = vst [vmem:[%s247 + $0x68] sm:$0xff] %v267
        %300 = vst [vmem:[%s247 + $0x70] sm:$0xff] %v268
        %301 = vst [vmem:[%s247 + $0x78] sm:$0xff] %v269
        %302 = vst [vmem:[%s247 + $0x80] sm:$0xff] %v270
        %303 = vst [vmem:[%s247 + $0x88] sm:$0xff] %v271
        %304 = vst [vmem:[%s247 + $0x90] sm:$0xff] %v272
        %305 = vst [vmem:[%s247 + $0x98] sm:$0xff] %v273
        %306 = vst [vmem:[%s247 + $0xa0] sm:$0xff] %v274
        %307 = vst [vmem:[%s247 + $0xa8] sm:$0xff] %v275
        %308 = vst [vmem:[%s247 + $0xb0] sm:$0xff] %v276
        %309 = vst [vmem:[%s247 + $0xb8] sm:$0xff] %v277
        %310 = vst [vmem:[%s247 + $0xc0] sm:$0xff] %v278
        %311 = vst [vmem:[%s247 + $0xc8] sm:$0xff] %v279
        %312 = vst [vmem:[%s247 + $0xd0] sm:$0xff] %v280
        %313 = vst [vmem:[%s247 + $0xd8] sm:$0xff] %v281
        %314 = vst [vmem:[%s247 + $0xe0] sm:$0xff] %v282
        %315 = vst [vmem:[%s247 + $0xe8] sm:$0xff] %v283
        %316 = vst [vmem:[%s247 + $0xf0] sm:$0xff] %v284
        %317 = vst [vmem:[%s247 + $0xf8] sm:$0xff] %v285
      $region36: #{gnn_virtualnode_forward.4} parent=31 // pred_fallthru
        _
      %v318 = vld [vmem:[%s228] sm:$0xff]
      %v319 = vld [vmem:[%s228 + $0x8] sm:$0xff]
      %v320 = vld [vmem:[%s228 + $0x10] sm:$0xff]
      %v321 = vld [vmem:[%s228 + $0x18] sm:$0xff]
      %v322 = vld [vmem:[%s228 + $0x20] sm:$0xff]
      %v323 = vld [vmem:[%s228 + $0x28] sm:$0xff]
      %v324 = vld [vmem:[%s228 + $0x30] sm:$0xff]
      %v325 = vld [vmem:[%s228 + $0x38] sm:$0xff]
      %v326 = vld [vmem:[%s228 + $0x40] sm:$0xff]
      %v327 = vld [vmem:[%s228 + $0x48] sm:$0xff]
      %v328 = vld [vmem:[%s228 + $0x50] sm:$0xff]
      %v329 = vld [vmem:[%s228 + $0x58] sm:$0xff]
      %v330 = vld [vmem:[%s228 + $0x60] sm:$0xff]
      %v331 = vld [vmem:[%s228 + $0x68] sm:$0xff]
      %v332 = vld [vmem:[%s228 + $0x70] sm:$0xff]
      %v333 = vld [vmem:[%s228 + $0x78] sm:$0xff]
      %v334 = vld [vmem:[%s228 + $0x80] sm:$0xff]
      %v335 = vld [vmem:[%s228 + $0x88] sm:$0xff]
      %v336 = vld [vmem:[%s228 + $0x90] sm:$0xff]
      %v337 = vld [vmem:[%s228 + $0x98] sm:$0xff]
      %v338 = vld [vmem:[%s228 + $0xa0] sm:$0xff]
      %v339 = vld [vmem:[%s228 + $0xa8] sm:$0xff]
      %v340 = vld [vmem:[%s228 + $0xb0] sm:$0xff]
      %v341 = vld [vmem:[%s228 + $0xb8] sm:$0xff]
      %v342 = vld [vmem:[%s228 + $0xc0] sm:$0xff]
      %v343 = vld [vmem:[%s228 + $0xc8] sm:$0xff]
      %v344 = vld [vmem:[%s228 + $0xd0] sm:$0xff]
      %v345 = vld [vmem:[%s228 + $0xd8] sm:$0xff]
      %v346 = vld [vmem:[%s228 + $0xe0] sm:$0xff]
      %v347 = vld [vmem:[%s228 + $0xe8] sm:$0xff]
      %v348 = vld [vmem:[%s228 + $0xf0] sm:$0xff]
      %v349 = vld [vmem:[%s228 + $0xf8] sm:$0xff]
      %v350 = vunpack.c.l.s8.bf16 %v318
      %v351 = vunpack.c.l.s8.bf16 %v319
      %v352 = vunpack.c.l.s8.bf16 %v320
      %v353 = vunpack.c.l.s8.bf16 %v321
      %v354 = vunpack.c.h.s8.bf16 %v318
      %v355 = vunpack.c.h.s8.bf16 %v319
      %v356 = vunpack.c.h.s8.bf16 %v320
      %v357 = vunpack.c.h.s8.bf16 %v321
      %v358 = vunpack.c.l.s8.bf16 %v322
      %v359 = vunpack.c.l.s8.bf16 %v323
      %v360 = vunpack.c.l.s8.bf16 %v324
      %v361 = vunpack.c.l.s8.bf16 %v325
      %v362 = vunpack.c.h.s8.bf16 %v322
      %v363 = vunpack.c.h.s8.bf16 %v323
      %v364 = vunpack.c.h.s8.bf16 %v324
      %v365 = vunpack.c.h.s8.bf16 %v325
      %v366 = vunpack.c.l.s8.bf16 %v326
      %v367 = vunpack.c.l.s8.bf16 %v327
      %v368 = vunpack.c.l.s8.bf16 %v328
      %v369 = vunpack.c.l.s8.bf16 %v329
      %v370 = vunpack.c.h.s8.bf16 %v326
      %v371 = vunpack.c.h.s8.bf16 %v327
      %v372 = vunpack.c.h.s8.bf16 %v328
      %v373 = vunpack.c.h.s8.bf16 %v329
      %v374 = vunpack.c.l.s8.bf16 %v330
      %v375 = vunpack.c.l.s8.bf16 %v331
      %v376 = vunpack.c.l.s8.bf16 %v332
      %v377 = vunpack.c.l.s8.bf16 %v333
      %v378 = vunpack.c.h.s8.bf16 %v330
      %v379 = vunpack.c.h.s8.bf16 %v331
      %v380 = vunpack.c.h.s8.bf16 %v332
      %v381 = vunpack.c.h.s8.bf16 %v333
      %v382 = vunpack.c.l.s8.bf16 %v334
      %v383 = vunpack.c.l.s8.bf16 %v335
      %v384 = vunpack.c.l.s8.bf16 %v336
      %v385 = vunpack.c.l.s8.bf16 %v337
      %v386 = vunpack.c.h.s8.bf16 %v334
      %v387 = vunpack.c.h.s8.bf16 %v335
      %v388 = vunpack.c.h.s8.bf16 %v336
      %v389 = vunpack.c.h.s8.bf16 %v337
      %v390 = vunpack.c.l.s8.bf16 %v338
      %v391 = vunpack.c.l.s8.bf16 %v339
      %v392 = vunpack.c.l.s8.bf16 %v340
      %v393 = vunpack.c.l.s8.bf16 %v341
      %v394 = vunpack.c.h.s8.bf16 %v338
      %v395 = vunpack.c.h.s8.bf16 %v339
      %v396 = vunpack.c.h.s8.bf16 %v340
      %v397 = vunpack.c.h.s8.bf16 %v341
      %v398 = vunpack.c.l.s8.bf16 %v342
      %v399 = vunpack.c.l.s8.bf16 %v343
      %v400 = vunpack.c.l.s8.bf16 %v344
      %v401 = vunpack.c.l.s8.bf16 %v345
      %v402 = vunpack.c.h.s8.bf16 %v342
      %v403 = vunpack.c.h.s8.bf16 %v343
      %v404 = vunpack.c.h.s8.bf16 %v344
      %v405 = vunpack.c.h.s8.bf16 %v345
      %v406 = vunpack.c.l.s8.bf16 %v346
      %v407 = vunpack.c.l.s8.bf16 %v347
      %v408 = vunpack.c.l.s8.bf16 %v348
      %v409 = vunpack.c.l.s8.bf16 %v349
      %v410 = vunpack.c.h.s8.bf16 %v346
      %v411 = vunpack.c.h.s8.bf16 %v347
      %v412 = vunpack.c.h.s8.bf16 %v348
      %v413 = vunpack.c.h.s8.bf16 %v349
      %v414 = vld [vmem:[%s247] sm:$0xff]
      %v415 = vld [vmem:[%s247 + $0x8] sm:$0xff]
      %v416 = vld [vmem:[%s247 + $0x10] sm:$0xff]
      %v417 = vld [vmem:[%s247 + $0x18] sm:$0xff]
      %v418 = vld [vmem:[%s247 + $0x20] sm:$0xff]
      %v419 = vld [vmem:[%s247 + $0x28] sm:$0xff]
      %v420 = vld [vmem:[%s247 + $0x30] sm:$0xff]
      %v421 = vld [vmem:[%s247 + $0x38] sm:$0xff]
      %v422 = vld [vmem:[%s247 + $0x40] sm:$0xff]
      %v423 = vld [vmem:[%s247 + $0x48] sm:$0xff]
      %v424 = vld [vmem:[%s247 + $0x50] sm:$0xff]
      %v425 = vld [vmem:[%s247 + $0x58] sm:$0xff]
      %v426 = vld [vmem:[%s247 + $0x60] sm:$0xff]
      %v427 = vld [vmem:[%s247 + $0x68] sm:$0xff]
      %v428 = vld [vmem:[%s247 + $0x70] sm:$0xff]
      %v429 = vld [vmem:[%s247 + $0x78] sm:$0xff]
      %v430 = vld [vmem:[%s247 + $0x80] sm:$0xff]
      %v431 = vld [vmem:[%s247 + $0x88] sm:$0xff]
      %v432 = vld [vmem:[%s247 + $0x90] sm:$0xff]
      %v433 = vld [vmem:[%s247 + $0x98] sm:$0xff]
      %v434 = vld [vmem:[%s247 + $0xa0] sm:$0xff]
      %v435 = vld [vmem:[%s247 + $0xa8] sm:$0xff]
      %v436 = vld [vmem:[%s247 + $0xb0] sm:$0xff]
      %v437 = vld [vmem:[%s247 + $0xb8] sm:$0xff]
      %v438 = vld [vmem:[%s247 + $0xc0] sm:$0xff]
      %v439 = vld [vmem:[%s247 + $0xc8] sm:$0xff]
      %v440 = vld [vmem:[%s247 + $0xd0] sm:$0xff]
      %v441 = vld [vmem:[%s247 + $0xd8] sm:$0xff]
      %v442 = vld [vmem:[%s247 + $0xe0] sm:$0xff]
      %v443 = vld [vmem:[%s247 + $0xe8] sm:$0xff]
      %v444 = vld [vmem:[%s247 + $0xf0] sm:$0xff]
      %v445 = vld [vmem:[%s247 + $0xf8] sm:$0xff]
      %v446 = vld [vmem:[%s235] sm:$0xf]
      %v447 = vld [vmem:[%s235 + $0x4] sm:$0xf]
      %v448 = vld [vmem:[%s235 + $0x8] sm:$0xf]
      %v449 = vld [vmem:[%s235 + $0xc] sm:$0xf]
      %v450 = vld [vmem:[%s235 + $0x10] sm:$0xf]
      %v451 = vld [vmem:[%s235 + $0x14] sm:$0xf]
      %v452 = vld [vmem:[%s235 + $0x18] sm:$0xf]
      %v453 = vld [vmem:[%s235 + $0x1c] sm:$0xf]
      %v454 = vld [vmem:[%s235 + $0x20] sm:$0xf]
      %v455 = vld [vmem:[%s235 + $0x24] sm:$0xf]
      %v456 = vld [vmem:[%s235 + $0x28] sm:$0xf]
      %v457 = vld [vmem:[%s235 + $0x2c] sm:$0xf]
      %v458 = vld [vmem:[%s235 + $0x30] sm:$0xf]
      %v459 = vld [vmem:[%s235 + $0x34] sm:$0xf]
      %v460 = vld [vmem:[%s235 + $0x38] sm:$0xf]
      %v461 = vld [vmem:[%s235 + $0x3c] sm:$0xf]
      %v462 = vld [vmem:[%s235 + $0x40] sm:$0xf]
      %v463 = vld [vmem:[%s235 + $0x44] sm:$0xf]
      %v464 = vld [vmem:[%s235 + $0x48] sm:$0xf]
      %v465 = vld [vmem:[%s235 + $0x4c] sm:$0xf]
      %v466 = vld [vmem:[%s235 + $0x50] sm:$0xf]
      %v467 = vld [vmem:[%s235 + $0x54] sm:$0xf]
      %v468 = vld [vmem:[%s235 + $0x58] sm:$0xf]
      %v469 = vld [vmem:[%s235 + $0x5c] sm:$0xf]
      %v470 = vld [vmem:[%s235 + $0x60] sm:$0xf]
      %v471 = vld [vmem:[%s235 + $0x64] sm:$0xf]
      %v472 = vld [vmem:[%s235 + $0x68] sm:$0xf]
      %v473 = vld [vmem:[%s235 + $0x6c] sm:$0xf]
      %v474 = vld [vmem:[%s235 + $0x70] sm:$0xf]
      %v475 = vld [vmem:[%s235 + $0x74] sm:$0xf]
      %v476 = vld [vmem:[%s235 + $0x78] sm:$0xf]
      %v477 = vld [vmem:[%s235 + $0x7c] sm:$0xf]
      %v478 = vld [vmem:[%s235 + $0x80] sm:$0xf]
      %v479 = vld [vmem:[%s235 + $0x84] sm:$0xf]
      %v480 = vld [vmem:[%s235 + $0x88] sm:$0xf]
      %v481 = vld [vmem:[%s235 + $0x8c] sm:$0xf]
      %v482 = vld [vmem:[%s235 + $0x90] sm:$0xf]
      %v483 = vld [vmem:[%s235 + $0x94] sm:$0xf]
      %v484 = vld [vmem:[%s235 + $0x98] sm:$0xf]
      %v485 = vld [vmem:[%s235 + $0x9c] sm:$0xf]
      %v486 = vld [vmem:[%s235 + $0xa0] sm:$0xf]
      %v487 = vld [vmem:[%s235 + $0xa4] sm:$0xf]
      %v488 = vld [vmem:[%s235 + $0xa8] sm:$0xf]
      %v489 = vld [vmem:[%s235 + $0xac] sm:$0xf]
      %v490 = vld [vmem:[%s235 + $0xb0] sm:$0xf]
      %v491 = vld [vmem:[%s235 + $0xb4] sm:$0xf]
      %v492 = vld [vmem:[%s235 + $0xb8] sm:$0xf]
      %v493 = vld [vmem:[%s235 + $0xbc] sm:$0xf]
      %v494 = vld [vmem:[%s235 + $0xc0] sm:$0xf]
      %v495 = vld [vmem:[%s235 + $0xc4] sm:$0xf]
      %v496 = vld [vmem:[%s235 + $0xc8] sm:$0xf]
      %v497 = vld [vmem:[%s235 + $0xcc] sm:$0xf]
      %v498 = vld [vmem:[%s235 + $0xd0] sm:$0xf]
      %v499 = vld [vmem:[%s235 + $0xd4] sm:$0xf]
      %v500 = vld [vmem:[%s235 + $0xd8] sm:$0xf]
      %v501 = vld [vmem:[%s235 + $0xdc] sm:$0xf]
      %v502 = vld [vmem:[%s235 + $0xe0] sm:$0xf]
      %v503 = vld [vmem:[%s235 + $0xe4] sm:$0xf]
      %v504 = vld [vmem:[%s235 + $0xe8] sm:$0xf]
      %v505 = vld [vmem:[%s235 + $0xec] sm:$0xf]
      %v506 = vld [vmem:[%s235 + $0xf0] sm:$0xf]
      %v507 = vld [vmem:[%s235 + $0xf4] sm:$0xf]
      %v508 = vld [vmem:[%s235 + $0xf8] sm:$0xf]
      %v509 = vld [vmem:[%s235 + $0xfc] sm:$0xf]
      %v574 = vunpack.c.l.b16 %v446
      %v575 = vunpack.c.l.b16 %v447
      %v576 = vunpack.c.l.b16 %v448
      %v577 = vunpack.c.l.b16 %v449
      %v578 = vunpack.c.l.b16 %v450
      %v579 = vunpack.c.l.b16 %v451
      %v580 = vunpack.c.l.b16 %v452
      %v581 = vunpack.c.l.b16 %v453
      %v582 = vunpack.c.l.b16 %v454
      %v583 = vunpack.c.l.b16 %v455
      %v584 = vunpack.c.l.b16 %v456
      %v585 = vunpack.c.l.b16 %v457
      %v586 = vunpack.c.l.b16 %v458
      %v587 = vunpack.c.l.b16 %v459
      %v588 = vunpack.c.l.b16 %v460
      %v589 = vunpack.c.l.b16 %v461
      %v590 = vunpack.c.l.b16 %v462
      %v591 = vunpack.c.l.b16 %v463
      %v592 = vunpack.c.l.b16 %v464
      %v593 = vunpack.c.l.b16 %v465
      %v594 = vunpack.c.l.b16 %v466
      %v595 = vunpack.c.l.b16 %v467
      %v596 = vunpack.c.l.b16 %v468
      %v597 = vunpack.c.l.b16 %v469
      %v598 = vunpack.c.l.b16 %v470
      %v599 = vunpack.c.l.b16 %v471
      %v600 = vunpack.c.l.b16 %v472
      %v601 = vunpack.c.l.b16 %v473
      %v602 = vunpack.c.l.b16 %v474
      %v603 = vunpack.c.l.b16 %v475
      %v604 = vunpack.c.l.b16 %v476
      %v605 = vunpack.c.l.b16 %v477
      %v606 = vunpack.c.l.b16 %v478
      %v607 = vunpack.c.l.b16 %v479
      %v608 = vunpack.c.l.b16 %v480
      %v609 = vunpack.c.l.b16 %v481
      %v610 = vunpack.c.l.b16 %v482
      %v611 = vunpack.c.l.b16 %v483
      %v612 = vunpack.c.l.b16 %v484
      %v613 = vunpack.c.l.b16 %v485
      %v614 = vunpack.c.l.b16 %v486
      %v615 = vunpack.c.l.b16 %v487
      %v616 = vunpack.c.l.b16 %v488
      %v617 = vunpack.c.l.b16 %v489
      %v618 = vunpack.c.l.b16 %v490
      %v619 = vunpack.c.l.b16 %v491
      %v620 = vunpack.c.l.b16 %v492
      %v621 = vunpack.c.l.b16 %v493
      %v622 = vunpack.c.l.b16 %v494
      %v623 = vunpack.c.l.b16 %v495
      %v624 = vunpack.c.l.b16 %v496
      %v625 = vunpack.c.l.b16 %v497
      %v626 = vunpack.c.l.b16 %v498
      %v627 = vunpack.c.l.b16 %v499
      %v628 = vunpack.c.l.b16 %v500
      %v629 = vunpack.c.l.b16 %v501
      %v630 = vunpack.c.l.b16 %v502
      %v631 = vunpack.c.l.b16 %v503
      %v632 = vunpack.c.l.b16 %v504
      %v633 = vunpack.c.l.b16 %v505
      %v634 = vunpack.c.l.b16 %v506
      %v635 = vunpack.c.l.b16 %v507
      %v636 = vunpack.c.l.b16 %v508
      %v637 = vunpack.c.l.b16 %v509
      %v638 = vpack.c.b16 %v575, %v574
      %v639 = vpack.c.b16 %v577, %v576
      %v640 = vpack.c.b16 %v579, %v578
      %v641 = vpack.c.b16 %v581, %v580
      %v642 = vpack.c.b16 %v583, %v582
      %v643 = vpack.c.b16 %v585, %v584
      %v644 = vpack.c.b16 %v587, %v586
      %v645 = vpack.c.b16 %v589, %v588
      %v646 = vpack.c.b16 %v591, %v590
      %v647 = vpack.c.b16 %v593, %v592
      %v648 = vpack.c.b16 %v595, %v594
      %v649 = vpack.c.b16 %v597, %v596
      %v650 = vpack.c.b16 %v599, %v598
      %v651 = vpack.c.b16 %v601, %v600
      %v652 = vpack.c.b16 %v603, %v602
      %v653 = vpack.c.b16 %v605, %v604
      %v654 = vpack.c.b16 %v607, %v606
      %v655 = vpack.c.b16 %v609, %v608
      %v656 = vpack.c.b16 %v611, %v610
      %v657 = vpack.c.b16 %v613, %v612
      %v658 = vpack.c.b16 %v615, %v614
      %v659 = vpack.c.b16 %v617, %v616
      %v660 = vpack.c.b16 %v619, %v618
      %v661 = vpack.c.b16 %v621, %v620
      %v662 = vpack.c.b16 %v623, %v622
      %v663 = vpack.c.b16 %v625, %v624
      %v664 = vpack.c.b16 %v627, %v626
      %v665 = vpack.c.b16 %v629, %v628
      %v666 = vpack.c.b16 %v631, %v630
      %v667 = vpack.c.b16 %v633, %v632
      %v668 = vpack.c.b16 %v635, %v634
      %v669 = vpack.c.b16 %v637, %v636
      %702 = vmatprep.subr.bf16.mxu0 0
      %703 = vmatpush1.bf16.msra.mxu0 %v638
      %704 = vmatprep.subr.bf16.mxu0 0
      %705 = vmatpush1.bf16.msra.mxu0 %v639
      %706 = vmatprep.subr.bf16.mxu0 0
      %707 = vmatpush1.bf16.msra.mxu0 %v640
      %708 = vmatprep.subr.bf16.mxu0 0
      %709 = vmatpush1.bf16.msra.mxu0 %v641
      %710 = vmatprep.subr.bf16.mxu0 0
      %711 = vmatpush1.bf16.msra.mxu0 %v642
      %712 = vmatprep.subr.bf16.mxu0 0
      %713 = vmatpush1.bf16.msra.mxu0 %v643
      %714 = vmatprep.subr.bf16.mxu0 0
      %715 = vmatpush1.bf16.msra.mxu0 %v644
      %716 = vmatprep.subr.bf16.mxu0 0
      %717 = vmatpush1.bf16.msra.mxu0 %v645
      %718 = vmatprep.subr.bf16.mxu0 0
      %719 = vmatpush1.bf16.msra.mxu0 %v646
      %720 = vmatprep.subr.bf16.mxu0 0
      %721 = vmatpush1.bf16.msra.mxu0 %v647
      %722 = vmatprep.subr.bf16.mxu0 0
      %723 = vmatpush1.bf16.msra.mxu0 %v648
      %724 = vmatprep.subr.bf16.mxu0 0
      %725 = vmatpush1.bf16.msra.mxu0 %v649
      %726 = vmatprep.subr.bf16.mxu0 0
      %727 = vmatpush1.bf16.msra.mxu0 %v650
      %728 = vmatprep.subr.bf16.mxu0 0
      %729 = vmatpush1.bf16.msra.mxu0 %v651
      %730 = vmatprep.subr.bf16.mxu0 0
      %731 = vmatpush1.bf16.msra.mxu0 %v652
      %732 = vmatprep.subr.bf16.mxu0 0
      %733 = vmatpush1.bf16.msra.mxu0 %v653
      %734 = vmatprep.mubr.bf16.mxu0 %v351
      %735 = vmatmul.mubr.bf16.gmra.mrb[0].mxu0 %v350
      %v736 = vpop.f32.mrb[0].mxu0
      %v737 = vadd.f32 0.0, %v736
      %v738 = vpop.f32.mrb[0].mxu0
      %v739 = vpop.f32.mrb[0].mxu0
      %v740 = vadd.f32 0.0, %v739
      %v741 = vpop.f32.mrb[0].mxu0
      %742 = vmatprep.mubr.bf16.mxu0 %v355
      %743 = vmatmul.mubr.bf16.gmra.mrb[0].mxu0 %v354
      %v744 = vpop.f32.mrb[0].mxu0
      %v745 = vadd.f32 0.0, %v744
      %v746 = vpop.f32.mrb[0].mxu0
      %v747 = vpop.f32.mrb[0].mxu0
      %v748 = vadd.f32 0.0, %v747
      %v749 = vpop.f32.mrb[0].mxu0
      %750 = vmatprep.mubr.bf16.mxu0 %v359
      %751 = vmatmul.mubr.bf16.gmra.mrb[0].mxu0 %v358
      %v752 = vpop.f32.mrb[0].mxu0
      %v753 = vadd.f32 0.0, %v752
      %v754 = vpop.f32.mrb[0].mxu0
      %v755 = vpop.f32.mrb[0].mxu0
      %v756 = vadd.f32 0.0, %v755
      %v757 = vpop.f32.mrb[0].mxu0
      %758 = vmatprep.mubr.bf16.mxu0 %v363
      %759 = vmatmul.mubr.bf16.gmra.mrb[0].mxu0 %v362
      %v760 = vpop.f32.mrb[0].mxu0
      %v761 = vadd.f32 0.0, %v760
      %v762 = vpop.f32.mrb[0].mxu0
      %v763 = vpop.f32.mrb[0].mxu0
      %v764 = vadd.f32 0.0, %v763
      %v765 = vpop.f32.mrb[0].mxu0
      %766 = vmatprep.mubr.bf16.mxu0 %v367
      %767 = vmatmul.mubr.bf16.gmra.mrb[0].mxu0 %v366
      %v768 = vpop.f32.mrb[0].mxu0
      %v769 = vadd.f32 0.0, %v768
      %v770 = vpop.f32.mrb[0].mxu0
      %v771 = vpop.f32.mrb[0].mxu0
      %v772 = vadd.f32 0.0, %v771
      %v773 = vpop.f32.mrb[0].mxu0
      %774 = vmatprep.mubr.bf16.mxu0 %v371
      %775 = vmatmul.mubr.bf16.gmra.mrb[0].mxu0 %v370
      %v776 = vpop.f32.mrb[0].mxu0
      %v777 = vadd.f32 0.0, %v776
      %v778 = vpop.f32.mrb[0].mxu0
      %v779 = vpop.f32.mrb[0].mxu0
      %v780 = vadd.f32 0.0, %v779
      %v781 = vpop.f32.mrb[0].mxu0
      %782 = vmatprep.mubr.bf16.mxu0 %v375
      %783 = vmatmul.mubr.bf16.gmra.mrb[0].mxu0 %v374
      %v784 = vpop.f32.mrb[0].mxu0
      %v785 = vadd.f32 0.0, %v784
      %v786 = vpop.f32.mrb[0].mxu0
      %v787 = vpop.f32.mrb[0].mxu0
      %v788 = vadd.f32 0.0, %v787
      %v789 = vpop.f32.mrb[0].mxu0
      %790 = vmatprep.mubr.bf16.mxu0 %v379
      %791 = vmatmul.mubr.bf16.gmra.mrb[0].mxu0 %v378
      %v792 = vpop.f32.mrb[0].mxu0
      %v793 = vadd.f32 0.0, %v792
      %v794 = vpop.f32.mrb[0].mxu0
      %v795 = vpop.f32.mrb[0].mxu0
      %v796 = vadd.f32 0.0, %v795
      %v797 = vpop.f32.mrb[0].mxu0
      %798 = vmatprep.mubr.bf16.mxu0 %v383
      %799 = vmatmul.mubr.bf16.gmra.mrb[0].mxu0 %v382
      %v800 = vpop.f32.mrb[0].mxu0
      %v801 = vadd.f32 0.0, %v800
      %v802 = vpop.f32.mrb[0].mxu0
      %v803 = vpop.f32.mrb[0].mxu0
      %v804 = vadd.f32 0.0, %v803
      %v805 = vpop.f32.mrb[0].mxu0
      %806 = vmatprep.mubr.bf16.mxu0 %v387
      %807 = vmatmul.mubr.bf16.gmra.mrb[0].mxu0 %v386
      %v808 = vpop.f32.mrb[0].mxu0
      %v809 = vadd.f32 0.0, %v808
      %v810 = vpop.f32.mrb[0].mxu0
      %v811 = vpop.f32.mrb[0].mxu0
      %v812 = vadd.f32 0.0, %v811
      %v813 = vpop.f32.mrb[0].mxu0
      %814 = vmatprep.mubr.bf16.mxu0 %v391
      %815 = vmatmul.mubr.bf16.gmra.mrb[0].mxu0 %v390
      %v816 = vpop.f32.mrb[0].mxu0
      %v817 = vadd.f32 0.0, %v816
      %v818 = vpop.f32.mrb[0].mxu0
      %v819 = vpop.f32.mrb[0].mxu0
      %v820 = vadd.f32 0.0, %v819
      %v821 = vpop.f32.mrb[0].mxu0
      %822 = vmatprep.mubr.bf16.mxu0 %v395
      %823 = vmatmul.mubr.bf16.gmra.mrb[0].mxu0 %v394
      %v824 = vpop.f32.mrb[0].mxu0
      %v825 = vadd.f32 0.0, %v824
      %v826 = vpop.f32.mrb[0].mxu0
      %v827 = vpop.f32.mrb[0].mxu0
      %v828 = vadd.f32 0.0, %v827
      %v829 = vpop.f32.mrb[0].mxu0
      %830 = vmatprep.mubr.bf16.mxu0 %v399
      %831 = vmatmul.mubr.bf16.gmra.mrb[0].mxu0 %v398
      %v832 = vpop.f32.mrb[0].mxu0
      %v833 = vadd.f32 0.0, %v832
      %v834 = vpop.f32.mrb[0].mxu0
      %v835 = vpop.f32.mrb[0].mxu0
      %v836 = vadd.f32 0.0, %v835
      %v837 = vpop.f32.mrb[0].mxu0
      %838 = vmatprep.mubr.bf16.mxu0 %v403
      %839 = vmatmul.mubr.bf16.gmra.mrb[0].mxu0 %v402
      %v840 = vpop.f32.mrb[0].mxu0
      %v841 = vadd.f32 0.0, %v840
      %v842 = vpop.f32.mrb[0].mxu0
      %v843 = vpop.f32.mrb[0].mxu0
      %v844 = vadd.f32 0.0, %v843
      %v845 = vpop.f32.mrb[0].mxu0
      %846 = vmatprep.mubr.bf16.mxu0 %v407
      %847 = vmatmul.mubr.bf16.gmra.mrb[0].mxu0 %v406
      %v848 = vpop.f32.mrb[0].mxu0
      %v849 = vadd.f32 0.0, %v848
      %v850 = vpop.f32.mrb[0].mxu0
      %v851 = vpop.f32.mrb[0].mxu0
      %v852 = vadd.f32 0.0, %v851
      %v853 = vpop.f32.mrb[0].mxu0
      %854 = vmatprep.mubr.bf16.mxu0 %v411
      %855 = vmatmul.mubr.bf16.gmra.mrb[0].mxu0 %v410
      %v856 = vpop.f32.mrb[0].mxu0
      %v857 = vadd.f32 0.0, %v856
      %v858 = vpop.f32.mrb[0].mxu0
      %v859 = vpop.f32.mrb[0].mxu0
      %v860 = vadd.f32 0.0, %v859
      %v861 = vpop.f32.mrb[0].mxu0
      %862 = vdwg.mxu0
      %863 = vmatprep.subr.bf16.mxu0 0
      %864 = vmatpush1.bf16.msra.mxu0 %v654
      %865 = vmatprep.subr.bf16.mxu0 0
      %866 = vmatpush1.bf16.msra.mxu0 %v655
      %867 = vmatprep.subr.bf16.mxu0 0
      %868 = vmatpush1.bf16.msra.mxu0 %v656
      %869 = vmatprep.subr.bf16.mxu0 0
      %870 = vmatpush1.bf16.msra.mxu0 %v657
      %871 = vmatprep.subr.bf16.mxu0 0
      %872 = vmatpush1.bf16.msra.mxu0 %v658
      %873 = vmatprep.subr.bf16.mxu0 0
      %874 = vmatpush1.bf16.msra.mxu0 %v659
      %875 = vmatprep.subr.bf16.mxu0 0
      %876 = vmatpush1.bf16.msra.mxu0 %v660
      %877 = vmatprep.subr.bf16.mxu0 0
      %878 = vmatpush1.bf16.msra.mxu0 %v661
      %879 = vmatprep.subr.bf16.mxu0 0
      %880 = vmatpush1.bf16.msra.mxu0 %v662
      %881 = vmatprep.subr.bf16.mxu0 0
      %882 = vmatpush1.bf16.msra.mxu0 %v663
      %883 = vmatprep.subr.bf16.mxu0 0
      %884 = vmatpush1.bf16.msra.mxu0 %v664
      %885 = vmatprep.subr.bf16.mxu0 0
      %886 = vmatpush1.bf16.msra.mxu0 %v665
      %887 = vmatprep.subr.bf16.mxu0 0
      %888 = vmatpush1.bf16.msra.mxu0 %v666
      %889 = vmatprep.subr.bf16.mxu0 0
      %890 = vmatpush1.bf16.msra.mxu0 %v667
      %891 = vmatprep.subr.bf16.mxu0 0
      %892 = vmatpush1.bf16.msra.mxu0 %v668
      %893 = vmatprep.subr.bf16.mxu0 0
      %894 = vmatpush1.bf16.msra.mxu0 %v669
      %895 = vmatprep.mubr.bf16.mxu0 %v353
      %896 = vmatmul.mubr.bf16.gmra.mrb[0].mxu0 %v352
      %v897 = vpop.f32.mrb[0].mxu0
      %v898 = vadd.f32 %v737, %v897
      %v899 = vpop.f32.mrb[0].mxu0
      %v900 = vpop.f32.mrb[0].mxu0
      %v901 = vadd.f32 %v740, %v900
      %v902 = vpop.f32.mrb[0].mxu0
      %903 = vmatprep.mubr.bf16.mxu0 %v357
      %904 = vmatmul.mubr.bf16.gmra.mrb[0].mxu0 %v356
      %v905 = vpop.f32.mrb[0].mxu0
      %v906 = vadd.f32 %v745, %v905
      %v907 = vpop.f32.mrb[0].mxu0
      %v908 = vpop.f32.mrb[0].mxu0
      %v909 = vadd.f32 %v748, %v908
      %v910 = vpop.f32.mrb[0].mxu0
      %911 = vmatprep.mubr.bf16.mxu0 %v361
      %912 = vmatmul.mubr.bf16.gmra.mrb[0].mxu0 %v360
      %v913 = vpop.f32.mrb[0].mxu0
      %v914 = vadd.f32 %v753, %v913
      %v915 = vpop.f32.mrb[0].mxu0
      %v916 = vpop.f32.mrb[0].mxu0
      %v917 = vadd.f32 %v756, %v916
      %v918 = vpop.f32.mrb[0].mxu0
      %919 = vmatprep.mubr.bf16.mxu0 %v365
      %920 = vmatmul.mubr.bf16.gmra.mrb[0].mxu0 %v364
      %v921 = vpop.f32.mrb[0].mxu0
      %v922 = vadd.f32 %v761, %v921
      %v923 = vpop.f32.mrb[0].mxu0
      %v924 = vpop.f32.mrb[0].mxu0
      %v925 = vadd.f32 %v764, %v924
      %v926 = vpop.f32.mrb[0].mxu0
      %927 = vmatprep.mubr.bf16.mxu0 %v369
      %928 = vmatmul.mubr.bf16.gmra.mrb[0].mxu0 %v368
      %v929 = vpop.f32.mrb[0].mxu0
      %v930 = vadd.f32 %v769, %v929
      %v931 = vpop.f32.mrb[0].mxu0
      %v932 = vpop.f32.mrb[0].mxu0
      %v933 = vadd.f32 %v772, %v932
      %v934 = vpop.f32.mrb[0].mxu0
      %935 = vmatprep.mubr.bf16.mxu0 %v373
      %936 = vmatmul.mubr.bf16.gmra.mrb[0].mxu0 %v372
      %v937 = vpop.f32.mrb[0].mxu0
      %v938 = vadd.f32 %v777, %v937
      %v939 = vpop.f32.mrb[0].mxu0
      %v940 = vpop.f32.mrb[0].mxu0
      %v941 = vadd.f32 %v780, %v940
      %v942 = vpop.f32.mrb[0].mxu0
      %943 = vmatprep.mubr.bf16.mxu0 %v377
      %944 = vmatmul.mubr.bf16.gmra.mrb[0].mxu0 %v376
      %v945 = vpop.f32.mrb[0].mxu0
      %v946 = vadd.f32 %v785, %v945
      %v947 = vpop.f32.mrb[0].mxu0
      %v948 = vpop.f32.mrb[0].mxu0
      %v949 = vadd.f32 %v788, %v948
      %v950 = vpop.f32.mrb[0].mxu0
      %951 = vmatprep.mubr.bf16.mxu0 %v381
      %952 = vmatmul.mubr.bf16.gmra.mrb[0].mxu0 %v380
      %v953 = vpop.f32.mrb[0].mxu0
      %v954 = vadd.f32 %v793, %v953
      %v955 = vpop.f32.mrb[0].mxu0
      %v956 = vpop.f32.mrb[0].mxu0
      %v957 = vadd.f32 %v796, %v956
      %v958 = vpop.f32.mrb[0].mxu0
      %959 = vmatprep.mubr.bf16.mxu0 %v385
      %960 = vmatmul.mubr.bf16.gmra.mrb[0].mxu0 %v384
      %v961 = vpop.f32.mrb[0].mxu0
      %v962 = vadd.f32 %v801, %v961
      %v963 = vpop.f32.mrb[0].mxu0
      %v964 = vpop.f32.mrb[0].mxu0
      %v965 = vadd.f32 %v804, %v964
      %v966 = vpop.f32.mrb[0].mxu0
      %967 = vmatprep.mubr.bf16.mxu0 %v389
      %968 = vmatmul.mubr.bf16.gmra.mrb[0].mxu0 %v388
      %v969 = vpop.f32.mrb[0].mxu0
      %v970 = vadd.f32 %v809, %v969
      %v971 = vpop.f32.mrb[0].mxu0
      %v972 = vpop.f32.mrb[0].mxu0
      %v973 = vadd.f32 %v812, %v972
      %v974 = vpop.f32.mrb[0].mxu0
      %975 = vmatprep.mubr.bf16.mxu0 %v393
      %976 = vmatmul.mubr.bf16.gmra.mrb[0].mxu0 %v392
      %v977 = vpop.f32.mrb[0].mxu0
      %v978 = vadd.f32 %v817, %v977
      %v979 = vpop.f32.mrb[0].mxu0
      %v980 = vpop.f32.mrb[0].mxu0
      %v981 = vadd.f32 %v820, %v980
      %v982 = vpop.f32.mrb[0].mxu0
      %983 = vmatprep.mubr.bf16.mxu0 %v397
      %984 = vmatmul.mubr.bf16.gmra.mrb[0].mxu0 %v396
      %v985 = vpop.f32.mrb[0].mxu0
      %v986 = vadd.f32 %v825, %v985
      %v987 = vpop.f32.mrb[0].mxu0
      %v988 = vpop.f32.mrb[0].mxu0
      %v989 = vadd.f32 %v828, %v988
      %v990 = vpop.f32.mrb[0].mxu0
      %991 = vmatprep.mubr.bf16.mxu0 %v401
      %992 = vmatmul.mubr.bf16.gmra.mrb[0].mxu0 %v400
      %v993 = vpop.f32.mrb[0].mxu0
      %v994 = vadd.f32 %v833, %v993
      %v995 = vpop.f32.mrb[0].mxu0
      %v996 = vpop.f32.mrb[0].mxu0
      %v997 = vadd.f32 %v836, %v996
      %v998 = vpop.f32.mrb[0].mxu0
      %999 = vmatprep.mubr.bf16.mxu0 %v405
      %1000 = vmatmul.mubr.bf16.gmra.mrb[0].mxu0 %v404
      %v1001 = vpop.f32.mrb[0].mxu0
      %v1002 = vadd.f32 %v841, %v1001
      %v1003 = vpop.f32.mrb[0].mxu0
      %v1004 = vpop.f32.mrb[0].mxu0
      %v1005 = vadd.f32 %v844, %v1004
      %v1006 = vpop.f32.mrb[0].mxu0
      %1007 = vmatprep.mubr.bf16.mxu0 %v409
      %1008 = vmatmul.mubr.bf16.gmra.mrb[0].mxu0 %v408
      %v1009 = vpop.f32.mrb[0].mxu0
      %v1010 = vadd.f32 %v849, %v1009
      %v1011 = vpop.f32.mrb[0].mxu0
      %v1012 = vpop.f32.mrb[0].mxu0
      %v1013 = vadd.f32 %v852, %v1012
      %v1014 = vpop.f32.mrb[0].mxu0
      %1015 = vmatprep.mubr.bf16.mxu0 %v413
      %1016 = vmatmul.mubr.bf16.gmra.mrb[0].mxu0 %v412
      %v1017 = vpop.f32.mrb[0].mxu0
      %v1018 = vadd.f32 %v857, %v1017
      %v1019 = vpop.f32.mrb[0].mxu0
      %v1020 = vpop.f32.mrb[0].mxu0
      %v1021 = vadd.f32 %v860, %v1020
      %v1022 = vpop.f32.mrb[0].mxu0
      %1023 = vdwg.mxu0
      %v1024 = vadd.f32 %v414, %v898
      %v1025 = vadd.f32 %v415, %v901
      %v1026 = vadd.f32 %v416, %v906
      %v1027 = vadd.f32 %v417, %v909
      %v1028 = vadd.f32 %v418, %v914
      %v1029 = vadd.f32 %v419, %v917
      %v1030 = vadd.f32 %v420, %v922
      %v1031 = vadd.f32 %v421, %v925
      %v1032 = vadd.f32 %v422, %v930
      %v1033 = vadd.f32 %v423, %v933
      %v1034 = vadd.f32 %v424, %v938
      %v1035 = vadd.f32 %v425, %v941
      %v1036 = vadd.f32 %v426, %v946
      %v1037 = vadd.f32 %v427, %v949
      %v1038 = vadd.f32 %v428, %v954
      %v1039 = vadd.f32 %v429, %v957
      %v1040 = vadd.f32 %v430, %v962
      %v1041 = vadd.f32 %v431, %v965
      %v1042 = vadd.f32 %v432, %v970
      %v1043 = vadd.f32 %v433, %v973
      %v1044 = vadd.f32 %v434, %v978
      %v1045 = vadd.f32 %v435, %v981
      %v1046 = vadd.f32 %v436, %v986
      %v1047 = vadd.f32 %v437, %v989
      %v1048 = vadd.f32 %v438, %v994
      %v1049 = vadd.f32 %v439, %v997
      %v1050 = vadd.f32 %v440, %v1002
      %v1051 = vadd.f32 %v441, %v1005
      %v1052 = vadd.f32 %v442, %v1010
      %v1053 = vadd.f32 %v443, %v1013
      %v1054 = vadd.f32 %v444, %v1018
      %v1055 = vadd.f32 %v445, %v1021
      %1056 = vst [vmem:[%s247] sm:$0xff] %v1024
      %1057 = vst [vmem:[%s247 + $0x8] sm:$0xff] %v1025
      %1058 = vst [vmem:[%s247 + $0x10] sm:$0xff] %v1026
      %1059 = vst [vmem:[%s247 + $0x18] sm:$0xff] %v1027
      %1060 = vst [vmem:[%s247 + $0x20] sm:$0xff] %v1028
      %1061 = vst [vmem:[%s247 + $0x28] sm:$0xff] %v1029
      %1062 = vst [vmem:[%s247 + $0x30] sm:$0xff] %v1030
      %1063 = vst [vmem:[%s247 + $0x38] sm:$0xff] %v1031
      %1064 = vst [vmem:[%s247 + $0x40] sm:$0xff] %v1032
      %1065 = vst [vmem:[%s247 + $0x48] sm:$0xff] %v1033
      %1066 = vst [vmem:[%s247 + $0x50] sm:$0xff] %v1034
      %1067 = vst [vmem:[%s247 + $0x58] sm:$0xff] %v1035
      %1068 = vst [vmem:[%s247 + $0x60] sm:$0xff] %v1036
      %1069 = vst [vmem:[%s247 + $0x68] sm:$0xff] %v1037
      %1070 = vst [vmem:[%s247 + $0x70] sm:$0xff] %v1038
      %1071 = vst [vmem:[%s247 + $0x78] sm:$0xff] %v1039
      %1072 = vst [vmem:[%s247 + $0x80] sm:$0xff] %v1040
      %1073 = vst [vmem:[%s247 + $0x88] sm:$0xff] %v1041
      %1074 = vst [vmem:[%s247 + $0x90] sm:$0xff] %v1042
      %1075 = vst [vmem:[%s247 + $0x98] sm:$0xff] %v1043
      %1076 = vst [vmem:[%s247 + $0xa0] sm:$0xff] %v1044
      %1077 = vst [vmem:[%s247 + $0xa8] sm:$0xff] %v1045
      %1078 = vst [vmem:[%s247 + $0xb0] sm:$0xff] %v1046
      %1079 = vst [vmem:[%s247 + $0xb8] sm:$0xff] %v1047
      %1080 = vst [vmem:[%s247 + $0xc0] sm:$0xff] %v1048
      %1081 = vst [vmem:[%s247 + $0xc8] sm:$0xff] %v1049
      %1082 = vst [vmem:[%s247 + $0xd0] sm:$0xff] %v1050
      %1083 = vst [vmem:[%s247 + $0xd8] sm:$0xff] %v1051
      %1084 = vst [vmem:[%s247 + $0xe0] sm:$0xff] %v1052
      %1085 = vst [vmem:[%s247 + $0xe8] sm:$0xff] %v1053
      %1086 = vst [vmem:[%s247 + $0xf0] sm:$0xff] %v1054
      %1087 = vst [vmem:[%s247 + $0xf8] sm:$0xff] %v1055
      %s1088 = smul.u32 32, %s18
      %p1089 = scmp.lt.s32.totalorder %s1088, 95
      %s1090 = scalar_select %p1089, %s1088, 95
      %s1091 = smul.addr %s1090, 8
      %s1092 = scalar_lea.vmem %s3, %s1091
      // Predicated region
      $region37: #{gnn_virtualnode_forward.4} parent=31 // pred_check
        %p1093 = pneg %p124
      $region38: #{gnn_virtualnode_forward.4} parent=31 // pred_check_branch
        %1095 = sbr.rel (%p1093) target = $region40
      $region39: #{gnn_virtualnode_forward.4} parent=31 // pred_region
        %s1096 = smul.u32 32, %s18
      $region40: #{gnn_virtualnode_forward.4} parent=31 // pred_fallthru
        _
    $region32: #{gnn_virtualnode_forward.4} parent=5 // pred_fallthru
      _
    %p1097 = scmp.le.s32.totalorder 2, %s9
    // Predicated region
    $region41: #{gnn_virtualnode_forward.4} parent=5 // pred_check
      %p1098 = pneg %p1097
    $region42: #{gnn_virtualnode_forward.4} parent=5 // pred_check_branch
      %1100 = sbr.rel (%p1098) target = $region44
    $region43: #{gnn_virtualnode_forward.4} parent=5 // pred_region
      %s1101 = ssub.s32 %s9, 2
      // Predicated region
      $region45: #{gnn_virtualnode_forward.4} parent=43 // pred_check
        %p1102 = pneg %p130
      $region46: #{gnn_virtualnode_forward.4} parent=43 // pred_check_branch
        %1104 = sbr.rel (%p1102) target = $region48
      $region47: #{gnn_virtualnode_forward.4} parent=43 // pred_region
        %s1105 = smul.u32 32, %s20
        %p1106 = scmp.lt.s32.totalorder %s1105, 95
        %s1107 = scalar_select %p1106, %s1105, 95
        %s1108 = smul.addr %s1107, 8
        %s1109 = scalar_lea.vmem %s3, %s1108
      $region48: #{gnn_virtualnode_forward.4} parent=43 // pred_fallthru
        _
    $region44: #{gnn_virtualnode_forward.4} parent=5 // pred_fallthru
      _
  $region6: #{gnn_virtualnode_forward.4} parent=0 // loop_footer
    %s13 = sadd.s32 1, %s9
  $region7: #{gnn_virtualnode_forward.4} parent=0 // loop_footer_branch
    %8 = sbr.rel target = $region3
  $region8: #{gnn_virtualnode_forward.4} parent=0 // loop_exit
    _

// kernel: gnn_virtualnode_forward.7
$region0: #{gnn_virtualnode_forward.7}
  #allocation0 [shape = 'u32[]', space=smem, size = 0x4, offset = 0x4, fixed_abs, tag = 'smem constant byte address 0x4 - core index']
  #allocation1 [shape = 'u32[144,128]{1,0:T(1,128)}', space=vmem, size = 0x12000, scoped, tag = 'internal scratch']
  %s0 = inlined_call_operand.vmem [shape: f32[768,128], index: 0, kind: input, shape index: {}]
  %s1 = inlined_call_operand.vmem [shape: bf16[128,128], index: 1, kind: input, shape index: {}]
  %s2 = inlined_call_operand.vmem [shape: f32[1,128], index: 2, kind: input, shape index: {}]
  %s3 = inlined_call_operand.vmem [shape: bf16[128,128], index: 3, kind: input, shape index: {}]
  %s4 = inlined_call_operand.vmem [shape: f32[1,128], index: 4, kind: input, shape index: {}]
  %s5 = inlined_call_operand.vmem [shape: f32[1,128], index: 5, kind: input, shape index: {}]
  %s6 = inlined_call_operand.vmem [shape: f32[1,128], index: 6, kind: input, shape index: {}]
  %s7 = inlined_call_operand.vmem [shape: f32[512,128], index: 7, kind: output, shape index: {}]
  %s8 = sld [smem:[#allocation0]]
  $region38: #{gnn_virtualnode_forward.7} parent=0
    _
  %s10 = ssub.s32 1, %s8
  %s11 = scalar_select 0, %s10, %s8
  // Predicated region
  $region2: #{gnn_virtualnode_forward.7} parent=0 // pred_check
    _
  $region3: #{gnn_virtualnode_forward.7} parent=0 // pred_check_branch
    %13 = sbr.rel (0) target = $region5
  $region4: #{gnn_virtualnode_forward.7} parent=0 // pred_region
    _
  $region5: #{gnn_virtualnode_forward.7} parent=0 // pred_fallthru
    _
  // Predicated region
  $region6: #{gnn_virtualnode_forward.7} parent=0 // pred_check
    _
  $region7: #{gnn_virtualnode_forward.7} parent=0 // pred_check_branch
    %15 = sbr.rel (0) target = $region9
  $region8: #{gnn_virtualnode_forward.7} parent=0 // pred_region
    _
  $region9: #{gnn_virtualnode_forward.7} parent=0 // pred_fallthru
    _
  // Predicated region
  $region10: #{gnn_virtualnode_forward.7} parent=0 // pred_check
    _
  $region11: #{gnn_virtualnode_forward.7} parent=0 // pred_check_branch
    %17 = sbr.rel (0) target = $region13
  $region12: #{gnn_virtualnode_forward.7} parent=0 // pred_region
    _
  $region13: #{gnn_virtualnode_forward.7} parent=0 // pred_fallthru
    _
  // Predicated region
  $region14: #{gnn_virtualnode_forward.7} parent=0 // pred_check
    _
  $region15: #{gnn_virtualnode_forward.7} parent=0 // pred_check_branch
    %19 = sbr.rel (0) target = $region17
  $region16: #{gnn_virtualnode_forward.7} parent=0 // pred_region
    _
  $region17: #{gnn_virtualnode_forward.7} parent=0 // pred_fallthru
    _
  // Predicated region
  $region18: #{gnn_virtualnode_forward.7} parent=0 // pred_check
    _
  $region19: #{gnn_virtualnode_forward.7} parent=0 // pred_check_branch
    %21 = sbr.rel (0) target = $region21
  $region20: #{gnn_virtualnode_forward.7} parent=0 // pred_region
    _
  $region21: #{gnn_virtualnode_forward.7} parent=0 // pred_fallthru
    _
  // Predicated region
  $region22: #{gnn_virtualnode_forward.7} parent=0 // pred_check
    _
  $region23: #{gnn_virtualnode_forward.7} parent=0 // pred_check_branch
    %23 = sbr.rel (0) target = $region25
  $region24: #{gnn_virtualnode_forward.7} parent=0 // pred_region
    _
  $region25: #{gnn_virtualnode_forward.7} parent=0 // pred_fallthru
    _
  // Predicated region
  $region26: #{gnn_virtualnode_forward.7} parent=0 // pred_check
    _
  $region27: #{gnn_virtualnode_forward.7} parent=0 // pred_check_branch
    %25 = sbr.rel (0) target = $region29
  $region28: #{gnn_virtualnode_forward.7} parent=0 // pred_region
    _
  $region29: #{gnn_virtualnode_forward.7} parent=0 // pred_fallthru
    _
  %v27 = vld [vmem:[%s0] sm:$0xff]
  %v28 = vld [vmem:[%s0 + $0x8] sm:$0xff]
  %v29 = vld [vmem:[%s0 + $0x10] sm:$0xff]
  %v30 = vld [vmem:[%s0 + $0x18] sm:$0xff]
  %v31 = vld [vmem:[%s0 + $0x20] sm:$0xff]
  %v32 = vld [vmem:[%s0 + $0x28] sm:$0xff]
  %v33 = vld [vmem:[%s0 + $0x30] sm:$0xff]
  %v34 = vld [vmem:[%s0 + $0x38] sm:$0xff]
  %v35 = vld [vmem:[%s0 + $0x40] sm:$0xff]
  %v36 = vld [vmem:[%s0 + $0x48] sm:$0xff]
  %v37 = vld [vmem:[%s0 + $0x50] sm:$0xff]
  %v38 = vld [vmem:[%s0 + $0x58] sm:$0xff]
  %v39 = vld [vmem:[%s0 + $0x60] sm:$0xff]
  %v40 = vld [vmem:[%s0 + $0x68] sm:$0xff]
  %v41 = vld [vmem:[%s0 + $0x70] sm:$0xff]
  %v42 = vld [vmem:[%s0 + $0x78] sm:$0xff]
  %v43 = vld [vmem:[%s0 + $0x80] sm:$0xff]
  %v44 = vld [vmem:[%s0 + $0x88] sm:$0xff]
  %v45 = vld [vmem:[%s0 + $0x90] sm:$0xff]
  %v46 = vld [vmem:[%s0 + $0x98] sm:$0xff]
  %v47 = vld [vmem:[%s0 + $0xa0] sm:$0xff]
  %v48 = vld [vmem:[%s0 + $0xa8] sm:$0xff]
  %v49 = vld [vmem:[%s0 + $0xb0] sm:$0xff]
  %v50 = vld [vmem:[%s0 + $0xb8] sm:$0xff]
  %v51 = vld [vmem:[%s0 + $0xc0] sm:$0xff]
  %v52 = vld [vmem:[%s0 + $0xc8] sm:$0xff]
  %v53 = vld [vmem:[%s0 + $0xd0] sm:$0xff]
  %v54 = vld [vmem:[%s0 + $0xd8] sm:$0xff]
  %v55 = vld [vmem:[%s0 + $0xe0] sm:$0xff]
  %v56 = vld [vmem:[%s0 + $0xe8] sm:$0xff]
  %v57 = vld [vmem:[%s0 + $0xf0] sm:$0xff]
  %v58 = vld [vmem:[%s0 + $0xf8] sm:$0xff]
  %v59 = vld [vmem:[%s0 + $0x100] sm:$0xff]
  %v60 = vld [vmem:[%s0 + $0x108] sm:$0xff]
  %v61 = vld [vmem:[%s0 + $0x110] sm:$0xff]
  %v62 = vld [vmem:[%s0 + $0x118] sm:$0xff]
  %v63 = vld [vmem:[%s0 + $0x120] sm:$0xff]
  %v64 = vld [vmem:[%s0 + $0x128] sm:$0xff]
  %v65 = vld [vmem:[%s0 + $0x130] sm:$0xff]
  %v66 = vld [vmem:[%s0 + $0x138] sm:$0xff]
  %v67 = vld [vmem:[%s0 + $0x140] sm:$0xff]
  %v68 = vld [vmem:[%s0 + $0x148] sm:$0xff]
  %v69 = vld [vmem:[%s0 + $0x150] sm:$0xff]
  %v70 = vld [vmem:[%s0 + $0x158] sm:$0xff]
  %v71 = vld [vmem:[%s0 + $0x160] sm:$0xff]
  %v72 = vld [vmem:[%s0 + $0x168] sm:$0xff]
  %v73 = vld [vmem:[%s0 + $0x170] sm:$0xff]
  %v74 = vld [vmem:[%s0 + $0x178] sm:$0xff]
  %v75 = vld [vmem:[%s0 + $0x180] sm:$0xff]
  %v76 = vld [vmem:[%s0 + $0x188] sm:$0xff]
  %v77 = vld [vmem:[%s0 + $0x190] sm:$0xff]
  %v78 = vld [vmem:[%s0 + $0x198] sm:$0xff]
  %v79 = vld [vmem:[%s0 + $0x1a0] sm:$0xff]
  %v80 = vld [vmem:[%s0 + $0x1a8] sm:$0xff]
  %v81 = vld [vmem:[%s0 + $0x1b0] sm:$0xff]
  %v82 = vld [vmem:[%s0 + $0x1b8] sm:$0xff]
  %v83 = vld [vmem:[%s0 + $0x1c0] sm:$0xff]
  %v84 = vld [vmem:[%s0 + $0x1c8] sm:$0xff]
  %v85 = vld [vmem:[%s0 + $0x1d0] sm:$0xff]
  %v86 = vld [vmem:[%s0 + $0x1d8] sm:$0xff]
  %v87 = vld [vmem:[%s0 + $0x1e0] sm:$0xff]
  %v88 = vld [vmem:[%s0 + $0x1e8] sm:$0xff]
  %v89 = vld [vmem:[%s0 + $0x1f0] sm:$0xff]
  %v90 = vld [vmem:[%s0 + $0x1f8] sm:$0xff]
  %v91 = vld [vmem:[%s1] sm:$0xf]
  %v92 = vld [vmem:[%s1 + $0x4] sm:$0xf]
  %v93 = vld [vmem:[%s1 + $0x8] sm:$0xf]
  %v94 = vld [vmem:[%s1 + $0xc] sm:$0xf]
  %v95 = vld [vmem:[%s1 + $0x10] sm:$0xf]
  %v96 = vld [vmem:[%s1 + $0x14] sm:$0xf]
  %v97 = vld [vmem:[%s1 + $0x18] sm:$0xf]
  %v98 = vld [vmem:[%s1 + $0x1c] sm:$0xf]
  %v99 = vld [vmem:[%s1 + $0x20] sm:$0xf]
  %v100 = vld [vmem:[%s1 + $0x24] sm:$0xf]
  %v101 = vld [vmem:[%s1 + $0x28] sm:$0xf]
  %v102 = vld [vmem:[%s1 + $0x2c] sm:$0xf]
  %v103 = vld [vmem:[%s1 + $0x30] sm:$0xf]
  %v104 = vld [vmem:[%s1 + $0x34] sm:$0xf]
  %v105 = vld [vmem:[%s1 + $0x38] sm:$0xf]
  %v106 = vld [vmem:[%s1 + $0x3c] sm:$0xf]
  %v107 = vld [vmem:[%s2] sm:$0x1]
  %v108 = vld [vmem:[%s3] sm:$0xf]
  %v109 = vld [vmem:[%s3 + $0x4] sm:$0xf]
  %v110 = vld [vmem:[%s3 + $0x8] sm:$0xf]
  %v111 = vld [vmem:[%s3 + $0xc] sm:$0xf]
  %v112 = vld [vmem:[%s3 + $0x10] sm:$0xf]
  %v113 = vld [vmem:[%s3 + $0x14] sm:$0xf]
  %v114 = vld [vmem:[%s3 + $0x18] sm:$0xf]
  %v115 = vld [vmem:[%s3 + $0x1c] sm:$0xf]
  %v116 = vld [vmem:[%s3 + $0x20] sm:$0xf]
  %v117 = vld [vmem:[%s3 + $0x24] sm:$0xf]
  %v118 = vld [vmem:[%s3 + $0x28] sm:$0xf]
  %v119 = vld [vmem:[%s3 + $0x2c] sm:$0xf]
  %v120 = vld [vmem:[%s3 + $0x30] sm:$0xf]
  %v121 = vld [vmem:[%s3 + $0x34] sm:$0xf]
  %v122 = vld [vmem:[%s3 + $0x38] sm:$0xf]
  %v123 = vld [vmem:[%s3 + $0x3c] sm:$0xf]
  %v124 = vld [vmem:[%s4] sm:$0x1]
  %v125 = vld [vmem:[%s5] sm:$0x1]
  %v126 = vld [vmem:[%s6] sm:$0x1]
  %v127 = vpack.c.bf16 %v28, %v27
  %v128 = vpack.c.bf16 %v30, %v29
  %v129 = vpack.c.bf16 %v32, %v31
  %v130 = vpack.c.bf16 %v34, %v33
  %v131 = vpack.c.bf16 %v36, %v35
  %v132 = vpack.c.bf16 %v38, %v37
  %v133 = vpack.c.bf16 %v40, %v39
  %v134 = vpack.c.bf16 %v42, %v41
  %v135 = vpack.c.bf16 %v44, %v43
  %v136 = vpack.c.bf16 %v46, %v45
  %v137 = vpack.c.bf16 %v48, %v47
  %v138 = vpack.c.bf16 %v50, %v49
  %v139 = vpack.c.bf16 %v52, %v51
  %v140 = vpack.c.bf16 %v54, %v53
  %v141 = vpack.c.bf16 %v56, %v55
  %v142 = vpack.c.bf16 %v58, %v57
  %v143 = vpack.c.bf16 %v60, %v59
  %v144 = vpack.c.bf16 %v62, %v61
  %v145 = vpack.c.bf16 %v64, %v63
  %v146 = vpack.c.bf16 %v66, %v65
  %v147 = vpack.c.bf16 %v68, %v67
  %v148 = vpack.c.bf16 %v70, %v69
  %v149 = vpack.c.bf16 %v72, %v71
  %v150 = vpack.c.bf16 %v74, %v73
  %v151 = vpack.c.bf16 %v76, %v75
  %v152 = vpack.c.bf16 %v78, %v77
  %v153 = vpack.c.bf16 %v80, %v79
  %v154 = vpack.c.bf16 %v82, %v81
  %v155 = vpack.c.bf16 %v84, %v83
  %v156 = vpack.c.bf16 %v86, %v85
  %v157 = vpack.c.bf16 %v88, %v87
  %v158 = vpack.c.bf16 %v90, %v89
  %v160 = vlaneseq
  %v161 = vshrl.u32 %v160, 7
  %v162 = vsub.s32 0, %v161
  %v163 = vrot.slane %v107, %v162
  %v181 = vunpack.c.l.b16 %v91
  %v182 = vunpack.c.l.b16 %v92
  %v183 = vunpack.c.l.b16 %v93
  %v184 = vunpack.c.l.b16 %v94
  %v185 = vunpack.c.l.b16 %v95
  %v186 = vunpack.c.l.b16 %v96
  %v187 = vunpack.c.l.b16 %v97
  %v188 = vunpack.c.l.b16 %v98
  %v189 = vunpack.c.l.b16 %v99
  %v190 = vunpack.c.l.b16 %v100
  %v191 = vunpack.c.l.b16 %v101
  %v192 = vunpack.c.l.b16 %v102
  %v193 = vunpack.c.l.b16 %v103
  %v194 = vunpack.c.l.b16 %v104
  %v195 = vunpack.c.l.b16 %v105
  %v196 = vunpack.c.l.b16 %v106
  %v197 = vpack.c.b16 %v182, %v181
  %v198 = vpack.c.b16 %v184, %v183
  %v199 = vpack.c.b16 %v186, %v185
  %v200 = vpack.c.b16 %v188, %v187
  %v201 = vpack.c.b16 %v190, %v189
  %v202 = vpack.c.b16 %v192, %v191
  %v203 = vpack.c.b16 %v194, %v193
  %v204 = vpack.c.b16 %v196, %v195
  %213 = vmatprep.subr.bf16.mxu0 0
  %214 = vmatpush1.bf16.msra.mxu0 %v197
  %215 = vmatprep.subr.bf16.mxu0 0
  %216 = vmatpush1.bf16.msra.mxu0 %v198
  %217 = vmatprep.subr.bf16.mxu0 0
  %218 = vmatpush1.bf16.msra.mxu0 %v199
  %219 = vmatprep.subr.bf16.mxu0 0
  %220 = vmatpush1.bf16.msra.mxu0 %v200
  %221 = vmatprep.subr.bf16.mxu0 0
  %222 = vmatpush1.bf16.msra.mxu0 %v201
  %223 = vmatprep.subr.bf16.mxu0 0
  %224 = vmatpush1.bf16.msra.mxu0 %v202
  %225 = vmatprep.subr.bf16.mxu0 0
  %226 = vmatpush1.bf16.msra.mxu0 %v203
  %227 = vmatprep.subr.bf16.mxu0 0
  %228 = vmatpush1.bf16.msra.mxu0 %v204
  %229 = vmatprep.subr.bf16.mxu0 0
  %230 = vmatpush1.bf16.msra.mxu0 0
  %231 = vmatprep.subr.bf16.mxu0 0
  %232 = vmatpush1.bf16.msra.mxu0 0
  %233 = vmatprep.subr.bf16.mxu0 0
  %234 = vmatpush1.bf16.msra.mxu0 0
  %235 = vmatprep.subr.bf16.mxu0 0
  %236 = vmatpush1.bf16.msra.mxu0 0
  %237 = vmatprep.subr.bf16.mxu0 0
  %238 = vmatpush1.bf16.msra.mxu0 0
  %239 = vmatprep.subr.bf16.mxu0 0
  %240 = vmatpush1.bf16.msra.mxu0 0
  %241 = vmatprep.subr.bf16.mxu0 0
  %242 = vmatpush1.bf16.msra.mxu0 0
  %243 = vmatprep.subr.bf16.mxu0 0
  %244 = vmatpush1.bf16.msra.mxu0 0
  %245 = vmatprep.mubr.bf16.mxu0 0
  %246 = vmatmul.mubr.bf16.gmra.mrb[0].mxu0 %v127
  %v247 = vpop.f32.mrb[0].mxu0
  %v248 = vadd.f32 %v163, %v247
  %v249 = vpop.f32.mrb[0].mxu0
  %v250 = vpop.f32.mrb[0].mxu0
  %v251 = vadd.f32 %v163, %v250
  %v252 = vpop.f32.mrb[0].mxu0
  %253 = vmatprep.mubr.bf16.mxu0 0
  %254 = vmatmul.mubr.bf16.gmra.mrb[0].mxu0 %v128
  %v255 = vpop.f32.mrb[0].mxu0
  %v256 = vadd.f32 %v163, %v255
  %v257 = vpop.f32.mrb[0].mxu0
  %v258 = vpop.f32.mrb[0].mxu0
  %v259 = vadd.f32 %v163, %v258
  %v260 = vpop.f32.mrb[0].mxu0
  %261 = vmatprep.mubr.bf16.mxu0 0
  %262 = vmatmul.mubr.bf16.gmra.mrb[0].mxu0 %v129
  %v263 = vpop.f32.mrb[0].mxu0
  %v264 = vadd.f32 %v163, %v263
  %v265 = vpop.f32.mrb[0].mxu0
  %v266 = vpop.f32.mrb[0].mxu0
  %v267 = vadd.f32 %v163, %v266
  %v268 = vpop.f32.mrb[0].mxu0
  %269 = vmatprep.mubr.bf16.mxu0 0
  %270 = vmatmul.mubr.bf16.gmra.mrb[0].mxu0 %v130
  %v271 = vpop.f32.mrb[0].mxu0
  %v272 = vadd.f32 %v163, %v271
  %v273 = vpop.f32.mrb[0].mxu0
  %v274 = vpop.f32.mrb[0].mxu0
  %v275 = vadd.f32 %v163, %v274
  %v276 = vpop.f32.mrb[0].mxu0
  %277 = vmatprep.mubr.bf16.mxu0 0
  %278 = vmatmul.mubr.bf16.gmra.mrb[0].mxu0 %v131
  %v279 = vpop.f32.mrb[0].mxu0
  %v280 = vadd.f32 %v163, %v279
  %v281 = vpop.f32.mrb[0].mxu0
  %v282 = vpop.f32.mrb[0].mxu0
  %v283 = vadd.f32 %v163, %v282
  %v284 = vpop.f32.mrb[0].mxu0
  %285 = vmatprep.mubr.bf16.mxu0 0
  %286 = vmatmul.mubr.bf16.gmra.mrb[0].mxu0 %v132
  %v287 = vpop.f32.mrb[0].mxu0
  %v288 = vadd.f32 %v163, %v287
  %v289 = vpop.f32.mrb[0].mxu0
  %v290 = vpop.f32.mrb[0].mxu0
  %v291 = vadd.f32 %v163, %v290
  %v292 = vpop.f32.mrb[0].mxu0
  %293 = vmatprep.mubr.bf16.mxu0 0
  %294 = vmatmul.mubr.bf16.gmra.mrb[0].mxu0 %v133
  %v295 = vpop.f32.mrb[0].mxu0
  %v296 = vadd.f32 %v163, %v295
  %v297 = vpop.f32.mrb[0].mxu0
  %v298 = vpop.f32.mrb[0].mxu0
  %v299 = vadd.f32 %v163, %v298
  %v300 = vpop.f32.mrb[0].mxu0
  %301 = vmatprep.mubr.bf16.mxu0 0
  %302 = vmatmul.mubr.bf16.gmra.mrb[0].mxu0 %v134
  %v303 = vpop.f32.mrb[0].mxu0
  %v304 = vadd.f32 %v163, %v303
  %v305 = vpop.f32.mrb[0].mxu0
  %v306 = vpop.f32.mrb[0].mxu0
  %v307 = vadd.f32 %v163, %v306
  %v308 = vpop.f32.mrb[0].mxu0
  %309 = vmatprep.mubr.bf16.mxu0 0
  %310 = vmatmul.mubr.bf16.gmra.mrb[0].mxu0 %v135
  %v311 = vpop.f32.mrb[0].mxu0
  %v312 = vadd.f32 %v163, %v311
  %v313 = vpop.f32.mrb[0].mxu0
  %v314 = vpop.f32.mrb[0].mxu0
  %v315 = vadd.f32 %v163, %v314
  %v316 = vpop.f32.mrb[0].mxu0
  %317 = vmatprep.mubr.bf16.mxu0 0
  %318 = vmatmul.mubr.bf16.gmra.mrb[0].mxu0 %v136
  %v319 = vpop.f32.mrb[0].mxu0
  %v320 = vadd.f32 %v163, %v319
  %v321 = vpop.f32.mrb[0].mxu0
  %v322 = vpop.f32.mrb[0].mxu0
  %v323 = vadd.f32 %v163, %v322
  %v324 = vpop.f32.mrb[0].mxu0
  %325 = vmatprep.mubr.bf16.mxu0 0
  %326 = vmatmul.mubr.bf16.gmra.mrb[0].mxu0 %v137
  %v327 = vpop.f32.mrb[0].mxu0
  %v328 = vadd.f32 %v163, %v327
  %v329 = vpop.f32.mrb[0].mxu0
  %v330 = vpop.f32.mrb[0].mxu0
  %v331 = vadd.f32 %v163, %v330
  %v332 = vpop.f32.mrb[0].mxu0
  %333 = vmatprep.mubr.bf16.mxu0 0
  %334 = vmatmul.mubr.bf16.gmra.mrb[0].mxu0 %v138
  %v335 = vpop.f32.mrb[0].mxu0
  %v336 = vadd.f32 %v163, %v335
  %v337 = vpop.f32.mrb[0].mxu0
  %v338 = vpop.f32.mrb[0].mxu0
  %v339 = vadd.f32 %v163, %v338
  %v340 = vpop.f32.mrb[0].mxu0
  %341 = vmatprep.mubr.bf16.mxu0 0
  %342 = vmatmul.mubr.bf16.gmra.mrb[0].mxu0 %v139
  %v343 = vpop.f32.mrb[0].mxu0
  %v344 = vadd.f32 %v163, %v343
  %v345 = vpop.f32.mrb[0].mxu0
  %v346 = vpop.f32.mrb[0].mxu0
  %v347 = vadd.f32 %v163, %v346
  %v348 = vpop.f32.mrb[0].mxu0
  %349 = vmatprep.mubr.bf16.mxu0 0
  %350 = vmatmul.mubr.bf16.gmra.mrb[0].mxu0 %v140
  %v351 = vpop.f32.mrb[0].mxu0
  %v352 = vadd.f32 %v163, %v351
  %v353 = vpop.f32.mrb[0].mxu0
  %v354 = vpop.f32.mrb[0].mxu0
  %v355 = vadd.f32 %v163, %v354
  %v356 = vpop.f32.mrb[0].mxu0
  %357 = vmatprep.mubr.bf16.mxu0 0
  %358 = vmatmul.mubr.bf16.gmra.mrb[0].mxu0 %v141
  %v359 = vpop.f32.mrb[0].mxu0
  %v360 = vadd.f32 %v163, %v359
  %v361 = vpop.f32.mrb[0].mxu0
  %v362 = vpop.f32.mrb[0].mxu0
  %v363 = vadd.f32 %v163, %v362
  %v364 = vpop.f32.mrb[0].mxu0
  %365 = vmatprep.mubr.bf16.mxu0 0
  %366 = vmatmul.mubr.bf16.gmra.mrb[0].mxu0 %v142
  %v367 = vpop.f32.mrb[0].mxu0
  %v368 = vadd.f32 %v163, %v367
  %v369 = vpop.f32.mrb[0].mxu0
  %v370 = vpop.f32.mrb[0].mxu0
  %v371 = vadd.f32 %v163, %v370
  %v372 = vpop.f32.mrb[0].mxu0
  %373 = vmatprep.mubr.bf16.mxu0 0
  %374 = vmatmul.mubr.bf16.gmra.mrb[0].mxu0 %v143
  %v375 = vpop.f32.mrb[0].mxu0
  %v376 = vadd.f32 %v163, %v375
  %v377 = vpop.f32.mrb[0].mxu0
  %v378 = vpop.f32.mrb[0].mxu0
  %v379 = vadd.f32 %v163, %v378
  %v380 = vpop.f32.mrb[0].mxu0
  %381 = vmatprep.mubr.bf16.mxu0 0
  %382 = vmatmul.mubr.bf16.gmra.mrb[0].mxu0 %v144
  %v383 = vpop.f32.mrb[0].mxu0
  %v384 = vadd.f32 %v163, %v383
  %v385 = vpop.f32.mrb[0].mxu0
  %v386 = vpop.f32.mrb[0].mxu0
  %v387 = vadd.f32 %v163, %v386
  %v388 = vpop.f32.mrb[0].mxu0
  %389 = vmatprep.mubr.bf16.mxu0 0
  %390 = vmatmul.mubr.bf16.gmra.mrb[0].mxu0 %v145
  %v391 = vpop.f32.mrb[0].mxu0
  %v392 = vadd.f32 %v163, %v391
  %v393 = vpop.f32.mrb[0].mxu0
  %v394 = vpop.f32.mrb[0].mxu0
  %v395 = vadd.f32 %v163, %v394
  %v396 = vpop.f32.mrb[0].mxu0
  %397 = vmatprep.mubr.bf16.mxu0 0
  %398 = vmatmul.mubr.bf16.gmra.mrb[0].mxu0 %v146
  %v399 = vpop.f32.mrb[0].mxu0
  %v400 = vadd.f32 %v163, %v399
  %v401 = vpop.f32.mrb[0].mxu0
  %v402 = vpop.f32.mrb[0].mxu0
  %v403 = vadd.f32 %v163, %v402
  %v404 = vpop.f32.mrb[0].mxu0
  %405 = vmatprep.mubr.bf16.mxu0 0
  %406 = vmatmul.mubr.bf16.gmra.mrb[0].mxu0 %v147
  %v407 = vpop.f32.mrb[0].mxu0
  %v408 = vadd.f32 %v163, %v407
  %v409 = vpop.f32.mrb[0].mxu0
  %v410 = vpop.f32.mrb[0].mxu0
  %v411 = vadd.f32 %v163, %v410
  %v412 = vpop.f32.mrb[0].mxu0
  %413 = vmatprep.mubr.bf16.mxu0 0
  %414 = vmatmul.mubr.bf16.gmra.mrb[0].mxu0 %v148
  %v415 = vpop.f32.mrb[0].mxu0
  %v416 = vadd.f32 %v163, %v415
  %v417 = vpop.f32.mrb[0].mxu0
  %v418 = vpop.f32.mrb[0].mxu0
  %v419 = vadd.f32 %v163, %v418
  %v420 = vpop.f32.mrb[0].mxu0
  %421 = vmatprep.mubr.bf16.mxu0 0
  %422 = vmatmul.mubr.bf16.gmra.mrb[0].mxu0 %v149
  %v423 = vpop.f32.mrb[0].mxu0
  %v424 = vadd.f32 %v163, %v423
  %v425 = vpop.f32.mrb[0].mxu0
  %v426 = vpop.f32.mrb[0].mxu0
  %v427 = vadd.f32 %v163, %v426
  %v428 = vpop.f32.mrb[0].mxu0
  %429 = vmatprep.mubr.bf16.mxu0 0
  %430 = vmatmul.mubr.bf16.gmra.mrb[0].mxu0 %v150
  %v431 = vpop.f32.mrb[0].mxu0
  %v432 = vadd.f32 %v163, %v431
  %v433 = vpop.f32.mrb[0].mxu0
  %v434 = vpop.f32.mrb[0].mxu0
  %v435 = vadd.f32 %v163, %v434
  %v436 = vpop.f32.mrb[0].mxu0
  %437 = vmatprep.mubr.bf16.mxu0 0
  %438 = vmatmul.mubr.bf16.gmra.mrb[0].mxu0 %v151
  %v439 = vpop.f32.mrb[0].mxu0
  %v440 = vadd.f32 %v163, %v439
  %v441 = vpop.f32.mrb[0].mxu0
  %v442 = vpop.f32.mrb[0].mxu0
  %v443 = vadd.f32 %v163, %v442
  %v444 = vpop.f32.mrb[0].mxu0
  %445 = vmatprep.mubr.bf16.mxu0 0
  %446 = vmatmul.mubr.bf16.gmra.mrb[0].mxu0 %v152
  %v447 = vpop.f32.mrb[0].mxu0
  %v448 = vadd.f32 %v163, %v447
  %v449 = vpop.f32.mrb[0].mxu0
  %v450 = vpop.f32.mrb[0].mxu0
  %v451 = vadd.f32 %v163, %v450
  %v452 = vpop.f32.mrb[0].mxu0
  %453 = vmatprep.mubr.bf16.mxu0 0
  %454 = vmatmul.mubr.bf16.gmra.mrb[0].mxu0 %v153
  %v455 = vpop.f32.mrb[0].mxu0
  %v456 = vadd.f32 %v163, %v455
  %v457 = vpop.f32.mrb[0].mxu0
  %v458 = vpop.f32.mrb[0].mxu0
  %v459 = vadd.f32 %v163, %v458
  %v460 = vpop.f32.mrb[0].mxu0
  %461 = vmatprep.mubr.bf16.mxu0 0
  %462 = vmatmul.mubr.bf16.gmra.mrb[0].mxu0 %v154
  %v463 = vpop.f32.mrb[0].mxu0
  %v464 = vadd.f32 %v163, %v463
  %v465 = vpop.f32.mrb[0].mxu0
  %v466 = vpop.f32.mrb[0].mxu0
  %v467 = vadd.f32 %v163, %v466
  %v468 = vpop.f32.mrb[0].mxu0
  %469 = vmatprep.mubr.bf16.mxu0 0
  %470 = vmatmul.mubr.bf16.gmra.mrb[0].mxu0 %v155
  %v471 = vpop.f32.mrb[0].mxu0
  %v472 = vadd.f32 %v163, %v471
  %v473 = vpop.f32.mrb[0].mxu0
  %v474 = vpop.f32.mrb[0].mxu0
  %v475 = vadd.f32 %v163, %v474
  %v476 = vpop.f32.mrb[0].mxu0
  %477 = vmatprep.mubr.bf16.mxu0 0
  %478 = vmatmul.mubr.bf16.gmra.mrb[0].mxu0 %v156
  %v479 = vpop.f32.mrb[0].mxu0
  %v480 = vadd.f32 %v163, %v479
  %v481 = vpop.f32.mrb[0].mxu0
  %v482 = vpop.f32.mrb[0].mxu0
  %v483 = vadd.f32 %v163, %v482
  %v484 = vpop.f32.mrb[0].mxu0
  %485 = vmatprep.mubr.bf16.mxu0 0
  %486 = vmatmul.mubr.bf16.gmra.mrb[0].mxu0 %v157
  %v487 = vpop.f32.mrb[0].mxu0
  %v488 = vadd.f32 %v163, %v487
  %v489 = vpop.f32.mrb[0].mxu0
  %v490 = vpop.f32.mrb[0].mxu0
  %v491 = vadd.f32 %v163, %v490
  %v492 = vpop.f32.mrb[0].mxu0
  %493 = vmatprep.mubr.bf16.mxu0 0
  %494 = vmatmul.mubr.bf16.gmra.mrb[0].mxu0 %v158
  %v495 = vpop.f32.mrb[0].mxu0
  %v496 = vadd.f32 %v163, %v495
  %v497 = vpop.f32.mrb[0].mxu0
  %v498 = vpop.f32.mrb[0].mxu0
  %v499 = vadd.f32 %v163, %v498
  %v500 = vpop.f32.mrb[0].mxu0
  %501 = vdwg.mxu0
  %v502 = vmax.f32 %v248, 0.0
  %v503 = vmax.f32 %v251, 0.0
  %v504 = vmax.f32 %v256, 0.0
  %v505 = vmax.f32 %v259, 0.0
  %v506 = vmax.f32 %v264, 0.0
  %v507 = vmax.f32 %v267, 0.0
  %v508 = vmax.f32 %v272, 0.0
  %v509 = vmax.f32 %v275, 0.0
  %v510 = vmax.f32 %v280, 0.0
  %v511 = vmax.f32 %v283, 0.0
  %v512 = vmax.f32 %v288, 0.0
  %v513 = vmax.f32 %v291, 0.0
  %v514 = vmax.f32 %v296, 0.0
  %v515 = vmax.f32 %v299, 0.0
  %v516 = vmax.f32 %v304, 0.0
  %v517 = vmax.f32 %v307, 0.0
  %v518 = vmax.f32 %v312, 0.0
  %v519 = vmax.f32 %v315, 0.0
  %v520 = vmax.f32 %v320, 0.0
  %v521 = vmax.f32 %v323, 0.0
  %v522 = vmax.f32 %v328, 0.0
  %v523 = vmax.f32 %v331, 0.0
  %v524 = vmax.f32 %v336, 0.0
  %v525 = vmax.f32 %v339, 0.0
  %v526 = vmax.f32 %v344, 0.0
  %v527 = vmax.f32 %v347, 0.0
  %v528 = vmax.f32 %v352, 0.0
  %v529 = vmax.f32 %v355, 0.0
  %v530 = vmax.f32 %v360, 0.0
  %v531 = vmax.f32 %v363, 0.0
  %v532 = vmax.f32 %v368, 0.0
  %v533 = vmax.f32 %v371, 0.0
  %v534 = vmax.f32 %v376, 0.0
  %v535 = vmax.f32 %v379, 0.0
  %v536 = vmax.f32 %v384, 0.0
  %v537 = vmax.f32 %v387, 0.0
  %v538 = vmax.f32 %v392, 0.0
  %v539 = vmax.f32 %v395, 0.0
  %v540 = vmax.f32 %v400, 0.0
  %v541 = vmax.f32 %v403, 0.0
  %v542 = vmax.f32 %v408, 0.0
  %v543 = vmax.f32 %v411, 0.0
  %v544 = vmax.f32 %v416, 0.0
  %v545 = vmax.f32 %v419, 0.0
  %v546 = vmax.f32 %v424, 0.0
  %v547 = vmax.f32 %v427, 0.0
  %v548 = vmax.f32 %v432, 0.0
  %v549 = vmax.f32 %v435, 0.0
  %v550 = vmax.f32 %v440, 0.0
  %v551 = vmax.f32 %v443, 0.0
  %v552 = vmax.f32 %v448, 0.0
  %v553 = vmax.f32 %v451, 0.0
  %v554 = vmax.f32 %v456, 0.0
  %v555 = vmax.f32 %v459, 0.0
  %v556 = vmax.f32 %v464, 0.0
  %v557 = vmax.f32 %v467, 0.0
  %v558 = vmax.f32 %v472, 0.0
  %v559 = vmax.f32 %v475, 0.0
  %v560 = vmax.f32 %v480, 0.0
  %v561 = vmax.f32 %v483, 0.0
  %v562 = vmax.f32 %v488, 0.0
  %v563 = vmax.f32 %v491, 0.0
  %v564 = vmax.f32 %v496, 0.0
  %v565 = vmax.f32 %v499, 0.0
  %v566 = vpack.c.bf16 %v503, %v502
  %v567 = vpack.c.bf16 %v505, %v504
  %v568 = vpack.c.bf16 %v507, %v506
  %v569 = vpack.c.bf16 %v509, %v508
  %v570 = vpack.c.bf16 %v511, %v510
  %v571 = vpack.c.bf16 %v513, %v512
  %v572 = vpack.c.bf16 %v515, %v514
  %v573 = vpack.c.bf16 %v517, %v516
  %v574 = vpack.c.bf16 %v519, %v518
  %v575 = vpack.c.bf16 %v521, %v520
  %v576 = vpack.c.bf16 %v523, %v522
  %v577 = vpack.c.bf16 %v525, %v524
  %v578 = vpack.c.bf16 %v527, %v526
  %v579 = vpack.c.bf16 %v529, %v528
  %v580 = vpack.c.bf16 %v531, %v530
  %v581 = vpack.c.bf16 %v533, %v532
  %v582 = vpack.c.bf16 %v535, %v534
  %v583 = vpack.c.bf16 %v537, %v536
  %v584 = vpack.c.bf16 %v539, %v538
  %v585 = vpack.c.bf16 %v541, %v540
  %v586 = vpack.c.bf16 %v543, %v542
  %v587 = vpack.c.bf16 %v545, %v544
  %v588 = vpack.c.bf16 %v547, %v546
  %v589 = vpack.c.bf16 %v549, %v548
  %v590 = vpack.c.bf16 %v551, %v550
  %v591 = vpack.c.bf16 %v553, %v552
  %v592 = vpack.c.bf16 %v555, %v554
  %v593 = vpack.c.bf16 %v557, %v556
  %v594 = vpack.c.bf16 %v559, %v558
  %v595 = vpack.c.bf16 %v561, %v560
  %v596 = vpack.c.bf16 %v563, %v562
  %v597 = vpack.c.bf16 %v565, %v564
  %v599 = vlaneseq
  %v600 = vshrl.u32 %v599, 7
  %v601 = vsub.s32 0, %v600
  %v602 = vrot.slane %v124, %v601
  %v620 = vunpack.c.l.b16 %v108
  %v621 = vunpack.c.l.b16 %v109
  %v622 = vunpack.c.l.b16 %v110
  %v623 = vunpack.c.l.b16 %v111
  %v624 = vunpack.c.l.b16 %v112
  %v625 = vunpack.c.l.b16 %v113
  %v626 = vunpack.c.l.b16 %v114
  %v627 = vunpack.c.l.b16 %v115
  %v628 = vunpack.c.l.b16 %v116
  %v629 = vunpack.c.l.b16 %v117
  %v630 = vunpack.c.l.b16 %v118
  %v631 = vunpack.c.l.b16 %v119
  %v632 = vunpack.c.l.b16 %v120
  %v633 = vunpack.c.l.b16 %v121
  %v634 = vunpack.c.l.b16 %v122
  %v635 = vunpack.c.l.b16 %v123
  %v636 = vpack.c.b16 %v621, %v620
  %v637 = vpack.c.b16 %v623, %v622
  %v638 = vpack.c.b16 %v625, %v624
  %v639 = vpack.c.b16 %v627, %v626
  %v640 = vpack.c.b16 %v629, %v628
  %v641 = vpack.c.b16 %v631, %v630
  %v642 = vpack.c.b16 %v633, %v632
  %v643 = vpack.c.b16 %v635, %v634
  %652 = vmatprep.subr.bf16.mxu0 0
  %653 = vmatpush1.bf16.msra.mxu0 %v636
  %654 = vmatprep.subr.bf16.mxu0 0
  %655 = vmatpush1.bf16.msra.mxu0 %v637
  %656 = vmatprep.subr.bf16.mxu0 0
  %657 = vmatpush1.bf16.msra.mxu0 %v638
  %658 = vmatprep.subr.bf16.mxu0 0
  %659 = vmatpush1.bf16.msra.mxu0 %v639
  %660 = vmatprep.subr.bf16.mxu0 0
  %661 = vmatpush1.bf16.msra.mxu0 %v640
  %662 = vmatprep.subr.bf16.mxu0 0
  %663 = vmatpush1.bf16.msra.mxu0 %v641
  %664 = vmatprep.subr.bf16.mxu0 0
  %665 = vmatpush1.bf16.msra.mxu0 %v642
  %666 = vmatprep.subr.bf16.mxu0 0
  %667 = vmatpush1.bf16.msra.mxu0 %v643
  %668 = vmatprep.subr.bf16.mxu0 0
  %669 = vmatpush1.bf16.msra.mxu0 0
  %670 = vmatprep.subr.bf16.mxu0 0
  %671 = vmatpush1.bf16.msra.mxu0 0
  %672 = vmatprep.subr.bf16.mxu0 0
  %673 = vmatpush1.bf16.msra.mxu0 0
  %674 = vmatprep.subr.bf16.mxu0 0
  %675 = vmatpush1.bf16.msra.mxu0 0
  %676 = vmatprep.subr.bf16.mxu0 0
  %677 = vmatpush1.bf16.msra.mxu0 0
  %678 = vmatprep.subr.bf16.mxu0 0
  %679 = vmatpush1.bf16.msra.mxu0 0
  %680 = vmatprep.subr.bf16.mxu0 0
  %681 = vmatpush1.bf16.msra.mxu0 0
  %682 = vmatprep.subr.bf16.mxu0 0
  %683 = vmatpush1.bf16.msra.mxu0 0
  %684 = vmatprep.mubr.bf16.mxu0 0
  %685 = vmatmul.mubr.bf16.gmra.mrb[0].mxu0 %v566
  %v686 = vpop.f32.mrb[0].mxu0
  %v687 = vadd.f32 %v602, %v686
  %v688 = vpop.f32.mrb[0].mxu0
  %v689 = vpop.f32.mrb[0].mxu0
  %v690 = vadd.f32 %v602, %v689
  %v691 = vpop.f32.mrb[0].mxu0
  %692 = vmatprep.mubr.bf16.mxu0 0
  %693 = vmatmul.mubr.bf16.gmra.mrb[0].mxu0 %v567
  %v694 = vpop.f32.mrb[0].mxu0
  %v695 = vadd.f32 %v602, %v694
  %v696 = vpop.f32.mrb[0].mxu0
  %v697 = vpop.f32.mrb[0].mxu0
  %v698 = vadd.f32 %v602, %v697
  %v699 = vpop.f32.mrb[0].mxu0
  %700 = vmatprep.mubr.bf16.mxu0 0
  %701 = vmatmul.mubr.bf16.gmra.mrb[0].mxu0 %v568
  %v702 = vpop.f32.mrb[0].mxu0
  %v703 = vadd.f32 %v602, %v702
  %v704 = vpop.f32.mrb[0].mxu0
  %v705 = vpop.f32.mrb[0].mxu0
  %v706 = vadd.f32 %v602, %v705
  %v707 = vpop.f32.mrb[0].mxu0
  %708 = vmatprep.mubr.bf16.mxu0 0
  %709 = vmatmul.mubr.bf16.gmra.mrb[0].mxu0 %v569
  %v710 = vpop.f32.mrb[0].mxu0
  %v711 = vadd.f32 %v602, %v710
  %v712 = vpop.f32.mrb[0].mxu0
  %v713 = vpop.f32.mrb[0].mxu0
  %v714 = vadd.f32 %v602, %v713
  %v715 = vpop.f32.mrb[0].mxu0
  %716 = vmatprep.mubr.bf16.mxu0 0
  %717 = vmatmul.mubr.bf16.gmra.mrb[0].mxu0 %v570
  %v718 = vpop.f32.mrb[0].mxu0
  %v719 = vadd.f32 %v602, %v718
  %v720 = vpop.f32.mrb[0].mxu0
  %v721 = vpop.f32.mrb[0].mxu0
  %v722 = vadd.f32 %v602, %v721
  %v723 = vpop.f32.mrb[0].mxu0
  %724 = vmatprep.mubr.bf16.mxu0 0
  %725 = vmatmul.mubr.bf16.gmra.mrb[0].mxu0 %v571
  %v726 = vpop.f32.mrb[0].mxu0
  %v727 = vadd.f32 %v602, %v726
  %v728 = vpop.f32.mrb[0].mxu0
  %v729 = vpop.f32.mrb[0].mxu0
  %v730 = vadd.f32 %v602, %v729
  %v731 = vpop.f32.mrb[0].mxu0
  %732 = vmatprep.mubr.bf16.mxu0 0
  %733 = vmatmul.mubr.bf16.gmra.mrb[0].mxu0 %v572
  %v734 = vpop.f32.mrb[0].mxu0
  %v735 = vadd.f32 %v602, %v734
  %v736 = vpop.f32.mrb[0].mxu0
  %v737 = vpop.f32.mrb[0].mxu0
  %v738 = vadd.f32 %v602, %v737
  %v739 = vpop.f32.mrb[0].mxu0
  %740 = vmatprep.mubr.bf16.mxu0 0
  %741 = vmatmul.mubr.bf16.gmra.mrb[0].mxu0 %v573
  %v742 = vpop.f32.mrb[0].mxu0
  %v743 = vadd.f32 %v602, %v742
  %v744 = vpop.f32.mrb[0].mxu0
  %v745 = vpop.f32.mrb[0].mxu0
  %v746 = vadd.f32 %v602, %v745
  %v747 = vpop.f32.mrb[0].mxu0
  %748 = vmatprep.mubr.bf16.mxu0 0
  %749 = vmatmul.mubr.bf16.gmra.mrb[0].mxu0 %v574
  %v750 = vpop.f32.mrb[0].mxu0
  %v751 = vadd.f32 %v602, %v750
  %v752 = vpop.f32.mrb[0].mxu0
  %v753 = vpop.f32.mrb[0].mxu0
  %v754 = vadd.f32 %v602, %v753
  %v755 = vpop.f32.mrb[0].mxu0
  %756 = vmatprep.mubr.bf16.mxu0 0
  %757 = vmatmul.mubr.bf16.gmra.mrb[0].mxu0 %v575
  %v758 = vpop.f32.mrb[0].mxu0
  %v759 = vadd.f32 %v602, %v758
  %v760 = vpop.f32.mrb[0].mxu0
  %v761 = vpop.f32.mrb[0].mxu0
  %v762 = vadd.f32 %v602, %v761
  %v763 = vpop.f32.mrb[0].mxu0
  %764 = vmatprep.mubr.bf16.mxu0 0
  %765 = vmatmul.mubr.bf16.gmra.mrb[0].mxu0 %v576
  %v766 = vpop.f32.mrb[0].mxu0
  %v767 = vadd.f32 %v602, %v766
  %v768 = vpop.f32.mrb[0].mxu0
  %v769 = vpop.f32.mrb[0].mxu0
  %v770 = vadd.f32 %v602, %v769
  %v771 = vpop.f32.mrb[0].mxu0
  %772 = vmatprep.mubr.bf16.mxu0 0
  %773 = vmatmul.mubr.bf16.gmra.mrb[0].mxu0 %v577
  %v774 = vpop.f32.mrb[0].mxu0
  %v775 = vadd.f32 %v602, %v774
  %v776 = vpop.f32.mrb[0].mxu0
  %v777 = vpop.f32.mrb[0].mxu0
  %v778 = vadd.f32 %v602, %v777
  %v779 = vpop.f32.mrb[0].mxu0
  %780 = vmatprep.mubr.bf16.mxu0 0
  %781 = vmatmul.mubr.bf16.gmra.mrb[0].mxu0 %v578
  %v782 = vpop.f32.mrb[0].mxu0
  %v783 = vadd.f32 %v602, %v782
  %v784 = vpop.f32.mrb[0].mxu0
  %v785 = vpop.f32.mrb[0].mxu0
  %v786 = vadd.f32 %v602, %v785
  %v787 = vpop.f32.mrb[0].mxu0
  %788 = vmatprep.mubr.bf16.mxu0 0
  %789 = vmatmul.mubr.bf16.gmra.mrb[0].mxu0 %v579
  %v790 = vpop.f32.mrb[0].mxu0
  %v791 = vadd.f32 %v602, %v790
  %v792 = vpop.f32.mrb[0].mxu0
  %v793 = vpop.f32.mrb[0].mxu0
  %v794 = vadd.f32 %v602, %v793
  %v795 = vpop.f32.mrb[0].mxu0
  %796 = vmatprep.mubr.bf16.mxu0 0
  %797 = vmatmul.mubr.bf16.gmra.mrb[0].mxu0 %v580
  %v798 = vpop.f32.mrb[0].mxu0
  %v799 = vadd.f32 %v602, %v798
  %v800 = vpop.f32.mrb[0].mxu0
  %v801 = vpop.f32.mrb[0].mxu0
  %v802 = vadd.f32 %v602, %v801
  %v803 = vpop.f32.mrb[0].mxu0
  %804 = vmatprep.mubr.bf16.mxu0 0
  %805 = vmatmul.mubr.bf16.gmra.mrb[0].mxu0 %v581
  %v806 = vpop.f32.mrb[0].mxu0
  %v807 = vadd.f32 %v602, %v806
  %v808 = vpop.f32.mrb[0].mxu0
  %v809 = vpop.f32.mrb[0].mxu0
  %v810 = vadd.f32 %v602, %v809
  %v811 = vpop.f32.mrb[0].mxu0
  %812 = vmatprep.mubr.bf16.mxu0 0
  %813 = vmatmul.mubr.bf16.gmra.mrb[0].mxu0 %v582
  %v814 = vpop.f32.mrb[0].mxu0
  %v815 = vadd.f32 %v602, %v814
  %v816 = vpop.f32.mrb[0].mxu0
  %v817 = vpop.f32.mrb[0].mxu0
  %v818 = vadd.f32 %v602, %v817
  %v819 = vpop.f32.mrb[0].mxu0
  %820 = vmatprep.mubr.bf16.mxu0 0
  %821 = vmatmul.mubr.bf16.gmra.mrb[0].mxu0 %v583
  %v822 = vpop.f32.mrb[0].mxu0
  %v823 = vadd.f32 %v602, %v822
  %v824 = vpop.f32.mrb[0].mxu0
  %v825 = vpop.f32.mrb[0].mxu0
  %v826 = vadd.f32 %v602, %v825
  %v827 = vpop.f32.mrb[0].mxu0
  %828 = vmatprep.mubr.bf16.mxu0 0
  %829 = vmatmul.mubr.bf16.gmra.mrb[0].mxu0 %v584
  %v830 = vpop.f32.mrb[0].mxu0
  %v831 = vadd.f32 %v602, %v830
  %v832 = vpop.f32.mrb[0].mxu0
  %v833 = vpop.f32.mrb[0].mxu0
  %v834 = vadd.f32 %v602, %v833
  %v835 = vpop.f32.mrb[0].mxu0
  %836 = vmatprep.mubr.bf16.mxu0 0
  %837 = vmatmul.mubr.bf16.gmra.mrb[0].mxu0 %v585
  %v838 = vpop.f32.mrb[0].mxu0
  %v839 = vadd.f32 %v602, %v838
  %v840 = vpop.f32.mrb[0].mxu0
  %v841 = vpop.f32.mrb[0].mxu0
  %v842 = vadd.f32 %v602, %v841
  %v843 = vpop.f32.mrb[0].mxu0
  %844 = vmatprep.mubr.bf16.mxu0 0
  %845 = vmatmul.mubr.bf16.gmra.mrb[0].mxu0 %v586
  %v846 = vpop.f32.mrb[0].mxu0
  %v847 = vadd.f32 %v602, %v846
  %v848 = vpop.f32.mrb[0].mxu0
  %v849 = vpop.f32.mrb[0].mxu0
  %v850 = vadd.f32 %v602, %v849
  %v851 = vpop.f32.mrb[0].mxu0
  %852 = vmatprep.mubr.bf16.mxu0 0
  %853 = vmatmul.mubr.bf16.gmra.mrb[0].mxu0 %v587
  %v854 = vpop.f32.mrb[0].mxu0
  %v855 = vadd.f32 %v602, %v854
  %v856 = vpop.f32.mrb[0].mxu0
  %v857 = vpop.f32.mrb[0].mxu0
  %v858 = vadd.f32 %v602, %v857
  %v859 = vpop.f32.mrb[0].mxu0
  %860 = vmatprep.mubr.bf16.mxu0 0
  %861 = vmatmul.mubr.bf16.gmra.mrb[0].mxu0 %v588
  %v862 = vpop.f32.mrb[0].mxu0
  %v863 = vadd.f32 %v602, %v862
  %v864 = vpop.f32.mrb[0].mxu0
  %v865 = vpop.f32.mrb[0].mxu0
  %v866 = vadd.f32 %v602, %v865
  %v867 = vpop.f32.mrb[0].mxu0
  %868 = vmatprep.mubr.bf16.mxu0 0
  %869 = vmatmul.mubr.bf16.gmra.mrb[0].mxu0 %v589
  %v870 = vpop.f32.mrb[0].mxu0
  %v871 = vadd.f32 %v602, %v870
  %v872 = vpop.f32.mrb[0].mxu0
  %v873 = vpop.f32.mrb[0].mxu0
  %v874 = vadd.f32 %v602, %v873
  %v875 = vpop.f32.mrb[0].mxu0
  %876 = vmatprep.mubr.bf16.mxu0 0
  %877 = vmatmul.mubr.bf16.gmra.mrb[0].mxu0 %v590
  %v878 = vpop.f32.mrb[0].mxu0
  %v879 = vadd.f32 %v602, %v878
  %v880 = vpop.f32.mrb[0].mxu0
  %v881 = vpop.f32.mrb[0].mxu0
  %v882 = vadd.f32 %v602, %v881
  %v883 = vpop.f32.mrb[0].mxu0
  %884 = vmatprep.mubr.bf16.mxu0 0
  %885 = vmatmul.mubr.bf16.gmra.mrb[0].mxu0 %v591
  %v886 = vpop.f32.mrb[0].mxu0
  %v887 = vadd.f32 %v602, %v886
  %v888 = vpop.f32.mrb[0].mxu0
  %v889 = vpop.f32.mrb[0].mxu0
  %v890 = vadd.f32 %v602, %v889
  %v891 = vpop.f32.mrb[0].mxu0
  %892 = vmatprep.mubr.bf16.mxu0 0
  %893 = vmatmul.mubr.bf16.gmra.mrb[0].mxu0 %v592
  %v894 = vpop.f32.mrb[0].mxu0
  %v895 = vadd.f32 %v602, %v894
  %v896 = vpop.f32.mrb[0].mxu0
  %v897 = vpop.f32.mrb[0].mxu0
  %v898 = vadd.f32 %v602, %v897
  %v899 = vpop.f32.mrb[0].mxu0
  %900 = vmatprep.mubr.bf16.mxu0 0
  %901 = vmatmul.mubr.bf16.gmra.mrb[0].mxu0 %v593
  %v902 = vpop.f32.mrb[0].mxu0
  %v903 = vadd.f32 %v602, %v902
  %v904 = vpop.f32.mrb[0].mxu0
  %v905 = vpop.f32.mrb[0].mxu0
  %v906 = vadd.f32 %v602, %v905
  %v907 = vpop.f32.mrb[0].mxu0
  %908 = vmatprep.mubr.bf16.mxu0 0
  %909 = vmatmul.mubr.bf16.gmra.mrb[0].mxu0 %v594
  %v910 = vpop.f32.mrb[0].mxu0
  %v911 = vadd.f32 %v602, %v910
  %v912 = vpop.f32.mrb[0].mxu0
  %v913 = vpop.f32.mrb[0].mxu0
  %v914 = vadd.f32 %v602, %v913
  %v915 = vpop.f32.mrb[0].mxu0
  %916 = vmatprep.mubr.bf16.mxu0 0
  %917 = vmatmul.mubr.bf16.gmra.mrb[0].mxu0 %v595
  %v918 = vpop.f32.mrb[0].mxu0
  %v919 = vadd.f32 %v602, %v918
  %v920 = vpop.f32.mrb[0].mxu0
  %v921 = vpop.f32.mrb[0].mxu0
  %v922 = vadd.f32 %v602, %v921
  %v923 = vpop.f32.mrb[0].mxu0
  %924 = vmatprep.mubr.bf16.mxu0 0
  %925 = vmatmul.mubr.bf16.gmra.mrb[0].mxu0 %v596
  %v926 = vpop.f32.mrb[0].mxu0
  %v927 = vadd.f32 %v602, %v926
  %v928 = vpop.f32.mrb[0].mxu0
  %v929 = vpop.f32.mrb[0].mxu0
  %v930 = vadd.f32 %v602, %v929
  %v931 = vpop.f32.mrb[0].mxu0
  %932 = vmatprep.mubr.bf16.mxu0 0
  %933 = vmatmul.mubr.bf16.gmra.mrb[0].mxu0 %v597
  %v934 = vpop.f32.mrb[0].mxu0
  %v935 = vadd.f32 %v602, %v934
  %v936 = vpop.f32.mrb[0].mxu0
  %v937 = vpop.f32.mrb[0].mxu0
  %v938 = vadd.f32 %v602, %v937
  %v939 = vpop.f32.mrb[0].mxu0
  %940 = vdwg.mxu0
  %v941 = vlaneseq
  %v942 = vshrl.u32 %v941, 7
  %v943 = vadd.s32 %v942, 8
  %v944 = vadd.s32 %v942, 16
  %v945 = vadd.s32 %v942, 24
  %v946 = vadd.s32 %v942, 32
  %v947 = vadd.s32 %v942, 40
  %v948 = vadd.s32 %v942, 48
  %v949 = vadd.s32 %v942, 56
  %v950 = vadd.s32 %v942, 64
  %v951 = vadd.s32 %v942, 72
  %v952 = vadd.s32 %v942, 80
  %v953 = vadd.s32 %v942, 88
  %v954 = vadd.s32 %v942, 96
  %v955 = vadd.s32 %v942, 104
  %v956 = vadd.s32 %v942, 112
  %v957 = vadd.s32 %v942, 120
  %v958 = vadd.s32 %v942, 128
  %v959 = vadd.s32 %v942, 136
  %v960 = vadd.s32 %v942, 144
  %v961 = vadd.s32 %v942, 152
  %v962 = vadd.s32 %v942, 160
  %v963 = vadd.s32 %v942, 168
  %v964 = vadd.s32 %v942, 176
  %v965 = vadd.s32 %v942, 184
  %v966 = vadd.s32 %v942, 192
  %v967 = vadd.s32 %v942, 200
  %v968 = vadd.s32 %v942, 208
  %v969 = vadd.s32 %v942, 216
  %v970 = vadd.s32 %v942, 224
  %v971 = vadd.s32 %v942, 232
  %v972 = vadd.s32 %v942, 240
  %v973 = vadd.s32 %v942, 248
  %v974 = vadd.s32 %v942, 256
  %v975 = vadd.s32 %v942, 264
  %v976 = vadd.s32 %v942, 272
  %v977 = vadd.s32 %v942, 280
  %v978 = vadd.s32 %v942, 288
  %v979 = vadd.s32 %v942, 296
  %v980 = vadd.s32 %v942, 304
  %v981 = vadd.s32 %v942, 312
  %v982 = vadd.s32 %v942, 320
  %v983 = vadd.s32 %v942, 328
  %v984 = vadd.s32 %v942, 336
  %v985 = vadd.s32 %v942, 344
  %v986 = vadd.s32 %v942, 352
  %v987 = vadd.s32 %v942, 360
  %v988 = vadd.s32 %v942, 368
  %v989 = vadd.s32 %v942, 376
  %v990 = vadd.s32 %v942, 384
  %v991 = vadd.s32 %v942, 392
  %v992 = vadd.s32 %v942, 400
  %v993 = vadd.s32 %v942, 408
  %v994 = vadd.s32 %v942, 416
  %v995 = vadd.s32 %v942, 424
  %v996 = vadd.s32 %v942, 432
  %v997 = vadd.s32 %v942, 440
  %v998 = vadd.s32 %v942, 448
  %v999 = vadd.s32 %v942, 456
  %v1000 = vadd.s32 %v942, 464
  %v1001 = vadd.s32 %v942, 472
  %v1002 = vadd.s32 %v942, 480
  %v1003 = vadd.s32 %v942, 488
  %v1004 = vadd.s32 %v942, 496
  %v1005 = vadd.s32 %v942, 504
  %vm1006 = vcmp.lt.s32.totalorder %v942, 16
  %vm1007 = vcmp.lt.s32.totalorder %v943, 16
  %vm1008 = vcmp.lt.s32.totalorder %v944, 16
  %vm1009 = vcmp.lt.s32.totalorder %v945, 16
  %vm1010 = vcmp.lt.s32.totalorder %v946, 16
  %vm1011 = vcmp.lt.s32.totalorder %v947, 16
  %vm1012 = vcmp.lt.s32.totalorder %v948, 16
  %vm1013 = vcmp.lt.s32.totalorder %v949, 16
  %vm1014 = vcmp.lt.s32.totalorder %v950, 16
  %vm1015 = vcmp.lt.s32.totalorder %v951, 16
  %vm1016 = vcmp.lt.s32.totalorder %v952, 16
  %vm1017 = vcmp.lt.s32.totalorder %v953, 16
  %vm1018 = vcmp.lt.s32.totalorder %v954, 16
  %vm1019 = vcmp.lt.s32.totalorder %v955, 16
  %vm1020 = vcmp.lt.s32.totalorder %v956, 16
  %vm1021 = vcmp.lt.s32.totalorder %v957, 16
  %vm1022 = vcmp.lt.s32.totalorder %v958, 16
  %vm1023 = vcmp.lt.s32.totalorder %v959, 16
  %vm1024 = vcmp.lt.s32.totalorder %v960, 16
  %vm1025 = vcmp.lt.s32.totalorder %v961, 16
  %vm1026 = vcmp.lt.s32.totalorder %v962, 16
  %vm1027 = vcmp.lt.s32.totalorder %v963, 16
  %vm1028 = vcmp.lt.s32.totalorder %v964, 16
  %vm1029 = vcmp.lt.s32.totalorder %v965, 16
  %vm1030 = vcmp.lt.s32.totalorder %v966, 16
  %vm1031 = vcmp.lt.s32.totalorder %v967, 16
  %vm1032 = vcmp.lt.s32.totalorder %v968, 16
  %vm1033 = vcmp.lt.s32.totalorder %v969, 16
  %vm1034 = vcmp.lt.s32.totalorder %v970, 16
  %vm1035 = vcmp.lt.s32.totalorder %v971, 16
  %vm1036 = vcmp.lt.s32.totalorder %v972, 16
  %vm1037 = vcmp.lt.s32.totalorder %v973, 16
  %vm1038 = vcmp.lt.s32.totalorder %v974, 16
  %vm1039 = vcmp.lt.s32.totalorder %v975, 16
  %vm1040 = vcmp.lt.s32.totalorder %v976, 16
  %vm1041 = vcmp.lt.s32.totalorder %v977, 16
  %vm1042 = vcmp.lt.s32.totalorder %v978, 16
  %vm1043 = vcmp.lt.s32.totalorder %v979, 16
  %vm1044 = vcmp.lt.s32.totalorder %v980, 16
  %vm1045 = vcmp.lt.s32.totalorder %v981, 16
  %vm1046 = vcmp.lt.s32.totalorder %v982, 16
  %vm1047 = vcmp.lt.s32.totalorder %v983, 16
  %vm1048 = vcmp.lt.s32.totalorder %v984, 16
  %vm1049 = vcmp.lt.s32.totalorder %v985, 16
  %vm1050 = vcmp.lt.s32.totalorder %v986, 16
  %vm1051 = vcmp.lt.s32.totalorder %v987, 16
  %vm1052 = vcmp.lt.s32.totalorder %v988, 16
  %vm1053 = vcmp.lt.s32.totalorder %v989, 16
  %vm1054 = vcmp.lt.s32.totalorder %v990, 16
  %vm1055 = vcmp.lt.s32.totalorder %v991, 16
  %vm1056 = vcmp.lt.s32.totalorder %v992, 16
  %vm1057 = vcmp.lt.s32.totalorder %v993, 16
  %vm1058 = vcmp.lt.s32.totalorder %v994, 16
  %vm1059 = vcmp.lt.s32.totalorder %v995, 16
  %vm1060 = vcmp.lt.s32.totalorder %v996, 16
  %vm1061 = vcmp.lt.s32.totalorder %v997, 16
  %vm1062 = vcmp.lt.s32.totalorder %v998, 16
  %vm1063 = vcmp.lt.s32.totalorder %v999, 16
  %vm1064 = vcmp.lt.s32.totalorder %v1000, 16
  %vm1065 = vcmp.lt.s32.totalorder %v1001, 16
  %vm1066 = vcmp.lt.s32.totalorder %v1002, 16
  %vm1067 = vcmp.lt.s32.totalorder %v1003, 16
  %vm1068 = vcmp.lt.s32.totalorder %v1004, 16
  %vm1069 = vcmp.lt.s32.totalorder %v1005, 16
  %v1070 = vsel %vm1006, 1, 0
  %v1071 = vsel %vm1007, 1, 0
  %v1072 = vsel %vm1008, 1, 0
  %v1073 = vsel %vm1009, 1, 0
  %v1074 = vsel %vm1010, 1, 0
  %v1075 = vsel %vm1011, 1, 0
  %v1076 = vsel %vm1012, 1, 0
  %v1077 = vsel %vm1013, 1, 0
  %v1078 = vsel %vm1014, 1, 0
  %v1079 = vsel %vm1015, 1, 0
  %v1080 = vsel %vm1016, 1, 0
  %v1081 = vsel %vm1017, 1, 0
  %v1082 = vsel %vm1018, 1, 0
  %v1083 = vsel %vm1019, 1, 0
  %v1084 = vsel %vm1020, 1, 0
  %v1085 = vsel %vm1021, 1, 0
  %v1086 = vsel %vm1022, 1, 0
  %v1087 = vsel %vm1023, 1, 0
  %v1088 = vsel %vm1024, 1, 0
  %v1089 = vsel %vm1025, 1, 0
  %v1090 = vsel %vm1026, 1, 0
  %v1091 = vsel %vm1027, 1, 0
  %v1092 = vsel %vm1028, 1, 0
  %v1093 = vsel %vm1029, 1, 0
  %v1094 = vsel %vm1030, 1, 0
  %v1095 = vsel %vm1031, 1, 0
  %v1096 = vsel %vm1032, 1, 0
  %v1097 = vsel %vm1033, 1, 0
  %v1098 = vsel %vm1034, 1, 0
  %v1099 = vsel %vm1035, 1, 0
  %v1100 = vsel %vm1036, 1, 0
  %v1101 = vsel %vm1037, 1, 0
  %v1102 = vsel %vm1038, 1, 0
  %v1103 = vsel %vm1039, 1, 0
  %v1104 = vsel %vm1040, 1, 0
  %v1105 = vsel %vm1041, 1, 0
  %v1106 = vsel %vm1042, 1, 0
  %v1107 = vsel %vm1043, 1, 0
  %v1108 = vsel %vm1044, 1, 0
  %v1109 = vsel %vm1045, 1, 0
  %v1110 = vsel %vm1046, 1, 0
  %v1111 = vsel %vm1047, 1, 0
  %v1112 = vsel %vm1048, 1, 0
  %v1113 = vsel %vm1049, 1, 0
  %v1114 = vsel %vm1050, 1, 0
  %v1115 = vsel %vm1051, 1, 0
  %v1116 = vsel %vm1052, 1, 0
  %v1117 = vsel %vm1053, 1, 0
  %v1118 = vsel %vm1054, 1, 0
  %v1119 = vsel %vm1055, 1, 0
  %v1120 = vsel %vm1056, 1, 0
  %v1121 = vsel %vm1057, 1, 0
  %v1122 = vsel %vm1058, 1, 0
  %v1123 = vsel %vm1059, 1, 0
  %v1124 = vsel %vm1060, 1, 0
  %v1125 = vsel %vm1061, 1, 0
  %v1126 = vsel %vm1062, 1, 0
  %v1127 = vsel %vm1063, 1, 0
  %v1128 = vsel %vm1064, 1, 0
  %v1129 = vsel %vm1065, 1, 0
  %v1130 = vsel %vm1066, 1, 0
  %v1131 = vsel %vm1067, 1, 0
  %v1132 = vsel %vm1068, 1, 0
  %v1133 = vsel %vm1069, 1, 0
  %v1134 = vcvt.s32.f32 %v1070
  %v1135 = vcvt.s32.f32 %v1071
  %v1136 = vcvt.s32.f32 %v1072
  %v1137 = vcvt.s32.f32 %v1073
  %v1138 = vcvt.s32.f32 %v1074
  %v1139 = vcvt.s32.f32 %v1075
  %v1140 = vcvt.s32.f32 %v1076
  %v1141 = vcvt.s32.f32 %v1077
  %v1142 = vcvt.s32.f32 %v1078
  %v1143 = vcvt.s32.f32 %v1079
  %v1144 = vcvt.s32.f32 %v1080
  %v1145 = vcvt.s32.f32 %v1081
  %v1146 = vcvt.s32.f32 %v1082
  %v1147 = vcvt.s32.f32 %v1083
  %v1148 = vcvt.s32.f32 %v1084
  %v1149 = vcvt.s32.f32 %v1085
  %v1150 = vcvt.s32.f32 %v1086
  %v1151 = vcvt.s32.f32 %v1087
  %v1152 = vcvt.s32.f32 %v1088
  %v1153 = vcvt.s32.f32 %v1089
  %v1154 = vcvt.s32.f32 %v1090
  %v1155 = vcvt.s32.f32 %v1091
  %v1156 = vcvt.s32.f32 %v1092
  %v1157 = vcvt.s32.f32 %v1093
  %v1158 = vcvt.s32.f32 %v1094
  %v1159 = vcvt.s32.f32 %v1095
  %v1160 = vcvt.s32.f32 %v1096
  %v1161 = vcvt.s32.f32 %v1097
  %v1162 = vcvt.s32.f32 %v1098
  %v1163 = vcvt.s32.f32 %v1099
  %v1164 = vcvt.s32.f32 %v1100
  %v1165 = vcvt.s32.f32 %v1101
  %v1166 = vcvt.s32.f32 %v1102
  %v1167 = vcvt.s32.f32 %v1103
  %v1168 = vcvt.s32.f32 %v1104
  %v1169 = vcvt.s32.f32 %v1105
  %v1170 = vcvt.s32.f32 %v1106
  %v1171 = vcvt.s32.f32 %v1107
  %v1172 = vcvt.s32.f32 %v1108
  %v1173 = vcvt.s32.f32 %v1109
  %v1174 = vcvt.s32.f32 %v1110
  %v1175 = vcvt.s32.f32 %v1111
  %v1176 = vcvt.s32.f32 %v1112
  %v1177 = vcvt.s32.f32 %v1113
  %v1178 = vcvt.s32.f32 %v1114
  %v1179 = vcvt.s32.f32 %v1115
  %v1180 = vcvt.s32.f32 %v1116
  %v1181 = vcvt.s32.f32 %v1117
  %v1182 = vcvt.s32.f32 %v1118
  %v1183 = vcvt.s32.f32 %v1119
  %v1184 = vcvt.s32.f32 %v1120
  %v1185 = vcvt.s32.f32 %v1121
  %v1186 = vcvt.s32.f32 %v1122
  %v1187 = vcvt.s32.f32 %v1123
  %v1188 = vcvt.s32.f32 %v1124
  %v1189 = vcvt.s32.f32 %v1125
  %v1190 = vcvt.s32.f32 %v1126
  %v1191 = vcvt.s32.f32 %v1127
  %v1192 = vcvt.s32.f32 %v1128
  %v1193 = vcvt.s32.f32 %v1129
  %v1194 = vcvt.s32.f32 %v1130
  %v1195 = vcvt.s32.f32 %v1131
  %v1196 = vcvt.s32.f32 %v1132
  %v1197 = vcvt.s32.f32 %v1133
  %v1198 = vmul.f32 %v687, %v1134
  %v1199 = vmul.f32 %v690, %v1135
  %v1200 = vmul.f32 %v695, %v1136
  %v1201 = vmul.f32 %v698, %v1137
  %v1202 = vmul.f32 %v703, %v1138
  %v1203 = vmul.f32 %v706, %v1139
  %v1204 = vmul.f32 %v711, %v1140
  %v1205 = vmul.f32 %v714, %v1141
  %v1206 = vmul.f32 %v719, %v1142
  %v1207 = vmul.f32 %v722, %v1143
  %v1208 = vmul.f32 %v727, %v1144
  %v1209 = vmul.f32 %v730, %v1145
  %v1210 = vmul.f32 %v735, %v1146
  %v1211 = vmul.f32 %v738, %v1147
  %v1212 = vmul.f32 %v743, %v1148
  %v1213 = vmul.f32 %v746, %v1149
  %v1214 = vmul.f32 %v751, %v1150
  %v1215 = vmul.f32 %v754, %v1151
  %v1216 = vmul.f32 %v759, %v1152
  %v1217 = vmul.f32 %v762, %v1153
  %v1218 = vmul.f32 %v767, %v1154
  %v1219 = vmul.f32 %v770, %v1155
  %v1220 = vmul.f32 %v775, %v1156
  %v1221 = vmul.f32 %v778, %v1157
  %v1222 = vmul.f32 %v783, %v1158
  %v1223 = vmul.f32 %v786, %v1159
  %v1224 = vmul.f32 %v791, %v1160
  %v1225 = vmul.f32 %v794, %v1161
  %v1226 = vmul.f32 %v799, %v1162
  %v1227 = vmul.f32 %v802, %v1163
  %v1228 = vmul.f32 %v807, %v1164
  %v1229 = vmul.f32 %v810, %v1165
  %v1230 = vmul.f32 %v815, %v1166
  %v1231 = vmul.f32 %v818, %v1167
  %v1232 = vmul.f32 %v823, %v1168
  %v1233 = vmul.f32 %v826, %v1169
  %v1234 = vmul.f32 %v831, %v1170
  %v1235 = vmul.f32 %v834, %v1171
  %v1236 = vmul.f32 %v839, %v1172
  %v1237 = vmul.f32 %v842, %v1173
  %v1238 = vmul.f32 %v847, %v1174
  %v1239 = vmul.f32 %v850, %v1175
  %v1240 = vmul.f32 %v855, %v1176
  %v1241 = vmul.f32 %v858, %v1177
  %v1242 = vmul.f32 %v863, %v1178
  %v1243 = vmul.f32 %v866, %v1179
  %v1244 = vmul.f32 %v871, %v1180
  %v1245 = vmul.f32 %v874, %v1181
  %v1246 = vmul.f32 %v879, %v1182
  %v1247 = vmul.f32 %v882, %v1183
  %v1248 = vmul.f32 %v887, %v1184
  %v1249 = vmul.f32 %v890, %v1185
  %v1250 = vmul.f32 %v895, %v1186
  %v1251 = vmul.f32 %v898, %v1187
  %v1252 = vmul.f32 %v903, %v1188
  %v1253 = vmul.f32 %v906, %v1189
  %v1254 = vmul.f32 %v911, %v1190
  %v1255 = vmul.f32 %v914, %v1191
  %v1256 = vmul.f32 %v919, %v1192
  %v1257 = vmul.f32 %v922, %v1193
  %v1258 = vmul.f32 %v927, %v1194
  %v1259 = vmul.f32 %v930, %v1195
  %v1260 = vmul.f32 %v935, %v1196
  %v1261 = vmul.f32 %v938, %v1197
  %v1262 = vadd.f32 %v1198, %v1199
  %v1263 = vadd.f32 %v1262, %v1200
  %v1264 = vadd.f32 %v1263, %v1201
  %v1265 = vadd.f32 %v1264, %v1202
  %v1266 = vadd.f32 %v1265, %v1203
  %v1267 = vadd.f32 %v1266, %v1204
  %v1268 = vadd.f32 %v1267, %v1205
  %v1269 = vadd.f32 %v1268, %v1206
  %v1270 = vadd.f32 %v1269, %v1207
  %v1271 = vadd.f32 %v1270, %v1208
  %v1272 = vadd.f32 %v1271, %v1209
  %v1273 = vadd.f32 %v1272, %v1210
  %v1274 = vadd.f32 %v1273, %v1211
  %v1275 = vadd.f32 %v1274, %v1212
  %v1276 = vadd.f32 %v1275, %v1213
  %v1277 = vadd.f32 %v1276, %v1214
  %v1278 = vadd.f32 %v1277, %v1215
  %v1279 = vadd.f32 %v1278, %v1216
  %v1280 = vadd.f32 %v1279, %v1217
  %v1281 = vadd.f32 %v1280, %v1218
  %v1282 = vadd.f32 %v1281, %v1219
  %v1283 = vadd.f32 %v1282, %v1220
  %v1284 = vadd.f32 %v1283, %v1221
  %v1285 = vadd.f32 %v1284, %v1222
  %v1286 = vadd.f32 %v1285, %v1223
  %v1287 = vadd.f32 %v1286, %v1224
  %v1288 = vadd.f32 %v1287, %v1225
  %v1289 = vadd.f32 %v1288, %v1226
  %v1290 = vadd.f32 %v1289, %v1227
  %v1291 = vadd.f32 %v1290, %v1228
  %v1292 = vadd.f32 %v1291, %v1229
  %v1293 = vadd.f32 %v1292, %v1230
  %v1294 = vadd.f32 %v1293, %v1231
  %v1295 = vadd.f32 %v1294, %v1232
  %v1296 = vadd.f32 %v1295, %v1233
  %v1297 = vadd.f32 %v1296, %v1234
  %v1298 = vadd.f32 %v1297, %v1235
  %v1299 = vadd.f32 %v1298, %v1236
  %v1300 = vadd.f32 %v1299, %v1237
  %v1301 = vadd.f32 %v1300, %v1238
  %v1302 = vadd.f32 %v1301, %v1239
  %v1303 = vadd.f32 %v1302, %v1240
  %v1304 = vadd.f32 %v1303, %v1241
  %v1305 = vadd.f32 %v1304, %v1242
  %v1306 = vadd.f32 %v1305, %v1243
  %v1307 = vadd.f32 %v1306, %v1244
  %v1308 = vadd.f32 %v1307, %v1245
  %v1309 = vadd.f32 %v1308, %v1246
  %v1310 = vadd.f32 %v1309, %v1247
  %v1311 = vadd.f32 %v1310, %v1248
  %v1312 = vadd.f32 %v1311, %v1249
  %v1313 = vadd.f32 %v1312, %v1250
  %v1314 = vadd.f32 %v1313, %v1251
  %v1315 = vadd.f32 %v1314, %v1252
  %v1316 = vadd.f32 %v1315, %v1253
  %v1317 = vadd.f32 %v1316, %v1254
  %v1318 = vadd.f32 %v1317, %v1255
  %v1319 = vadd.f32 %v1318, %v1256
  %v1320 = vadd.f32 %v1319, %v1257
  %v1321 = vadd.f32 %v1320, %v1258
  %v1322 = vadd.f32 %v1321, %v1259
  %v1323 = vadd.f32 %v1322, %v1260
  %v1324 = vadd.f32 %v1323, %v1261
  %v1325 = vrot.slane %v1324, 4
  %v1326 = vadd.f32 %v1324, %v1325
  %v1327 = vrot.slane %v1326, 2
  %v1328 = vadd.f32 %v1326, %v1327
  %v1329 = vrot.slane %v1328, 1
  %v1330 = vadd.f32 %v1328, %v1329
  %v1331 = vmul.f32 %v1330, 0.0625
  %v1332 = vsub.f32 %v687, %v1331
  %v1333 = vsub.f32 %v690, %v1331
  %v1334 = vsub.f32 %v695, %v1331
  %v1335 = vsub.f32 %v698, %v1331
  %v1336 = vsub.f32 %v703, %v1331
  %v1337 = vsub.f32 %v706, %v1331
  %v1338 = vsub.f32 %v711, %v1331
  %v1339 = vsub.f32 %v714, %v1331
  %v1340 = vsub.f32 %v719, %v1331
  %v1341 = vsub.f32 %v722, %v1331
  %v1342 = vsub.f32 %v727, %v1331
  %v1343 = vsub.f32 %v730, %v1331
  %v1344 = vsub.f32 %v735, %v1331
  %v1345 = vsub.f32 %v738, %v1331
  %v1346 = vsub.f32 %v743, %v1331
  %v1347 = vsub.f32 %v746, %v1331
  %v1348 = vsub.f32 %v751, %v1331
  %v1349 = vsub.f32 %v754, %v1331
  %v1350 = vsub.f32 %v759, %v1331
  %v1351 = vsub.f32 %v762, %v1331
  %v1352 = vsub.f32 %v767, %v1331
  %v1353 = vsub.f32 %v770, %v1331
  %v1354 = vsub.f32 %v775, %v1331
  %v1355 = vsub.f32 %v778, %v1331
  %v1356 = vsub.f32 %v783, %v1331
  %v1357 = vsub.f32 %v786, %v1331
  %v1358 = vsub.f32 %v791, %v1331
  %v1359 = vsub.f32 %v794, %v1331
  %v1360 = vsub.f32 %v799, %v1331
  %v1361 = vsub.f32 %v802, %v1331
  %v1362 = vsub.f32 %v807, %v1331
  %v1363 = vsub.f32 %v810, %v1331
  %v1364 = vsub.f32 %v815, %v1331
  %v1365 = vsub.f32 %v818, %v1331
  %v1366 = vsub.f32 %v823, %v1331
  %v1367 = vsub.f32 %v826, %v1331
  %v1368 = vsub.f32 %v831, %v1331
  %v1369 = vsub.f32 %v834, %v1331
  %v1370 = vsub.f32 %v839, %v1331
  %v1371 = vsub.f32 %v842, %v1331
  %v1372 = vsub.f32 %v847, %v1331
  %v1373 = vsub.f32 %v850, %v1331
  %v1374 = vsub.f32 %v855, %v1331
  %v1375 = vsub.f32 %v858, %v1331
  %v1376 = vsub.f32 %v863, %v1331
  %v1377 = vsub.f32 %v866, %v1331
  %v1378 = vsub.f32 %v871, %v1331
  %v1379 = vsub.f32 %v874, %v1331
  %v1380 = vsub.f32 %v879, %v1331
  %v1381 = vsub.f32 %v882, %v1331
  %v1382 = vsub.f32 %v887, %v1331
  %v1383 = vsub.f32 %v890, %v1331
  %v1384 = vsub.f32 %v895, %v1331
  %v1385 = vsub.f32 %v898, %v1331
  %v1386 = vsub.f32 %v903, %v1331
  %v1387 = vsub.f32 %v906, %v1331
  %v1388 = vsub.f32 %v911, %v1331
  %v1389 = vsub.f32 %v914, %v1331
  %v1390 = vsub.f32 %v919, %v1331
  %v1391 = vsub.f32 %v922, %v1331
  %v1392 = vsub.f32 %v927, %v1331
  %v1393 = vsub.f32 %v930, %v1331
  %v1394 = vsub.f32 %v935, %v1331
  %v1395 = vsub.f32 %v938, %v1331
  %v1396 = vmul.f32 %v1332, %v1134
  %v1397 = vmul.f32 %v1333, %v1135
  %v1398 = vmul.f32 %v1334, %v1136
  %v1399 = vmul.f32 %v1335, %v1137
  %v1400 = vmul.f32 %v1336, %v1138
  %v1401 = vmul.f32 %v1337, %v1139
  %v1402 = vmul.f32 %v1338, %v1140
  %v1403 = vmul.f32 %v1339, %v1141
  %v1404 = vmul.f32 %v1340, %v1142
  %v1405 = vmul.f32 %v1341, %v1143
  %v1406 = vmul.f32 %v1342, %v1144
  %v1407 = vmul.f32 %v1343, %v1145
  %v1408 = vmul.f32 %v1344, %v1146
  %v1409 = vmul.f32 %v1345, %v1147
  %v1410 = vmul.f32 %v1346, %v1148
  %v1411 = vmul.f32 %v1347, %v1149
  %v1412 = vmul.f32 %v1348, %v1150
  %v1413 = vmul.f32 %v1349, %v1151
  %v1414 = vmul.f32 %v1350, %v1152
  %v1415 = vmul.f32 %v1351, %v1153
  %v1416 = vmul.f32 %v1352, %v1154
  %v1417 = vmul.f32 %v1353, %v1155
  %v1418 = vmul.f32 %v1354, %v1156
  %v1419 = vmul.f32 %v1355, %v1157
  %v1420 = vmul.f32 %v1356, %v1158
  %v1421 = vmul.f32 %v1357, %v1159
  %v1422 = vmul.f32 %v1358, %v1160
  %v1423 = vmul.f32 %v1359, %v1161
  %v1424 = vmul.f32 %v1360, %v1162
  %v1425 = vmul.f32 %v1361, %v1163
  %v1426 = vmul.f32 %v1362, %v1164
  %v1427 = vmul.f32 %v1363, %v1165
  %v1428 = vmul.f32 %v1364, %v1166
  %v1429 = vmul.f32 %v1365, %v1167
  %v1430 = vmul.f32 %v1366, %v1168
  %v1431 = vmul.f32 %v1367, %v1169
  %v1432 = vmul.f32 %v1368, %v1170
  %v1433 = vmul.f32 %v1369, %v1171
  %v1434 = vmul.f32 %v1370, %v1172
  %v1435 = vmul.f32 %v1371, %v1173
  %v1436 = vmul.f32 %v1372, %v1174
  %v1437 = vmul.f32 %v1373, %v1175
  %v1438 = vmul.f32 %v1374, %v1176
  %v1439 = vmul.f32 %v1375, %v1177
  %v1440 = vmul.f32 %v1376, %v1178
  %v1441 = vmul.f32 %v1377, %v1179
  %v1442 = vmul.f32 %v1378, %v1180
  %v1443 = vmul.f32 %v1379, %v1181
  %v1444 = vmul.f32 %v1380, %v1182
  %v1445 = vmul.f32 %v1381, %v1183
  %v1446 = vmul.f32 %v1382, %v1184
  %v1447 = vmul.f32 %v1383, %v1185
  %v1448 = vmul.f32 %v1384, %v1186
  %v1449 = vmul.f32 %v1385, %v1187
  %v1450 = vmul.f32 %v1386, %v1188
  %v1451 = vmul.f32 %v1387, %v1189
  %v1452 = vmul.f32 %v1388, %v1190
  %v1453 = vmul.f32 %v1389, %v1191
  %v1454 = vmul.f32 %v1390, %v1192
  %v1455 = vmul.f32 %v1391, %v1193
  %v1456 = vmul.f32 %v1392, %v1194
  %v1457 = vmul.f32 %v1393, %v1195
  %v1458 = vmul.f32 %v1394, %v1196
  %v1459 = vmul.f32 %v1395, %v1197
  %v1460 = vmul.f32 %v1396, %v1396
  %v1461 = vmul.f32 %v1397, %v1397
  %v1462 = vmul.f32 %v1398, %v1398
  %v1463 = vmul.f32 %v1399, %v1399
  %v1464 = vmul.f32 %v1400, %v1400
  %v1465 = vmul.f32 %v1401, %v1401
  %v1466 = vmul.f32 %v1402, %v1402
  %v1467 = vmul.f32 %v1403, %v1403
  %v1468 = vmul.f32 %v1404, %v1404
  %v1469 = vmul.f32 %v1405, %v1405
  %v1470 = vmul.f32 %v1406, %v1406
  %v1471 = vmul.f32 %v1407, %v1407
  %v1472 = vmul.f32 %v1408, %v1408
  %v1473 = vmul.f32 %v1409, %v1409
  %v1474 = vmul.f32 %v1410, %v1410
  %v1475 = vmul.f32 %v1411, %v1411
  %v1476 = vmul.f32 %v1412, %v1412
  %v1477 = vmul.f32 %v1413, %v1413
  %v1478 = vmul.f32 %v1414, %v1414
  %v1479 = vmul.f32 %v1415, %v1415
  %v1480 = vmul.f32 %v1416, %v1416
  %v1481 = vmul.f32 %v1417, %v1417
  %v1482 = vmul.f32 %v1418, %v1418
  %v1483 = vmul.f32 %v1419, %v1419
  %v1484 = vmul.f32 %v1420, %v1420
  %v1485 = vmul.f32 %v1421, %v1421
  %v1486 = vmul.f32 %v1422, %v1422
  %v1487 = vmul.f32 %v1423, %v1423
  %v1488 = vmul.f32 %v1424, %v1424
  %v1489 = vmul.f32 %v1425, %v1425
  %v1490 = vmul.f32 %v1426, %v1426
  %v1491 = vmul.f32 %v1427, %v1427
  %v1492 = vmul.f32 %v1428, %v1428
  %v1493 = vmul.f32 %v1429, %v1429
  %v1494 = vmul.f32 %v1430, %v1430
  %v1495 = vmul.f32 %v1431, %v1431
  %v1496 = vmul.f32 %v1432, %v1432
  %v1497 = vmul.f32 %v1433, %v1433
  %v1498 = vmul.f32 %v1434, %v1434
  %v1499 = vmul.f32 %v1435, %v1435
  %v1500 = vmul.f32 %v1436, %v1436
  %v1501 = vmul.f32 %v1437, %v1437
  %v1502 = vmul.f32 %v1438, %v1438
  %v1503 = vmul.f32 %v1439, %v1439
  %v1504 = vmul.f32 %v1440, %v1440
  %v1505 = vmul.f32 %v1441, %v1441
  %v1506 = vmul.f32 %v1442, %v1442
  %v1507 = vmul.f32 %v1443, %v1443
  %v1508 = vmul.f32 %v1444, %v1444
  %v1509 = vmul.f32 %v1445, %v1445
  %v1510 = vmul.f32 %v1446, %v1446
  %v1511 = vmul.f32 %v1447, %v1447
  %v1512 = vmul.f32 %v1448, %v1448
  %v1513 = vmul.f32 %v1449, %v1449
  %v1514 = vmul.f32 %v1450, %v1450
  %v1515 = vmul.f32 %v1451, %v1451
  %v1516 = vmul.f32 %v1452, %v1452
  %v1517 = vmul.f32 %v1453, %v1453
  %v1518 = vmul.f32 %v1454, %v1454
  %v1519 = vmul.f32 %v1455, %v1455
  %v1520 = vmul.f32 %v1456, %v1456
  %v1521 = vmul.f32 %v1457, %v1457
  %v1522 = vmul.f32 %v1458, %v1458
  %v1523 = vmul.f32 %v1459, %v1459
  %v1524 = vadd.f32 %v1460, %v1461
  %v1525 = vadd.f32 %v1524, %v1462
  %v1526 = vadd.f32 %v1525, %v1463
  %v1527 = vadd.f32 %v1526, %v1464
  %v1528 = vadd.f32 %v1527, %v1465
  %v1529 = vadd.f32 %v1528, %v1466
  %v1530 = vadd.f32 %v1529, %v1467
  %v1531 = vadd.f32 %v1530, %v1468
  %v1532 = vadd.f32 %v1531, %v1469
  %v1533 = vadd.f32 %v1532, %v1470
  %v1534 = vadd.f32 %v1533, %v1471
  %v1535 = vadd.f32 %v1534, %v1472
  %v1536 = vadd.f32 %v1535, %v1473
  %v1537 = vadd.f32 %v1536, %v1474
  %v1538 = vadd.f32 %v1537, %v1475
  %v1539 = vadd.f32 %v1538, %v1476
  %v1540 = vadd.f32 %v1539, %v1477
  %v1541 = vadd.f32 %v1540, %v1478
  %v1542 = vadd.f32 %v1541, %v1479
  %v1543 = vadd.f32 %v1542, %v1480
  %v1544 = vadd.f32 %v1543, %v1481
  %v1545 = vadd.f32 %v1544, %v1482
  %v1546 = vadd.f32 %v1545, %v1483
  %v1547 = vadd.f32 %v1546, %v1484
  %v1548 = vadd.f32 %v1547, %v1485
  %v1549 = vadd.f32 %v1548, %v1486
  %v1550 = vadd.f32 %v1549, %v1487
  %v1551 = vadd.f32 %v1550, %v1488
  %v1552 = vadd.f32 %v1551, %v1489
  %v1553 = vadd.f32 %v1552, %v1490
  %v1554 = vadd.f32 %v1553, %v1491
  %v1555 = vadd.f32 %v1554, %v1492
  %v1556 = vadd.f32 %v1555, %v1493
  %v1557 = vadd.f32 %v1556, %v1494
  %v1558 = vadd.f32 %v1557, %v1495
  %v1559 = vadd.f32 %v1558, %v1496
  %v1560 = vadd.f32 %v1559, %v1497
  %v1561 = vadd.f32 %v1560, %v1498
  %v1562 = vadd.f32 %v1561, %v1499
  %v1563 = vadd.f32 %v1562, %v1500
  %v1564 = vadd.f32 %v1563, %v1501
  %v1565 = vadd.f32 %v1564, %v1502
  %v1566 = vadd.f32 %v1565, %v1503
  %v1567 = vadd.f32 %v1566, %v1504
  %v1568 = vadd.f32 %v1567, %v1505
  %v1569 = vadd.f32 %v1568, %v1506
  %v1570 = vadd.f32 %v1569, %v1507
  %v1571 = vadd.f32 %v1570, %v1508
  %v1572 = vadd.f32 %v1571, %v1509
  %v1573 = vadd.f32 %v1572, %v1510
  %v1574 = vadd.f32 %v1573, %v1511
  %v1575 = vadd.f32 %v1574, %v1512
  %v1576 = vadd.f32 %v1575, %v1513
  %v1577 = vadd.f32 %v1576, %v1514
  %v1578 = vadd.f32 %v1577, %v1515
  %v1579 = vadd.f32 %v1578, %v1516
  %v1580 = vadd.f32 %v1579, %v1517
  %v1581 = vadd.f32 %v1580, %v1518
  %v1582 = vadd.f32 %v1581, %v1519
  %v1583 = vadd.f32 %v1582, %v1520
  %v1584 = vadd.f32 %v1583, %v1521
  %v1585 = vadd.f32 %v1584, %v1522
  %v1586 = vadd.f32 %v1585, %v1523
  %v1587 = vrot.slane %v1586, 4
  %v1588 = vadd.f32 %v1586, %v1587
  %v1589 = vrot.slane %v1588, 2
  %v1590 = vadd.f32 %v1588, %v1589
  %v1591 = vrot.slane %v1590, 1
  %v1592 = vadd.f32 %v1590, %v1591
  %v1593 = vmul.f32 %v1592, 0.0625
  %v1594 = vadd.f32 %v1593, 1e-05
  %v1595 = vrsqrt.pop %v1594
  %v1596 = vmul.f32 %v1332, %v1595
  %v1597 = vmul.f32 %v1333, %v1595
  %v1598 = vmul.f32 %v1334, %v1595
  %v1599 = vmul.f32 %v1335, %v1595
  %v1600 = vmul.f32 %v1336, %v1595
  %v1601 = vmul.f32 %v1337, %v1595
  %v1602 = vmul.f32 %v1338, %v1595
  %v1603 = vmul.f32 %v1339, %v1595
  %v1604 = vmul.f32 %v1340, %v1595
  %v1605 = vmul.f32 %v1341, %v1595
  %v1606 = vmul.f32 %v1342, %v1595
  %v1607 = vmul.f32 %v1343, %v1595
  %v1608 = vmul.f32 %v1344, %v1595
  %v1609 = vmul.f32 %v1345, %v1595
  %v1610 = vmul.f32 %v1346, %v1595
  %v1611 = vmul.f32 %v1347, %v1595
  %v1612 = vmul.f32 %v1348, %v1595
  %v1613 = vmul.f32 %v1349, %v1595
  %v1614 = vmul.f32 %v1350, %v1595
  %v1615 = vmul.f32 %v1351, %v1595
  %v1616 = vmul.f32 %v1352, %v1595
  %v1617 = vmul.f32 %v1353, %v1595
  %v1618 = vmul.f32 %v1354, %v1595
  %v1619 = vmul.f32 %v1355, %v1595
  %v1620 = vmul.f32 %v1356, %v1595
  %v1621 = vmul.f32 %v1357, %v1595
  %v1622 = vmul.f32 %v1358, %v1595
  %v1623 = vmul.f32 %v1359, %v1595
  %v1624 = vmul.f32 %v1360, %v1595
  %v1625 = vmul.f32 %v1361, %v1595
  %v1626 = vmul.f32 %v1362, %v1595
  %v1627 = vmul.f32 %v1363, %v1595
  %v1628 = vmul.f32 %v1364, %v1595
  %v1629 = vmul.f32 %v1365, %v1595
  %v1630 = vmul.f32 %v1366, %v1595
  %v1631 = vmul.f32 %v1367, %v1595
  %v1632 = vmul.f32 %v1368, %v1595
  %v1633 = vmul.f32 %v1369, %v1595
  %v1634 = vmul.f32 %v1370, %v1595
  %v1635 = vmul.f32 %v1371, %v1595
  %v1636 = vmul.f32 %v1372, %v1595
  %v1637 = vmul.f32 %v1373, %v1595
  %v1638 = vmul.f32 %v1374, %v1595
  %v1639 = vmul.f32 %v1375, %v1595
  %v1640 = vmul.f32 %v1376, %v1595
  %v1641 = vmul.f32 %v1377, %v1595
  %v1642 = vmul.f32 %v1378, %v1595
  %v1643 = vmul.f32 %v1379, %v1595
  %v1644 = vmul.f32 %v1380, %v1595
  %v1645 = vmul.f32 %v1381, %v1595
  %v1646 = vmul.f32 %v1382, %v1595
  %v1647 = vmul.f32 %v1383, %v1595
  %v1648 = vmul.f32 %v1384, %v1595
  %v1649 = vmul.f32 %v1385, %v1595
  %v1650 = vmul.f32 %v1386, %v1595
  %v1651 = vmul.f32 %v1387, %v1595
  %v1652 = vmul.f32 %v1388, %v1595
  %v1653 = vmul.f32 %v1389, %v1595
  %v1654 = vmul.f32 %v1390, %v1595
  %v1655 = vmul.f32 %v1391, %v1595
  %v1656 = vmul.f32 %v1392, %v1595
  %v1657 = vmul.f32 %v1393, %v1595
  %v1658 = vmul.f32 %v1394, %v1595
  %v1659 = vmul.f32 %v1395, %v1595
  %v1661 = vlaneseq
  %v1662 = vshrl.u32 %v1661, 7
  %v1663 = vsub.s32 0, %v1662
  %v1664 = vrot.slane %v125, %v1663
  %v1666 = vmul.f32 %v1596, %v1664
  %v1667 = vmul.f32 %v1597, %v1664
  %v1668 = vmul.f32 %v1598, %v1664
  %v1669 = vmul.f32 %v1599, %v1664
  %v1670 = vmul.f32 %v1600, %v1664
  %v1671 = vmul.f32 %v1601, %v1664
  %v1672 = vmul.f32 %v1602, %v1664
  %v1673 = vmul.f32 %v1603, %v1664
  %v1674 = vmul.f32 %v1604, %v1664
  %v1675 = vmul.f32 %v1605, %v1664
  %v1676 = vmul.f32 %v1606, %v1664
  %v1677 = vmul.f32 %v1607, %v1664
  %v1678 = vmul.f32 %v1608, %v1664
  %v1679 = vmul.f32 %v1609, %v1664
  %v1680 = vmul.f32 %v1610, %v1664
  %v1681 = vmul.f32 %v1611, %v1664
  %v1682 = vmul.f32 %v1612, %v1664
  %v1683 = vmul.f32 %v1613, %v1664
  %v1684 = vmul.f32 %v1614, %v1664
  %v1685 = vmul.f32 %v1615, %v1664
  %v1686 = vmul.f32 %v1616, %v1664
  %v1687 = vmul.f32 %v1617, %v1664
  %v1688 = vmul.f32 %v1618, %v1664
  %v1689 = vmul.f32 %v1619, %v1664
  %v1690 = vmul.f32 %v1620, %v1664
  %v1691 = vmul.f32 %v1621, %v1664
  %v1692 = vmul.f32 %v1622, %v1664
  %v1693 = vmul.f32 %v1623, %v1664
  %v1694 = vmul.f32 %v1624, %v1664
  %v1695 = vmul.f32 %v1625, %v1664
  %v1696 = vmul.f32 %v1626, %v1664
  %v1697 = vmul.f32 %v1627, %v1664
  %v1698 = vmul.f32 %v1628, %v1664
  %v1699 = vmul.f32 %v1629, %v1664
  %v1700 = vmul.f32 %v1630, %v1664
  %v1701 = vmul.f32 %v1631, %v1664
  %v1702 = vmul.f32 %v1632, %v1664
  %v1703 = vmul.f32 %v1633, %v1664
  %v1704 = vmul.f32 %v1634, %v1664
  %v1705 = vmul.f32 %v1635, %v1664
  %v1706 = vmul.f32 %v1636, %v1664
  %v1707 = vmul.f32 %v1637, %v1664
  %v1708 = vmul.f32 %v1638, %v1664
  %v1709 = vmul.f32 %v1639, %v1664
  %v1710 = vmul.f32 %v1640, %v1664
  %v1711 = vmul.f32 %v1641, %v1664
  %v1712 = vmul.f32 %v1642, %v1664
  %v1713 = vmul.f32 %v1643, %v1664
  %v1714 = vmul.f32 %v1644, %v1664
  %v1715 = vmul.f32 %v1645, %v1664
  %v1716 = vmul.f32 %v1646, %v1664
  %v1717 = vmul.f32 %v1647, %v1664
  %v1718 = vmul.f32 %v1648, %v1664
  %v1719 = vmul.f32 %v1649, %v1664
  %v1720 = vmul.f32 %v1650, %v1664
  %v1721 = vmul.f32 %v1651, %v1664
  %v1722 = vmul.f32 %v1652, %v1664
  %v1723 = vmul.f32 %v1653, %v1664
  %v1724 = vmul.f32 %v1654, %v1664
  %v1725 = vmul.f32 %v1655, %v1664
  %v1726 = vmul.f32 %v1656, %v1664
  %v1727 = vmul.f32 %v1657, %v1664
  %v1728 = vmul.f32 %v1658, %v1664
  %v1729 = vmul.f32 %v1659, %v1664
  %v1731 = vlaneseq
  %v1732 = vshrl.u32 %v1731, 7
  %v1733 = vsub.s32 0, %v1732
  %v1734 = vrot.slane %v126, %v1733
  %v1736 = vadd.f32 %v1666, %v1734
  %v1737 = vadd.f32 %v1667, %v1734
  %v1738 = vadd.f32 %v1668, %v1734
  %v1739 = vadd.f32 %v1669, %v1734
  %v1740 = vadd.f32 %v1670, %v1734
  %v1741 = vadd.f32 %v1671, %v1734
  %v1742 = vadd.f32 %v1672, %v1734
  %v1743 = vadd.f32 %v1673, %v1734
  %v1744 = vadd.f32 %v1674, %v1734
  %v1745 = vadd.f32 %v1675, %v1734
  %v1746 = vadd.f32 %v1676, %v1734
  %v1747 = vadd.f32 %v1677, %v1734
  %v1748 = vadd.f32 %v1678, %v1734
  %v1749 = vadd.f32 %v1679, %v1734
  %v1750 = vadd.f32 %v1680, %v1734
  %v1751 = vadd.f32 %v1681, %v1734
  %v1752 = vadd.f32 %v1682, %v1734
  %v1753 = vadd.f32 %v1683, %v1734
  %v1754 = vadd.f32 %v1684, %v1734
  %v1755 = vadd.f32 %v1685, %v1734
  %v1756 = vadd.f32 %v1686, %v1734
  %v1757 = vadd.f32 %v1687, %v1734
  %v1758 = vadd.f32 %v1688, %v1734
  %v1759 = vadd.f32 %v1689, %v1734
  %v1760 = vadd.f32 %v1690, %v1734
  %v1761 = vadd.f32 %v1691, %v1734
  %v1762 = vadd.f32 %v1692, %v1734
  %v1763 = vadd.f32 %v1693, %v1734
  %v1764 = vadd.f32 %v1694, %v1734
  %v1765 = vadd.f32 %v1695, %v1734
  %v1766 = vadd.f32 %v1696, %v1734
  %v1767 = vadd.f32 %v1697, %v1734
  %v1768 = vadd.f32 %v1698, %v1734
  %v1769 = vadd.f32 %v1699, %v1734
  %v1770 = vadd.f32 %v1700, %v1734
  %v1771 = vadd.f32 %v1701, %v1734
  %v1772 = vadd.f32 %v1702, %v1734
  %v1773 = vadd.f32 %v1703, %v1734
  %v1774 = vadd.f32 %v1704, %v1734
  %v1775 = vadd.f32 %v1705, %v1734
  %v1776 = vadd.f32 %v1706, %v1734
  %v1777 = vadd.f32 %v1707, %v1734
  %v1778 = vadd.f32 %v1708, %v1734
  %v1779 = vadd.f32 %v1709, %v1734
  %v1780 = vadd.f32 %v1710, %v1734
  %v1781 = vadd.f32 %v1711, %v1734
  %v1782 = vadd.f32 %v1712, %v1734
  %v1783 = vadd.f32 %v1713, %v1734
  %v1784 = vadd.f32 %v1714, %v1734
  %v1785 = vadd.f32 %v1715, %v1734
  %v1786 = vadd.f32 %v1716, %v1734
  %v1787 = vadd.f32 %v1717, %v1734
  %v1788 = vadd.f32 %v1718, %v1734
  %v1789 = vadd.f32 %v1719, %v1734
  %v1790 = vadd.f32 %v1720, %v1734
  %v1791 = vadd.f32 %v1721, %v1734
  %v1792 = vadd.f32 %v1722, %v1734
  %v1793 = vadd.f32 %v1723, %v1734
  %v1794 = vadd.f32 %v1724, %v1734
  %v1795 = vadd.f32 %v1725, %v1734
  %v1796 = vadd.f32 %v1726, %v1734
  %v1797 = vadd.f32 %v1727, %v1734
  %v1798 = vadd.f32 %v1728, %v1734
  %v1799 = vadd.f32 %v1729, %v1734
  %v1800 = vmul.f32 %v1736, %v1134
  %v1801 = vmul.f32 %v1737, %v1135
  %v1802 = vmul.f32 %v1738, %v1136
  %v1803 = vmul.f32 %v1739, %v1137
  %v1804 = vmul.f32 %v1740, %v1138
  %v1805 = vmul.f32 %v1741, %v1139
  %v1806 = vmul.f32 %v1742, %v1140
  %v1807 = vmul.f32 %v1743, %v1141
  %v1808 = vmul.f32 %v1744, %v1142
  %v1809 = vmul.f32 %v1745, %v1143
  %v1810 = vmul.f32 %v1746, %v1144
  %v1811 = vmul.f32 %v1747, %v1145
  %v1812 = vmul.f32 %v1748, %v1146
  %v1813 = vmul.f32 %v1749, %v1147
  %v1814 = vmul.f32 %v1750, %v1148
  %v1815 = vmul.f32 %v1751, %v1149
  %v1816 = vmul.f32 %v1752, %v1150
  %v1817 = vmul.f32 %v1753, %v1151
  %v1818 = vmul.f32 %v1754, %v1152
  %v1819 = vmul.f32 %v1755, %v1153
  %v1820 = vmul.f32 %v1756, %v1154
  %v1821 = vmul.f32 %v1757, %v1155
  %v1822 = vmul.f32 %v1758, %v1156
  %v1823 = vmul.f32 %v1759, %v1157
  %v1824 = vmul.f32 %v1760, %v1158
  %v1825 = vmul.f32 %v1761, %v1159
  %v1826 = vmul.f32 %v1762, %v1160
  %v1827 = vmul.f32 %v1763, %v1161
  %v1828 = vmul.f32 %v1764, %v1162
  %v1829 = vmul.f32 %v1765, %v1163
  %v1830 = vmul.f32 %v1766, %v1164
  %v1831 = vmul.f32 %v1767, %v1165
  %v1832 = vmul.f32 %v1768, %v1166
  %v1833 = vmul.f32 %v1769, %v1167
  %v1834 = vmul.f32 %v1770, %v1168
  %v1835 = vmul.f32 %v1771, %v1169
  %v1836 = vmul.f32 %v1772, %v1170
  %v1837 = vmul.f32 %v1773, %v1171
  %v1838 = vmul.f32 %v1774, %v1172
  %v1839 = vmul.f32 %v1775, %v1173
  %v1840 = vmul.f32 %v1776, %v1174
  %v1841 = vmul.f32 %v1777, %v1175
  %v1842 = vmul.f32 %v1778, %v1176
  %v1843 = vmul.f32 %v1779, %v1177
  %v1844 = vmul.f32 %v1780, %v1178
  %v1845 = vmul.f32 %v1781, %v1179
  %v1846 = vmul.f32 %v1782, %v1180
  %v1847 = vmul.f32 %v1783, %v1181
  %v1848 = vmul.f32 %v1784, %v1182
  %v1849 = vmul.f32 %v1785, %v1183
  %v1850 = vmul.f32 %v1786, %v1184
  %v1851 = vmul.f32 %v1787, %v1185
  %v1852 = vmul.f32 %v1788, %v1186
  %v1853 = vmul.f32 %v1789, %v1187
  %v1854 = vmul.f32 %v1790, %v1188
  %v1855 = vmul.f32 %v1791, %v1189
  %v1856 = vmul.f32 %v1792, %v1190
  %v1857 = vmul.f32 %v1793, %v1191
  %v1858 = vmul.f32 %v1794, %v1192
  %v1859 = vmul.f32 %v1795, %v1193
  %v1860 = vmul.f32 %v1796, %v1194
  %v1861 = vmul.f32 %v1797, %v1195
  %v1862 = vmul.f32 %v1798, %v1196
  %v1863 = vmul.f32 %v1799, %v1197
  %1864 = vst [vmem:[%s7] sm:$0xff] %v1800
  %1865 = vst [vmem:[%s7 + $0x8] sm:$0xff] %v1801
  %1866 = vst [vmem:[%s7 + $0x10] sm:$0xff] %v1802
  %1867 = vst [vmem:[%s7 + $0x18] sm:$0xff] %v1803
  %1868 = vst [vmem:[%s7 + $0x20] sm:$0xff] %v1804
  %1869 = vst [vmem:[%s7 + $0x28] sm:$0xff] %v1805
  %1870 = vst [vmem:[%s7 + $0x30] sm:$0xff] %v1806
  %1871 = vst [vmem:[%s7 + $0x38] sm:$0xff] %v1807
  %1872 = vst [vmem:[%s7 + $0x40] sm:$0xff] %v1808
  %1873 = vst [vmem:[%s7 + $0x48] sm:$0xff] %v1809
  %1874 = vst [vmem:[%s7 + $0x50] sm:$0xff] %v1810
  %1875 = vst [vmem:[%s7 + $0x58] sm:$0xff] %v1811
  %1876 = vst [vmem:[%s7 + $0x60] sm:$0xff] %v1812
  %1877 = vst [vmem:[%s7 + $0x68] sm:$0xff] %v1813
  %1878 = vst [vmem:[%s7 + $0x70] sm:$0xff] %v1814
  %1879 = vst [vmem:[%s7 + $0x78] sm:$0xff] %v1815
  %1880 = vst [vmem:[%s7 + $0x80] sm:$0xff] %v1816
  %1881 = vst [vmem:[%s7 + $0x88] sm:$0xff] %v1817
  %1882 = vst [vmem:[%s7 + $0x90] sm:$0xff] %v1818
  %1883 = vst [vmem:[%s7 + $0x98] sm:$0xff] %v1819
  %1884 = vst [vmem:[%s7 + $0xa0] sm:$0xff] %v1820
  %1885 = vst [vmem:[%s7 + $0xa8] sm:$0xff] %v1821
  %1886 = vst [vmem:[%s7 + $0xb0] sm:$0xff] %v1822
  %1887 = vst [vmem:[%s7 + $0xb8] sm:$0xff] %v1823
  %1888 = vst [vmem:[%s7 + $0xc0] sm:$0xff] %v1824
  %1889 = vst [vmem:[%s7 + $0xc8] sm:$0xff] %v1825
  %1890 = vst [vmem:[%s7 + $0xd0] sm:$0xff] %v1826
  %1891 = vst [vmem:[%s7 + $0xd8] sm:$0xff] %v1827
  %1892 = vst [vmem:[%s7 + $0xe0] sm:$0xff] %v1828
  %1893 = vst [vmem:[%s7 + $0xe8] sm:$0xff] %v1829
  %1894 = vst [vmem:[%s7 + $0xf0] sm:$0xff] %v1830
  %1895 = vst [vmem:[%s7 + $0xf8] sm:$0xff] %v1831
  %1896 = vst [vmem:[%s7 + $0x100] sm:$0xff] %v1832
  %1897 = vst [vmem:[%s7 + $0x108] sm:$0xff] %v1833
  %1898 = vst [vmem:[%s7 + $0x110] sm:$0xff] %v1834
  %1899 = vst [vmem:[%s7 + $0x118] sm:$0xff] %v1835
  %1900 = vst [vmem:[%s7 + $0x120] sm:$0xff] %v1836
  %1901 = vst [vmem:[%s7 + $0x128] sm:$0xff] %v1837
  %1902 = vst [vmem:[%s7 + $0x130] sm:$0xff] %v1838
  %1903 = vst [vmem:[%s7 + $0x138] sm:$0xff] %v1839
  %1904 = vst [vmem:[%s7 + $0x140] sm:$0xff] %v1840
  %1905 = vst [vmem:[%s7 + $0x148] sm:$0xff] %v1841
  %1906 = vst [vmem:[%s7 + $0x150] sm:$0xff] %v1842
  %1907 = vst [vmem:[%s7 + $0x158] sm:$0xff] %v1843
  %1908 = vst [vmem:[%s7 + $0x160] sm:$0xff] %v1844
  %1909 = vst [vmem:[%s7 + $0x168] sm:$0xff] %v1845
  %1910 = vst [vmem:[%s7 + $0x170] sm:$0xff] %v1846
  %1911 = vst [vmem:[%s7 + $0x178] sm:$0xff] %v1847
  %1912 = vst [vmem:[%s7 + $0x180] sm:$0xff] %v1848
  %1913 = vst [vmem:[%s7 + $0x188] sm:$0xff] %v1849
  %1914 = vst [vmem:[%s7 + $0x190] sm:$0xff] %v1850
  %1915 = vst [vmem:[%s7 + $0x198] sm:$0xff] %v1851
  %1916 = vst [vmem:[%s7 + $0x1a0] sm:$0xff] %v1852
  %1917 = vst [vmem:[%s7 + $0x1a8] sm:$0xff] %v1853
  %1918 = vst [vmem:[%s7 + $0x1b0] sm:$0xff] %v1854
  %1919 = vst [vmem:[%s7 + $0x1b8] sm:$0xff] %v1855
  %1920 = vst [vmem:[%s7 + $0x1c0] sm:$0xff] %v1856
  %1921 = vst [vmem:[%s7 + $0x1c8] sm:$0xff] %v1857
  %1922 = vst [vmem:[%s7 + $0x1d0] sm:$0xff] %v1858
  %1923 = vst [vmem:[%s7 + $0x1d8] sm:$0xff] %v1859
  %1924 = vst [vmem:[%s7 + $0x1e0] sm:$0xff] %v1860
  %1925 = vst [vmem:[%s7 + $0x1e8] sm:$0xff] %v1861
  %1926 = vst [vmem:[%s7 + $0x1f0] sm:$0xff] %v1862
  %1927 = vst [vmem:[%s7 + $0x1f8] sm:$0xff] %v1863
  // Predicated region
  $region30: #{gnn_virtualnode_forward.7} parent=0 // pred_check
    _
  $region31: #{gnn_virtualnode_forward.7} parent=0 // pred_check_branch
    %1929 = sbr.rel (0) target = $region33
  $region32: #{gnn_virtualnode_forward.7} parent=0 // pred_region
    _
  $region33: #{gnn_virtualnode_forward.7} parent=0 // pred_fallthru
    _
  // Predicated region
  $region34: #{gnn_virtualnode_forward.7} parent=0 // pred_check
    _
  $region35: #{gnn_virtualnode_forward.7} parent=0 // pred_check_branch
    %1931 = sbr.rel (0) target = $region37
  $region36: #{gnn_virtualnode_forward.7} parent=0 // pred_region
    _
  $region37: #{gnn_virtualnode_forward.7} parent=0 // pred_fallthru
    _

// kernel: gnn_virtualnode_forward.5
$region0: #{gnn_virtualnode_forward.5}
  #allocation0 [shape = 'u32[]', space=smem, size = 0x4, offset = 0x4, fixed_abs, tag = 'smem constant byte address 0x4 - core index']
  #allocation1 [shape = 'u32[144,128]{1,0:T(1,128)}', space=vmem, size = 0x12000, scoped, tag = 'internal scratch']
  %s0 = inlined_call_operand.vmem [shape: f32[768,128], index: 0, kind: input, shape index: {}]
  %s1 = inlined_call_operand.vmem [shape: bf16[128,128], index: 1, kind: input, shape index: {}]
  %s2 = inlined_call_operand.vmem [shape: f32[1,128], index: 2, kind: input, shape index: {}]
  %s3 = inlined_call_operand.vmem [shape: bf16[128,128], index: 3, kind: input, shape index: {}]
  %s4 = inlined_call_operand.vmem [shape: f32[1,128], index: 4, kind: input, shape index: {}]
  %s5 = inlined_call_operand.vmem [shape: f32[1,128], index: 5, kind: input, shape index: {}]
  %s6 = inlined_call_operand.vmem [shape: f32[1,128], index: 6, kind: input, shape index: {}]
  %s7 = inlined_call_operand.vmem [shape: bf16[128,128], index: 7, kind: input, shape index: {}]
  %s8 = inlined_call_operand.vmem [shape: f32[1,128], index: 8, kind: input, shape index: {}]
  %s9 = inlined_call_operand.vmem [shape: f32[1,128], index: 9, kind: input, shape index: {}]
  %s10 = inlined_call_operand.vmem [shape: f32[1,128], index: 10, kind: input, shape index: {}]
  %s11 = inlined_call_operand.vmem [shape: bf16[128,128], index: 11, kind: input, shape index: {}]
  %s12 = inlined_call_operand.vmem [shape: f32[1,128], index: 12, kind: input, shape index: {}]
  %s13 = inlined_call_operand.vmem [shape: f32[1,128], index: 13, kind: input, shape index: {}]
  %s14 = inlined_call_operand.vmem [shape: f32[1,128], index: 14, kind: input, shape index: {}]
  %s15 = inlined_call_operand.vmem [shape: f32[512,128], index: 15, kind: output, shape index: {0}]
  %s16 = inlined_call_operand.vmem [shape: f32[16,128], index: 16, kind: output, shape index: {1}]
  %17 = xla_tuple %s15, %s16
  %s18 = sld [smem:[#allocation0]]
  $region78: #{gnn_virtualnode_forward.5} parent=0
    _
  %s20 = ssub.s32 1, %s18
  %s21 = scalar_select 0, %s20, %s18
  // Predicated region
  $region2: #{gnn_virtualnode_forward.5} parent=0 // pred_check
    _
  $region3: #{gnn_virtualnode_forward.5} parent=0 // pred_check_branch
    %23 = sbr.rel (0) target = $region5
  $region4: #{gnn_virtualnode_forward.5} parent=0 // pred_region
    _
  $region5: #{gnn_virtualnode_forward.5} parent=0 // pred_fallthru
    _
  // Predicated region
  $region6: #{gnn_virtualnode_forward.5} parent=0 // pred_check
    _
  $region7: #{gnn_virtualnode_forward.5} parent=0 // pred_check_branch
    %25 = sbr.rel (0) target = $region9
  $region8: #{gnn_virtualnode_forward.5} parent=0 // pred_region
    _
  $region9: #{gnn_virtualnode_forward.5} parent=0 // pred_fallthru
    _
  // Predicated region
  $region10: #{gnn_virtualnode_forward.5} parent=0 // pred_check
    _
  $region11: #{gnn_virtualnode_forward.5} parent=0 // pred_check_branch
    %27 = sbr.rel (0) target = $region13
  $region12: #{gnn_virtualnode_forward.5} parent=0 // pred_region
    _
  $region13: #{gnn_virtualnode_forward.5} parent=0 // pred_fallthru
    _
  // Predicated region
  $region14: #{gnn_virtualnode_forward.5} parent=0 // pred_check
    _
  $region15: #{gnn_virtualnode_forward.5} parent=0 // pred_check_branch
    %29 = sbr.rel (0) target = $region17
  $region16: #{gnn_virtualnode_forward.5} parent=0 // pred_region
    _
  $region17: #{gnn_virtualnode_forward.5} parent=0 // pred_fallthru
    _
  // Predicated region
  $region18: #{gnn_virtualnode_forward.5} parent=0 // pred_check
    _
  $region19: #{gnn_virtualnode_forward.5} parent=0 // pred_check_branch
    %31 = sbr.rel (0) target = $region21
  $region20: #{gnn_virtualnode_forward.5} parent=0 // pred_region
    _
  $region21: #{gnn_virtualnode_forward.5} parent=0 // pred_fallthru
    _
  // Predicated region
  $region22: #{gnn_virtualnode_forward.5} parent=0 // pred_check
    _
  $region23: #{gnn_virtualnode_forward.5} parent=0 // pred_check_branch
    %33 = sbr.rel (0) target = $region25
  $region24: #{gnn_virtualnode_forward.5} parent=0 // pred_region
    _
  $region25: #{gnn_virtualnode_forward.5} parent=0 // pred_fallthru
    _
  // Predicated region
  $region26: #{gnn_virtualnode_forward.5} parent=0 // pred_check
    _
  $region27: #{gnn_virtualnode_forward.5} parent=0 // pred_check_branch
    %35 = sbr.rel (0) target = $region29
  $region28: #{gnn_virtualnode_forward.5} parent=0 // pred_region
    _
  $region29: #{gnn_virtualnode_forward.5} parent=0 // pred_fallthru
    _
  // Predicated region
  $region30: #{gnn_virtualnode_forward.5} parent=0 // pred_check
    _
  $region31: #{gnn_virtualnode_forward.5} parent=0 // pred_check_branch
    %37 = sbr.rel (0) target = $region33
  $region32: #{gnn_virtualnode_forward.5} parent=0 // pred_region
    _
  $region33: #{gnn_virtualnode_forward.5} parent=0 // pred_fallthru
    _
  // Predicated region
  $region34: #{gnn_virtualnode_forward.5} parent=0 // pred_check
    _
  $region35: #{gnn_virtualnode_forward.5} parent=0 // pred_check_branch
    %39 = sbr.rel (0) target = $region37
  $region36: #{gnn_virtualnode_forward.5} parent=0 // pred_region
    _
  $region37: #{gnn_virtualnode_forward.5} parent=0 // pred_fallthru
    _
  // Predicated region
  $region38: #{gnn_virtualnode_forward.5} parent=0 // pred_check
    _
  $region39: #{gnn_virtualnode_forward.5} parent=0 // pred_check_branch
    %41 = sbr.rel (0) target = $region41
  $region40: #{gnn_virtualnode_forward.5} parent=0 // pred_region
    _
  $region41: #{gnn_virtualnode_forward.5} parent=0 // pred_fallthru
    _
  // Predicated region
  $region42: #{gnn_virtualnode_forward.5} parent=0 // pred_check
    _
  $region43: #{gnn_virtualnode_forward.5} parent=0 // pred_check_branch
    %43 = sbr.rel (0) target = $region45
  $region44: #{gnn_virtualnode_forward.5} parent=0 // pred_region
    _
  $region45: #{gnn_virtualnode_forward.5} parent=0 // pred_fallthru
    _
  // Predicated region
  $region46: #{gnn_virtualnode_forward.5} parent=0 // pred_check
    _
  $region47: #{gnn_virtualnode_forward.5} parent=0 // pred_check_branch
    %45 = sbr.rel (0) target = $region49
  $region48: #{gnn_virtualnode_forward.5} parent=0 // pred_region
    _
  $region49: #{gnn_virtualnode_forward.5} parent=0 // pred_fallthru
    _
  // Predicated region
  $region50: #{gnn_virtualnode_forward.5} parent=0 // pred_check
    _
  $region51: #{gnn_virtualnode_forward.5} parent=0 // pred_check_branch
    %47 = sbr.rel (0) target = $region53
  $region52: #{gnn_virtualnode_forward.5} parent=0 // pred_region
    _
  $region53: #{gnn_virtualnode_forward.5} parent=0 // pred_fallthru
    _
  // Predicated region
  $region54: #{gnn_virtualnode_forward.5} parent=0 // pred_check
    _
  $region55: #{gnn_virtualnode_forward.5} parent=0 // pred_check_branch
    %49 = sbr.rel (0) target = $region57
  $region56: #{gnn_virtualnode_forward.5} parent=0 // pred_region
    _
  $region57: #{gnn_virtualnode_forward.5} parent=0 // pred_fallthru
    _
  // Predicated region
  $region58: #{gnn_virtualnode_forward.5} parent=0 // pred_check
    _
  $region59: #{gnn_virtualnode_forward.5} parent=0 // pred_check_branch
    %51 = sbr.rel (0) target = $region61
  $region60: #{gnn_virtualnode_forward.5} parent=0 // pred_region
    _
  $region61: #{gnn_virtualnode_forward.5} parent=0 // pred_fallthru
    _
  %v53 = vld [vmem:[%s0] sm:$0xff]
  %v54 = vld [vmem:[%s0 + $0x8] sm:$0xff]
  %v55 = vld [vmem:[%s0 + $0x10] sm:$0xff]
  %v56 = vld [vmem:[%s0 + $0x18] sm:$0xff]
  %v57 = vld [vmem:[%s0 + $0x20] sm:$0xff]
  %v58 = vld [vmem:[%s0 + $0x28] sm:$0xff]
  %v59 = vld [vmem:[%s0 + $0x30] sm:$0xff]
  %v60 = vld [vmem:[%s0 + $0x38] sm:$0xff]
  %v61 = vld [vmem:[%s0 + $0x40] sm:$0xff]
  %v62 = vld [vmem:[%s0 + $0x48] sm:$0xff]
  %v63 = vld [vmem:[%s0 + $0x50] sm:$0xff]
  %v64 = vld [vmem:[%s0 + $0x58] sm:$0xff]
  %v65 = vld [vmem:[%s0 + $0x60] sm:$0xff]
  %v66 = vld [vmem:[%s0 + $0x68] sm:$0xff]
  %v67 = vld [vmem:[%s0 + $0x70] sm:$0xff]
  %v68 = vld [vmem:[%s0 + $0x78] sm:$0xff]
  %v69 = vld [vmem:[%s0 + $0x80] sm:$0xff]
  %v70 = vld [vmem:[%s0 + $0x88] sm:$0xff]
  %v71 = vld [vmem:[%s0 + $0x90] sm:$0xff]
  %v72 = vld [vmem:[%s0 + $0x98] sm:$0xff]
  %v73 = vld [vmem:[%s0 + $0xa0] sm:$0xff]
  %v74 = vld [vmem:[%s0 + $0xa8] sm:$0xff]
  %v75 = vld [vmem:[%s0 + $0xb0] sm:$0xff]
  %v76 = vld [vmem:[%s0 + $0xb8] sm:$0xff]
  %v77 = vld [vmem:[%s0 + $0xc0] sm:$0xff]
  %v78 = vld [vmem:[%s0 + $0xc8] sm:$0xff]
  %v79 = vld [vmem:[%s0 + $0xd0] sm:$0xff]
  %v80 = vld [vmem:[%s0 + $0xd8] sm:$0xff]
  %v81 = vld [vmem:[%s0 + $0xe0] sm:$0xff]
  %v82 = vld [vmem:[%s0 + $0xe8] sm:$0xff]
  %v83 = vld [vmem:[%s0 + $0xf0] sm:$0xff]
  %v84 = vld [vmem:[%s0 + $0xf8] sm:$0xff]
  %v85 = vld [vmem:[%s0 + $0x100] sm:$0xff]
  %v86 = vld [vmem:[%s0 + $0x108] sm:$0xff]
  %v87 = vld [vmem:[%s0 + $0x110] sm:$0xff]
  %v88 = vld [vmem:[%s0 + $0x118] sm:$0xff]
  %v89 = vld [vmem:[%s0 + $0x120] sm:$0xff]
  %v90 = vld [vmem:[%s0 + $0x128] sm:$0xff]
  %v91 = vld [vmem:[%s0 + $0x130] sm:$0xff]
  %v92 = vld [vmem:[%s0 + $0x138] sm:$0xff]
  %v93 = vld [vmem:[%s0 + $0x140] sm:$0xff]
  %v94 = vld [vmem:[%s0 + $0x148] sm:$0xff]
  %v95 = vld [vmem:[%s0 + $0x150] sm:$0xff]
  %v96 = vld [vmem:[%s0 + $0x158] sm:$0xff]
  %v97 = vld [vmem:[%s0 + $0x160] sm:$0xff]
  %v98 = vld [vmem:[%s0 + $0x168] sm:$0xff]
  %v99 = vld [vmem:[%s0 + $0x170] sm:$0xff]
  %v100 = vld [vmem:[%s0 + $0x178] sm:$0xff]
  %v101 = vld [vmem:[%s0 + $0x180] sm:$0xff]
  %v102 = vld [vmem:[%s0 + $0x188] sm:$0xff]
  %v103 = vld [vmem:[%s0 + $0x190] sm:$0xff]
  %v104 = vld [vmem:[%s0 + $0x198] sm:$0xff]
  %v105 = vld [vmem:[%s0 + $0x1a0] sm:$0xff]
  %v106 = vld [vmem:[%s0 + $0x1a8] sm:$0xff]
  %v107 = vld [vmem:[%s0 + $0x1b0] sm:$0xff]
  %v108 = vld [vmem:[%s0 + $0x1b8] sm:$0xff]
  %v109 = vld [vmem:[%s0 + $0x1c0] sm:$0xff]
  %v110 = vld [vmem:[%s0 + $0x1c8] sm:$0xff]
  %v111 = vld [vmem:[%s0 + $0x1d0] sm:$0xff]
  %v112 = vld [vmem:[%s0 + $0x1d8] sm:$0xff]
  %v113 = vld [vmem:[%s0 + $0x1e0] sm:$0xff]
  %v114 = vld [vmem:[%s0 + $0x1e8] sm:$0xff]
  %v115 = vld [vmem:[%s0 + $0x1f0] sm:$0xff]
  %v116 = vld [vmem:[%s0 + $0x1f8] sm:$0xff]
  %v117 = vld [vmem:[%s1] sm:$0xf]
  %v118 = vld [vmem:[%s1 + $0x4] sm:$0xf]
  %v119 = vld [vmem:[%s1 + $0x8] sm:$0xf]
  %v120 = vld [vmem:[%s1 + $0xc] sm:$0xf]
  %v121 = vld [vmem:[%s1 + $0x10] sm:$0xf]
  %v122 = vld [vmem:[%s1 + $0x14] sm:$0xf]
  %v123 = vld [vmem:[%s1 + $0x18] sm:$0xf]
  %v124 = vld [vmem:[%s1 + $0x1c] sm:$0xf]
  %v125 = vld [vmem:[%s1 + $0x20] sm:$0xf]
  %v126 = vld [vmem:[%s1 + $0x24] sm:$0xf]
  %v127 = vld [vmem:[%s1 + $0x28] sm:$0xf]
  %v128 = vld [vmem:[%s1 + $0x2c] sm:$0xf]
  %v129 = vld [vmem:[%s1 + $0x30] sm:$0xf]
  %v130 = vld [vmem:[%s1 + $0x34] sm:$0xf]
  %v131 = vld [vmem:[%s1 + $0x38] sm:$0xf]
  %v132 = vld [vmem:[%s1 + $0x3c] sm:$0xf]
  %v133 = vld [vmem:[%s2] sm:$0x1]
  %v134 = vld [vmem:[%s3] sm:$0xf]
  %v135 = vld [vmem:[%s3 + $0x4] sm:$0xf]
  %v136 = vld [vmem:[%s3 + $0x8] sm:$0xf]
  %v137 = vld [vmem:[%s3 + $0xc] sm:$0xf]
  %v138 = vld [vmem:[%s3 + $0x10] sm:$0xf]
  %v139 = vld [vmem:[%s3 + $0x14] sm:$0xf]
  %v140 = vld [vmem:[%s3 + $0x18] sm:$0xf]
  %v141 = vld [vmem:[%s3 + $0x1c] sm:$0xf]
  %v142 = vld [vmem:[%s3 + $0x20] sm:$0xf]
  %v143 = vld [vmem:[%s3 + $0x24] sm:$0xf]
  %v144 = vld [vmem:[%s3 + $0x28] sm:$0xf]
  %v145 = vld [vmem:[%s3 + $0x2c] sm:$0xf]
  %v146 = vld [vmem:[%s3 + $0x30] sm:$0xf]
  %v147 = vld [vmem:[%s3 + $0x34] sm:$0xf]
  %v148 = vld [vmem:[%s3 + $0x38] sm:$0xf]
  %v149 = vld [vmem:[%s3 + $0x3c] sm:$0xf]
  %v150 = vld [vmem:[%s4] sm:$0x1]
  %v151 = vld [vmem:[%s5] sm:$0x1]
  %v152 = vld [vmem:[%s6] sm:$0x1]
  %v153 = vpack.c.bf16 %v54, %v53
  %v154 = vpack.c.bf16 %v56, %v55
  %v155 = vpack.c.bf16 %v58, %v57
  %v156 = vpack.c.bf16 %v60, %v59
  %v157 = vpack.c.bf16 %v62, %v61
  %v158 = vpack.c.bf16 %v64, %v63
  %v159 = vpack.c.bf16 %v66, %v65
  %v160 = vpack.c.bf16 %v68, %v67
  %v161 = vpack.c.bf16 %v70, %v69
  %v162 = vpack.c.bf16 %v72, %v71
  %v163 = vpack.c.bf16 %v74, %v73
  %v164 = vpack.c.bf16 %v76, %v75
  %v165 = vpack.c.bf16 %v78, %v77
  %v166 = vpack.c.bf16 %v80, %v79
  %v167 = vpack.c.bf16 %v82, %v81
  %v168 = vpack.c.bf16 %v84, %v83
  %v169 = vpack.c.bf16 %v86, %v85
  %v170 = vpack.c.bf16 %v88, %v87
  %v171 = vpack.c.bf16 %v90, %v89
  %v172 = vpack.c.bf16 %v92, %v91
  %v173 = vpack.c.bf16 %v94, %v93
  %v174 = vpack.c.bf16 %v96, %v95
  %v175 = vpack.c.bf16 %v98, %v97
  %v176 = vpack.c.bf16 %v100, %v99
  %v177 = vpack.c.bf16 %v102, %v101
  %v178 = vpack.c.bf16 %v104, %v103
  %v179 = vpack.c.bf16 %v106, %v105
  %v180 = vpack.c.bf16 %v108, %v107
  %v181 = vpack.c.bf16 %v110, %v109
  %v182 = vpack.c.bf16 %v112, %v111
  %v183 = vpack.c.bf16 %v114, %v113
  %v184 = vpack.c.bf16 %v116, %v115
  %v186 = vlaneseq
  %v187 = vshrl.u32 %v186, 7
  %v188 = vsub.s32 0, %v187
  %v189 = vrot.slane %v133, %v188
  %v207 = vunpack.c.l.b16 %v117
  %v208 = vunpack.c.l.b16 %v118
  %v209 = vunpack.c.l.b16 %v119
  %v210 = vunpack.c.l.b16 %v120
  %v211 = vunpack.c.l.b16 %v121
  %v212 = vunpack.c.l.b16 %v122
  %v213 = vunpack.c.l.b16 %v123
  %v214 = vunpack.c.l.b16 %v124
  %v215 = vunpack.c.l.b16 %v125
  %v216 = vunpack.c.l.b16 %v126
  %v217 = vunpack.c.l.b16 %v127
  %v218 = vunpack.c.l.b16 %v128
  %v219 = vunpack.c.l.b16 %v129
  %v220 = vunpack.c.l.b16 %v130
  %v221 = vunpack.c.l.b16 %v131
  %v222 = vunpack.c.l.b16 %v132
  %v223 = vpack.c.b16 %v208, %v207
  %v224 = vpack.c.b16 %v210, %v209
  %v225 = vpack.c.b16 %v212, %v211
  %v226 = vpack.c.b16 %v214, %v213
  %v227 = vpack.c.b16 %v216, %v215
  %v228 = vpack.c.b16 %v218, %v217
  %v229 = vpack.c.b16 %v220, %v219
  %v230 = vpack.c.b16 %v222, %v221
  %239 = vmatprep.subr.bf16.mxu0 0
  %240 = vmatpush1.bf16.msra.mxu0 %v223
  %241 = vmatprep.subr.bf16.mxu0 0
  %242 = vmatpush1.bf16.msra.mxu0 %v224
  %243 = vmatprep.subr.bf16.mxu0 0
  %244 = vmatpush1.bf16.msra.mxu0 %v225
  %245 = vmatprep.subr.bf16.mxu0 0
  %246 = vmatpush1.bf16.msra.mxu0 %v226
  %247 = vmatprep.subr.bf16.mxu0 0
  %248 = vmatpush1.bf16.msra.mxu0 %v227
  %249 = vmatprep.subr.bf16.mxu0 0
  %250 = vmatpush1.bf16.msra.mxu0 %v228
  %251 = vmatprep.subr.bf16.mxu0 0
  %252 = vmatpush1.bf16.msra.mxu0 %v229
  %253 = vmatprep.subr.bf16.mxu0 0
  %254 = vmatpush1.bf16.msra.mxu0 %v230
  %255 = vmatprep.subr.bf16.mxu0 0
  %256 = vmatpush1.bf16.msra.mxu0 0
  %257 = vmatprep.subr.bf16.mxu0 0
  %258 = vmatpush1.bf16.msra.mxu0 0
  %259 = vmatprep.subr.bf16.mxu0 0
  %260 = vmatpush1.bf16.msra.mxu0 0
  %261 = vmatprep.subr.bf16.mxu0 0
  %262 = vmatpush1.bf16.msra.mxu0 0
  %263 = vmatprep.subr.bf16.mxu0 0
  %264 = vmatpush1.bf16.msra.mxu0 0
  %265 = vmatprep.subr.bf16.mxu0 0
  %266 = vmatpush1.bf16.msra.mxu0 0
  %267 = vmatprep.subr.bf16.mxu0 0
  %268 = vmatpush1.bf16.msra.mxu0 0
  %269 = vmatprep.subr.bf16.mxu0 0
  %270 = vmatpush1.bf16.msra.mxu0 0
  %271 = vmatprep.mubr.bf16.mxu0 0
  %272 = vmatmul.mubr.bf16.gmra.mrb[0].mxu0 %v153
  %v273 = vpop.f32.mrb[0].mxu0
  %v274 = vadd.f32 %v189, %v273
  %v275 = vpop.f32.mrb[0].mxu0
  %v276 = vpop.f32.mrb[0].mxu0
  %v277 = vadd.f32 %v189, %v276
  %v278 = vpop.f32.mrb[0].mxu0
  %279 = vmatprep.mubr.bf16.mxu0 0
  %280 = vmatmul.mubr.bf16.gmra.mrb[0].mxu0 %v154
  %v281 = vpop.f32.mrb[0].mxu0
  %v282 = vadd.f32 %v189, %v281
  %v283 = vpop.f32.mrb[0].mxu0
  %v284 = vpop.f32.mrb[0].mxu0
  %v285 = vadd.f32 %v189, %v284
  %v286 = vpop.f32.mrb[0].mxu0
  %287 = vmatprep.mubr.bf16.mxu0 0
  %288 = vmatmul.mubr.bf16.gmra.mrb[0].mxu0 %v155
  %v289 = vpop.f32.mrb[0].mxu0
  %v290 = vadd.f32 %v189, %v289
  %v291 = vpop.f32.mrb[0].mxu0
  %v292 = vpop.f32.mrb[0].mxu0
  %v293 = vadd.f32 %v189, %v292
  %v294 = vpop.f32.mrb[0].mxu0
  %295 = vmatprep.mubr.bf16.mxu0 0
  %296 = vmatmul.mubr.bf16.gmra.mrb[0].mxu0 %v156
  %v297 = vpop.f32.mrb[0].mxu0
  %v298 = vadd.f32 %v189, %v297
  %v299 = vpop.f32.mrb[0].mxu0
  %v300 = vpop.f32.mrb[0].mxu0
  %v301 = vadd.f32 %v189, %v300
  %v302 = vpop.f32.mrb[0].mxu0
  %303 = vmatprep.mubr.bf16.mxu0 0
  %304 = vmatmul.mubr.bf16.gmra.mrb[0].mxu0 %v157
  %v305 = vpop.f32.mrb[0].mxu0
  %v306 = vadd.f32 %v189, %v305
  %v307 = vpop.f32.mrb[0].mxu0
  %v308 = vpop.f32.mrb[0].mxu0
  %v309 = vadd.f32 %v189, %v308
  %v310 = vpop.f32.mrb[0].mxu0
  %311 = vmatprep.mubr.bf16.mxu0 0
  %312 = vmatmul.mubr.bf16.gmra.mrb[0].mxu0 %v158
  %v313 = vpop.f32.mrb[0].mxu0
  %v314 = vadd.f32 %v189, %v313
  %v315 = vpop.f32.mrb[0].mxu0
  %v316 = vpop.f32.mrb[0].mxu0
  %v317 = vadd.f32 %v189, %v316
  %v318 = vpop.f32.mrb[0].mxu0
  %319 = vmatprep.mubr.bf16.mxu0 0
  %320 = vmatmul.mubr.bf16.gmra.mrb[0].mxu0 %v159
  %v321 = vpop.f32.mrb[0].mxu0
  %v322 = vadd.f32 %v189, %v321
  %v323 = vpop.f32.mrb[0].mxu0
  %v324 = vpop.f32.mrb[0].mxu0
  %v325 = vadd.f32 %v189, %v324
  %v326 = vpop.f32.mrb[0].mxu0
  %327 = vmatprep.mubr.bf16.mxu0 0
  %328 = vmatmul.mubr.bf16.gmra.mrb[0].mxu0 %v160
  %v329 = vpop.f32.mrb[0].mxu0
  %v330 = vadd.f32 %v189, %v329
  %v331 = vpop.f32.mrb[0].mxu0
  %v332 = vpop.f32.mrb[0].mxu0
  %v333 = vadd.f32 %v189, %v332
  %v334 = vpop.f32.mrb[0].mxu0
  %335 = vmatprep.mubr.bf16.mxu0 0
  %336 = vmatmul.mubr.bf16.gmra.mrb[0].mxu0 %v161
  %v337 = vpop.f32.mrb[0].mxu0
  %v338 = vadd.f32 %v189, %v337
  %v339 = vpop.f32.mrb[0].mxu0
  %v340 = vpop.f32.mrb[0].mxu0
  %v341 = vadd.f32 %v189, %v340
  %v342 = vpop.f32.mrb[0].mxu0
  %343 = vmatprep.mubr.bf16.mxu0 0
  %344 = vmatmul.mubr.bf16.gmra.mrb[0].mxu0 %v162
  %v345 = vpop.f32.mrb[0].mxu0
  %v346 = vadd.f32 %v189, %v345
  %v347 = vpop.f32.mrb[0].mxu0
  %v348 = vpop.f32.mrb[0].mxu0
  %v349 = vadd.f32 %v189, %v348
  %v350 = vpop.f32.mrb[0].mxu0
  %351 = vmatprep.mubr.bf16.mxu0 0
  %352 = vmatmul.mubr.bf16.gmra.mrb[0].mxu0 %v163
  %v353 = vpop.f32.mrb[0].mxu0
  %v354 = vadd.f32 %v189, %v353
  %v355 = vpop.f32.mrb[0].mxu0
  %v356 = vpop.f32.mrb[0].mxu0
  %v357 = vadd.f32 %v189, %v356
  %v358 = vpop.f32.mrb[0].mxu0
  %359 = vmatprep.mubr.bf16.mxu0 0
  %360 = vmatmul.mubr.bf16.gmra.mrb[0].mxu0 %v164
  %v361 = vpop.f32.mrb[0].mxu0
  %v362 = vadd.f32 %v189, %v361
  %v363 = vpop.f32.mrb[0].mxu0
  %v364 = vpop.f32.mrb[0].mxu0
  %v365 = vadd.f32 %v189, %v364
  %v366 = vpop.f32.mrb[0].mxu0
  %367 = vmatprep.mubr.bf16.mxu0 0
  %368 = vmatmul.mubr.bf16.gmra.mrb[0].mxu0 %v165
  %v369 = vpop.f32.mrb[0].mxu0
  %v370 = vadd.f32 %v189, %v369
  %v371 = vpop.f32.mrb[0].mxu0
  %v372 = vpop.f32.mrb[0].mxu0
  %v373 = vadd.f32 %v189, %v372
  %v374 = vpop.f32.mrb[0].mxu0
  %375 = vmatprep.mubr.bf16.mxu0 0
  %376 = vmatmul.mubr.bf16.gmra.mrb[0].mxu0 %v166
  %v377 = vpop.f32.mrb[0].mxu0
  %v378 = vadd.f32 %v189, %v377
  %v379 = vpop.f32.mrb[0].mxu0
  %v380 = vpop.f32.mrb[0].mxu0
  %v381 = vadd.f32 %v189, %v380
  %v382 = vpop.f32.mrb[0].mxu0
  %383 = vmatprep.mubr.bf16.mxu0 0
  %384 = vmatmul.mubr.bf16.gmra.mrb[0].mxu0 %v167
  %v385 = vpop.f32.mrb[0].mxu0
  %v386 = vadd.f32 %v189, %v385
  %v387 = vpop.f32.mrb[0].mxu0
  %v388 = vpop.f32.mrb[0].mxu0
  %v389 = vadd.f32 %v189, %v388
  %v390 = vpop.f32.mrb[0].mxu0
  %391 = vmatprep.mubr.bf16.mxu0 0
  %392 = vmatmul.mubr.bf16.gmra.mrb[0].mxu0 %v168
  %v393 = vpop.f32.mrb[0].mxu0
  %v394 = vadd.f32 %v189, %v393
  %v395 = vpop.f32.mrb[0].mxu0
  %v396 = vpop.f32.mrb[0].mxu0
  %v397 = vadd.f32 %v189, %v396
  %v398 = vpop.f32.mrb[0].mxu0
  %399 = vmatprep.mubr.bf16.mxu0 0
  %400 = vmatmul.mubr.bf16.gmra.mrb[0].mxu0 %v169
  %v401 = vpop.f32.mrb[0].mxu0
  %v402 = vadd.f32 %v189, %v401
  %v403 = vpop.f32.mrb[0].mxu0
  %v404 = vpop.f32.mrb[0].mxu0
  %v405 = vadd.f32 %v189, %v404
  %v406 = vpop.f32.mrb[0].mxu0
  %407 = vmatprep.mubr.bf16.mxu0 0
  %408 = vmatmul.mubr.bf16.gmra.mrb[0].mxu0 %v170
  %v409 = vpop.f32.mrb[0].mxu0
  %v410 = vadd.f32 %v189, %v409
  %v411 = vpop.f32.mrb[0].mxu0
  %v412 = vpop.f32.mrb[0].mxu0
  %v413 = vadd.f32 %v189, %v412
  %v414 = vpop.f32.mrb[0].mxu0
  %415 = vmatprep.mubr.bf16.mxu0 0
  %416 = vmatmul.mubr.bf16.gmra.mrb[0].mxu0 %v171
  %v417 = vpop.f32.mrb[0].mxu0
  %v418 = vadd.f32 %v189, %v417
  %v419 = vpop.f32.mrb[0].mxu0
  %v420 = vpop.f32.mrb[0].mxu0
  %v421 = vadd.f32 %v189, %v420
  %v422 = vpop.f32.mrb[0].mxu0
  %423 = vmatprep.mubr.bf16.mxu0 0
  %424 = vmatmul.mubr.bf16.gmra.mrb[0].mxu0 %v172
  %v425 = vpop.f32.mrb[0].mxu0
  %v426 = vadd.f32 %v189, %v425
  %v427 = vpop.f32.mrb[0].mxu0
  %v428 = vpop.f32.mrb[0].mxu0
  %v429 = vadd.f32 %v189, %v428
  %v430 = vpop.f32.mrb[0].mxu0
  %431 = vmatprep.mubr.bf16.mxu0 0
  %432 = vmatmul.mubr.bf16.gmra.mrb[0].mxu0 %v173
  %v433 = vpop.f32.mrb[0].mxu0
  %v434 = vadd.f32 %v189, %v433
  %v435 = vpop.f32.mrb[0].mxu0
  %v436 = vpop.f32.mrb[0].mxu0
  %v437 = vadd.f32 %v189, %v436
  %v438 = vpop.f32.mrb[0].mxu0
  %439 = vmatprep.mubr.bf16.mxu0 0
  %440 = vmatmul.mubr.bf16.gmra.mrb[0].mxu0 %v174
  %v441 = vpop.f32.mrb[0].mxu0
  %v442 = vadd.f32 %v189, %v441
  %v443 = vpop.f32.mrb[0].mxu0
  %v444 = vpop.f32.mrb[0].mxu0
  %v445 = vadd.f32 %v189, %v444
  %v446 = vpop.f32.mrb[0].mxu0
  %447 = vmatprep.mubr.bf16.mxu0 0
  %448 = vmatmul.mubr.bf16.gmra.mrb[0].mxu0 %v175
  %v449 = vpop.f32.mrb[0].mxu0
  %v450 = vadd.f32 %v189, %v449
  %v451 = vpop.f32.mrb[0].mxu0
  %v452 = vpop.f32.mrb[0].mxu0
  %v453 = vadd.f32 %v189, %v452
  %v454 = vpop.f32.mrb[0].mxu0
  %455 = vmatprep.mubr.bf16.mxu0 0
  %456 = vmatmul.mubr.bf16.gmra.mrb[0].mxu0 %v176
  %v457 = vpop.f32.mrb[0].mxu0
  %v458 = vadd.f32 %v189, %v457
  %v459 = vpop.f32.mrb[0].mxu0
  %v460 = vpop.f32.mrb[0].mxu0
  %v461 = vadd.f32 %v189, %v460
  %v462 = vpop.f32.mrb[0].mxu0
  %463 = vmatprep.mubr.bf16.mxu0 0
  %464 = vmatmul.mubr.bf16.gmra.mrb[0].mxu0 %v177
  %v465 = vpop.f32.mrb[0].mxu0
  %v466 = vadd.f32 %v189, %v465
  %v467 = vpop.f32.mrb[0].mxu0
  %v468 = vpop.f32.mrb[0].mxu0
  %v469 = vadd.f32 %v189, %v468
  %v470 = vpop.f32.mrb[0].mxu0
  %471 = vmatprep.mubr.bf16.mxu0 0
  %472 = vmatmul.mubr.bf16.gmra.mrb[0].mxu0 %v178
  %v473 = vpop.f32.mrb[0].mxu0
  %v474 = vadd.f32 %v189, %v473
  %v475 = vpop.f32.mrb[0].mxu0
  %v476 = vpop.f32.mrb[0].mxu0
  %v477 = vadd.f32 %v189, %v476
  %v478 = vpop.f32.mrb[0].mxu0
  %479 = vmatprep.mubr.bf16.mxu0 0
  %480 = vmatmul.mubr.bf16.gmra.mrb[0].mxu0 %v179
  %v481 = vpop.f32.mrb[0].mxu0
  %v482 = vadd.f32 %v189, %v481
  %v483 = vpop.f32.mrb[0].mxu0
  %v484 = vpop.f32.mrb[0].mxu0
  %v485 = vadd.f32 %v189, %v484
  %v486 = vpop.f32.mrb[0].mxu0
  %487 = vmatprep.mubr.bf16.mxu0 0
  %488 = vmatmul.mubr.bf16.gmra.mrb[0].mxu0 %v180
  %v489 = vpop.f32.mrb[0].mxu0
  %v490 = vadd.f32 %v189, %v489
  %v491 = vpop.f32.mrb[0].mxu0
  %v492 = vpop.f32.mrb[0].mxu0
  %v493 = vadd.f32 %v189, %v492
  %v494 = vpop.f32.mrb[0].mxu0
  %495 = vmatprep.mubr.bf16.mxu0 0
  %496 = vmatmul.mubr.bf16.gmra.mrb[0].mxu0 %v181
  %v497 = vpop.f32.mrb[0].mxu0
  %v498 = vadd.f32 %v189, %v497
  %v499 = vpop.f32.mrb[0].mxu0
  %v500 = vpop.f32.mrb[0].mxu0
  %v501 = vadd.f32 %v189, %v500
  %v502 = vpop.f32.mrb[0].mxu0
  %503 = vmatprep.mubr.bf16.mxu0 0
  %504 = vmatmul.mubr.bf16.gmra.mrb[0].mxu0 %v182
  %v505 = vpop.f32.mrb[0].mxu0
  %v506 = vadd.f32 %v189, %v505
  %v507 = vpop.f32.mrb[0].mxu0
  %v508 = vpop.f32.mrb[0].mxu0
  %v509 = vadd.f32 %v189, %v508
  %v510 = vpop.f32.mrb[0].mxu0
  %511 = vmatprep.mubr.bf16.mxu0 0
  %512 = vmatmul.mubr.bf16.gmra.mrb[0].mxu0 %v183
  %v513 = vpop.f32.mrb[0].mxu0
  %v514 = vadd.f32 %v189, %v513
  %v515 = vpop.f32.mrb[0].mxu0
  %v516 = vpop.f32.mrb[0].mxu0
  %v517 = vadd.f32 %v189, %v516
  %v518 = vpop.f32.mrb[0].mxu0
  %519 = vmatprep.mubr.bf16.mxu0 0
  %520 = vmatmul.mubr.bf16.gmra.mrb[0].mxu0 %v184
  %v521 = vpop.f32.mrb[0].mxu0
  %v522 = vadd.f32 %v189, %v521
  %v523 = vpop.f32.mrb[0].mxu0
  %v524 = vpop.f32.mrb[0].mxu0
  %v525 = vadd.f32 %v189, %v524
  %v526 = vpop.f32.mrb[0].mxu0
  %527 = vdwg.mxu0
  %v528 = vmax.f32 %v274, 0.0
  %v529 = vmax.f32 %v277, 0.0
  %v530 = vmax.f32 %v282, 0.0
  %v531 = vmax.f32 %v285, 0.0
  %v532 = vmax.f32 %v290, 0.0
  %v533 = vmax.f32 %v293, 0.0
  %v534 = vmax.f32 %v298, 0.0
  %v535 = vmax.f32 %v301, 0.0
  %v536 = vmax.f32 %v306, 0.0
  %v537 = vmax.f32 %v309, 0.0
  %v538 = vmax.f32 %v314, 0.0
  %v539 = vmax.f32 %v317, 0.0
  %v540 = vmax.f32 %v322, 0.0
  %v541 = vmax.f32 %v325, 0.0
  %v542 = vmax.f32 %v330, 0.0
  %v543 = vmax.f32 %v333, 0.0
  %v544 = vmax.f32 %v338, 0.0
  %v545 = vmax.f32 %v341, 0.0
  %v546 = vmax.f32 %v346, 0.0
  %v547 = vmax.f32 %v349, 0.0
  %v548 = vmax.f32 %v354, 0.0
  %v549 = vmax.f32 %v357, 0.0
  %v550 = vmax.f32 %v362, 0.0
  %v551 = vmax.f32 %v365, 0.0
  %v552 = vmax.f32 %v370, 0.0
  %v553 = vmax.f32 %v373, 0.0
  %v554 = vmax.f32 %v378, 0.0
  %v555 = vmax.f32 %v381, 0.0
  %v556 = vmax.f32 %v386, 0.0
  %v557 = vmax.f32 %v389, 0.0
  %v558 = vmax.f32 %v394, 0.0
  %v559 = vmax.f32 %v397, 0.0
  %v560 = vmax.f32 %v402, 0.0
  %v561 = vmax.f32 %v405, 0.0
  %v562 = vmax.f32 %v410, 0.0
  %v563 = vmax.f32 %v413, 0.0
  %v564 = vmax.f32 %v418, 0.0
  %v565 = vmax.f32 %v421, 0.0
  %v566 = vmax.f32 %v426, 0.0
  %v567 = vmax.f32 %v429, 0.0
  %v568 = vmax.f32 %v434, 0.0
  %v569 = vmax.f32 %v437, 0.0
  %v570 = vmax.f32 %v442, 0.0
  %v571 = vmax.f32 %v445, 0.0
  %v572 = vmax.f32 %v450, 0.0
  %v573 = vmax.f32 %v453, 0.0
  %v574 = vmax.f32 %v458, 0.0
  %v575 = vmax.f32 %v461, 0.0
  %v576 = vmax.f32 %v466, 0.0
  %v577 = vmax.f32 %v469, 0.0
  %v578 = vmax.f32 %v474, 0.0
  %v579 = vmax.f32 %v477, 0.0
  %v580 = vmax.f32 %v482, 0.0
  %v581 = vmax.f32 %v485, 0.0
  %v582 = vmax.f32 %v490, 0.0
  %v583 = vmax.f32 %v493, 0.0
  %v584 = vmax.f32 %v498, 0.0
  %v585 = vmax.f32 %v501, 0.0
  %v586 = vmax.f32 %v506, 0.0
  %v587 = vmax.f32 %v509, 0.0
  %v588 = vmax.f32 %v514, 0.0
  %v589 = vmax.f32 %v517, 0.0
  %v590 = vmax.f32 %v522, 0.0
  %v591 = vmax.f32 %v525, 0.0
  %v592 = vpack.c.bf16 %v529, %v528
  %v593 = vpack.c.bf16 %v531, %v530
  %v594 = vpack.c.bf16 %v533, %v532
  %v595 = vpack.c.bf16 %v535, %v534
  %v596 = vpack.c.bf16 %v537, %v536
  %v597 = vpack.c.bf16 %v539, %v538
  %v598 = vpack.c.bf16 %v541, %v540
  %v599 = vpack.c.bf16 %v543, %v542
  %v600 = vpack.c.bf16 %v545, %v544
  %v601 = vpack.c.bf16 %v547, %v546
  %v602 = vpack.c.bf16 %v549, %v548
  %v603 = vpack.c.bf16 %v551, %v550
  %v604 = vpack.c.bf16 %v553, %v552
  %v605 = vpack.c.bf16 %v555, %v554
  %v606 = vpack.c.bf16 %v557, %v556
  %v607 = vpack.c.bf16 %v559, %v558
  %v608 = vpack.c.bf16 %v561, %v560
  %v609 = vpack.c.bf16 %v563, %v562
  %v610 = vpack.c.bf16 %v565, %v564
  %v611 = vpack.c.bf16 %v567, %v566
  %v612 = vpack.c.bf16 %v569, %v568
  %v613 = vpack.c.bf16 %v571, %v570
  %v614 = vpack.c.bf16 %v573, %v572
  %v615 = vpack.c.bf16 %v575, %v574
  %v616 = vpack.c.bf16 %v577, %v576
  %v617 = vpack.c.bf16 %v579, %v578
  %v618 = vpack.c.bf16 %v581, %v580
  %v619 = vpack.c.bf16 %v583, %v582
  %v620 = vpack.c.bf16 %v585, %v584
  %v621 = vpack.c.bf16 %v587, %v586
  %v622 = vpack.c.bf16 %v589, %v588
  %v623 = vpack.c.bf16 %v591, %v590
  %v625 = vlaneseq
  %v626 = vshrl.u32 %v625, 7
  %v627 = vsub.s32 0, %v626
  %v628 = vrot.slane %v150, %v627
  %v646 = vunpack.c.l.b16 %v134
  %v647 = vunpack.c.l.b16 %v135
  %v648 = vunpack.c.l.b16 %v136
  %v649 = vunpack.c.l.b16 %v137
  %v650 = vunpack.c.l.b16 %v138
  %v651 = vunpack.c.l.b16 %v139
  %v652 = vunpack.c.l.b16 %v140
  %v653 = vunpack.c.l.b16 %v141
  %v654 = vunpack.c.l.b16 %v142
  %v655 = vunpack.c.l.b16 %v143
  %v656 = vunpack.c.l.b16 %v144
  %v657 = vunpack.c.l.b16 %v145
  %v658 = vunpack.c.l.b16 %v146
  %v659 = vunpack.c.l.b16 %v147
  %v660 = vunpack.c.l.b16 %v148
  %v661 = vunpack.c.l.b16 %v149
  %v662 = vpack.c.b16 %v647, %v646
  %v663 = vpack.c.b16 %v649, %v648
  %v664 = vpack.c.b16 %v651, %v650
  %v665 = vpack.c.b16 %v653, %v652
  %v666 = vpack.c.b16 %v655, %v654
  %v667 = vpack.c.b16 %v657, %v656
  %v668 = vpack.c.b16 %v659, %v658
  %v669 = vpack.c.b16 %v661, %v660
  %678 = vmatprep.subr.bf16.mxu0 0
  %679 = vmatpush1.bf16.msra.mxu0 %v662
  %680 = vmatprep.subr.bf16.mxu0 0
  %681 = vmatpush1.bf16.msra.mxu0 %v663
  %682 = vmatprep.subr.bf16.mxu0 0
  %683 = vmatpush1.bf16.msra.mxu0 %v664
  %684 = vmatprep.subr.bf16.mxu0 0
  %685 = vmatpush1.bf16.msra.mxu0 %v665
  %686 = vmatprep.subr.bf16.mxu0 0
  %687 = vmatpush1.bf16.msra.mxu0 %v666
  %688 = vmatprep.subr.bf16.mxu0 0
  %689 = vmatpush1.bf16.msra.mxu0 %v667
  %690 = vmatprep.subr.bf16.mxu0 0
  %691 = vmatpush1.bf16.msra.mxu0 %v668
  %692 = vmatprep.subr.bf16.mxu0 0
  %693 = vmatpush1.bf16.msra.mxu0 %v669
  %694 = vmatprep.subr.bf16.mxu0 0
  %695 = vmatpush1.bf16.msra.mxu0 0
  %696 = vmatprep.subr.bf16.mxu0 0
  %697 = vmatpush1.bf16.msra.mxu0 0
  %698 = vmatprep.subr.bf16.mxu0 0
  %699 = vmatpush1.bf16.msra.mxu0 0
  %700 = vmatprep.subr.bf16.mxu0 0
  %701 = vmatpush1.bf16.msra.mxu0 0
  %702 = vmatprep.subr.bf16.mxu0 0
  %703 = vmatpush1.bf16.msra.mxu0 0
  %704 = vmatprep.subr.bf16.mxu0 0
  %705 = vmatpush1.bf16.msra.mxu0 0
  %706 = vmatprep.subr.bf16.mxu0 0
  %707 = vmatpush1.bf16.msra.mxu0 0
  %708 = vmatprep.subr.bf16.mxu0 0
  %709 = vmatpush1.bf16.msra.mxu0 0
  %710 = vmatprep.mubr.bf16.mxu0 0
  %711 = vmatmul.mubr.bf16.gmra.mrb[0].mxu0 %v592
  %v712 = vpop.f32.mrb[0].mxu0
  %v713 = vadd.f32 %v628, %v712
  %v714 = vpop.f32.mrb[0].mxu0
  %v715 = vpop.f32.mrb[0].mxu0
  %v716 = vadd.f32 %v628, %v715
  %v717 = vpop.f32.mrb[0].mxu0
  %718 = vmatprep.mubr.bf16.mxu0 0
  %719 = vmatmul.mubr.bf16.gmra.mrb[0].mxu0 %v593
  %v720 = vpop.f32.mrb[0].mxu0
  %v721 = vadd.f32 %v628, %v720
  %v722 = vpop.f32.mrb[0].mxu0
  %v723 = vpop.f32.mrb[0].mxu0
  %v724 = vadd.f32 %v628, %v723
  %v725 = vpop.f32.mrb[0].mxu0
  %726 = vmatprep.mubr.bf16.mxu0 0
  %727 = vmatmul.mubr.bf16.gmra.mrb[0].mxu0 %v594
  %v728 = vpop.f32.mrb[0].mxu0
  %v729 = vadd.f32 %v628, %v728
  %v730 = vpop.f32.mrb[0].mxu0
  %v731 = vpop.f32.mrb[0].mxu0
  %v732 = vadd.f32 %v628, %v731
  %v733 = vpop.f32.mrb[0].mxu0
  %734 = vmatprep.mubr.bf16.mxu0 0
  %735 = vmatmul.mubr.bf16.gmra.mrb[0].mxu0 %v595
  %v736 = vpop.f32.mrb[0].mxu0
  %v737 = vadd.f32 %v628, %v736
  %v738 = vpop.f32.mrb[0].mxu0
  %v739 = vpop.f32.mrb[0].mxu0
  %v740 = vadd.f32 %v628, %v739
  %v741 = vpop.f32.mrb[0].mxu0
  %742 = vmatprep.mubr.bf16.mxu0 0
  %743 = vmatmul.mubr.bf16.gmra.mrb[0].mxu0 %v596
  %v744 = vpop.f32.mrb[0].mxu0
  %v745 = vadd.f32 %v628, %v744
  %v746 = vpop.f32.mrb[0].mxu0
  %v747 = vpop.f32.mrb[0].mxu0
  %v748 = vadd.f32 %v628, %v747
  %v749 = vpop.f32.mrb[0].mxu0
  %750 = vmatprep.mubr.bf16.mxu0 0
  %751 = vmatmul.mubr.bf16.gmra.mrb[0].mxu0 %v597
  %v752 = vpop.f32.mrb[0].mxu0
  %v753 = vadd.f32 %v628, %v752
  %v754 = vpop.f32.mrb[0].mxu0
  %v755 = vpop.f32.mrb[0].mxu0
  %v756 = vadd.f32 %v628, %v755
  %v757 = vpop.f32.mrb[0].mxu0
  %758 = vmatprep.mubr.bf16.mxu0 0
  %759 = vmatmul.mubr.bf16.gmra.mrb[0].mxu0 %v598
  %v760 = vpop.f32.mrb[0].mxu0
  %v761 = vadd.f32 %v628, %v760
  %v762 = vpop.f32.mrb[0].mxu0
  %v763 = vpop.f32.mrb[0].mxu0
  %v764 = vadd.f32 %v628, %v763
  %v765 = vpop.f32.mrb[0].mxu0
  %766 = vmatprep.mubr.bf16.mxu0 0
  %767 = vmatmul.mubr.bf16.gmra.mrb[0].mxu0 %v599
  %v768 = vpop.f32.mrb[0].mxu0
  %v769 = vadd.f32 %v628, %v768
  %v770 = vpop.f32.mrb[0].mxu0
  %v771 = vpop.f32.mrb[0].mxu0
  %v772 = vadd.f32 %v628, %v771
  %v773 = vpop.f32.mrb[0].mxu0
  %774 = vmatprep.mubr.bf16.mxu0 0
  %775 = vmatmul.mubr.bf16.gmra.mrb[0].mxu0 %v600
  %v776 = vpop.f32.mrb[0].mxu0
  %v777 = vadd.f32 %v628, %v776
  %v778 = vpop.f32.mrb[0].mxu0
  %v779 = vpop.f32.mrb[0].mxu0
  %v780 = vadd.f32 %v628, %v779
  %v781 = vpop.f32.mrb[0].mxu0
  %782 = vmatprep.mubr.bf16.mxu0 0
  %783 = vmatmul.mubr.bf16.gmra.mrb[0].mxu0 %v601
  %v784 = vpop.f32.mrb[0].mxu0
  %v785 = vadd.f32 %v628, %v784
  %v786 = vpop.f32.mrb[0].mxu0
  %v787 = vpop.f32.mrb[0].mxu0
  %v788 = vadd.f32 %v628, %v787
  %v789 = vpop.f32.mrb[0].mxu0
  %790 = vmatprep.mubr.bf16.mxu0 0
  %791 = vmatmul.mubr.bf16.gmra.mrb[0].mxu0 %v602
  %v792 = vpop.f32.mrb[0].mxu0
  %v793 = vadd.f32 %v628, %v792
  %v794 = vpop.f32.mrb[0].mxu0
  %v795 = vpop.f32.mrb[0].mxu0
  %v796 = vadd.f32 %v628, %v795
  %v797 = vpop.f32.mrb[0].mxu0
  %798 = vmatprep.mubr.bf16.mxu0 0
  %799 = vmatmul.mubr.bf16.gmra.mrb[0].mxu0 %v603
  %v800 = vpop.f32.mrb[0].mxu0
  %v801 = vadd.f32 %v628, %v800
  %v802 = vpop.f32.mrb[0].mxu0
  %v803 = vpop.f32.mrb[0].mxu0
  %v804 = vadd.f32 %v628, %v803
  %v805 = vpop.f32.mrb[0].mxu0
  %806 = vmatprep.mubr.bf16.mxu0 0
  %807 = vmatmul.mubr.bf16.gmra.mrb[0].mxu0 %v604
  %v808 = vpop.f32.mrb[0].mxu0
  %v809 = vadd.f32 %v628, %v808
  %v810 = vpop.f32.mrb[0].mxu0
  %v811 = vpop.f32.mrb[0].mxu0
  %v812 = vadd.f32 %v628, %v811
  %v813 = vpop.f32.mrb[0].mxu0
  %814 = vmatprep.mubr.bf16.mxu0 0
  %815 = vmatmul.mubr.bf16.gmra.mrb[0].mxu0 %v605
  %v816 = vpop.f32.mrb[0].mxu0
  %v817 = vadd.f32 %v628, %v816
  %v818 = vpop.f32.mrb[0].mxu0
  %v819 = vpop.f32.mrb[0].mxu0
  %v820 = vadd.f32 %v628, %v819
  %v821 = vpop.f32.mrb[0].mxu0
  %822 = vmatprep.mubr.bf16.mxu0 0
  %823 = vmatmul.mubr.bf16.gmra.mrb[0].mxu0 %v606
  %v824 = vpop.f32.mrb[0].mxu0
  %v825 = vadd.f32 %v628, %v824
  %v826 = vpop.f32.mrb[0].mxu0
  %v827 = vpop.f32.mrb[0].mxu0
  %v828 = vadd.f32 %v628, %v827
  %v829 = vpop.f32.mrb[0].mxu0
  %830 = vmatprep.mubr.bf16.mxu0 0
  %831 = vmatmul.mubr.bf16.gmra.mrb[0].mxu0 %v607
  %v832 = vpop.f32.mrb[0].mxu0
  %v833 = vadd.f32 %v628, %v832
  %v834 = vpop.f32.mrb[0].mxu0
  %v835 = vpop.f32.mrb[0].mxu0
  %v836 = vadd.f32 %v628, %v835
  %v837 = vpop.f32.mrb[0].mxu0
  %838 = vmatprep.mubr.bf16.mxu0 0
  %839 = vmatmul.mubr.bf16.gmra.mrb[0].mxu0 %v608
  %v840 = vpop.f32.mrb[0].mxu0
  %v841 = vadd.f32 %v628, %v840
  %v842 = vpop.f32.mrb[0].mxu0
  %v843 = vpop.f32.mrb[0].mxu0
  %v844 = vadd.f32 %v628, %v843
  %v845 = vpop.f32.mrb[0].mxu0
  %846 = vmatprep.mubr.bf16.mxu0 0
  %847 = vmatmul.mubr.bf16.gmra.mrb[0].mxu0 %v609
  %v848 = vpop.f32.mrb[0].mxu0
  %v849 = vadd.f32 %v628, %v848
  %v850 = vpop.f32.mrb[0].mxu0
  %v851 = vpop.f32.mrb[0].mxu0
  %v852 = vadd.f32 %v628, %v851
  %v853 = vpop.f32.mrb[0].mxu0
  %854 = vmatprep.mubr.bf16.mxu0 0
  %855 = vmatmul.mubr.bf16.gmra.mrb[0].mxu0 %v610
  %v856 = vpop.f32.mrb[0].mxu0
  %v857 = vadd.f32 %v628, %v856
  %v858 = vpop.f32.mrb[0].mxu0
  %v859 = vpop.f32.mrb[0].mxu0
  %v860 = vadd.f32 %v628, %v859
  %v861 = vpop.f32.mrb[0].mxu0
  %862 = vmatprep.mubr.bf16.mxu0 0
  %863 = vmatmul.mubr.bf16.gmra.mrb[0].mxu0 %v611
  %v864 = vpop.f32.mrb[0].mxu0
  %v865 = vadd.f32 %v628, %v864
  %v866 = vpop.f32.mrb[0].mxu0
  %v867 = vpop.f32.mrb[0].mxu0
  %v868 = vadd.f32 %v628, %v867
  %v869 = vpop.f32.mrb[0].mxu0
  %870 = vmatprep.mubr.bf16.mxu0 0
  %871 = vmatmul.mubr.bf16.gmra.mrb[0].mxu0 %v612
  %v872 = vpop.f32.mrb[0].mxu0
  %v873 = vadd.f32 %v628, %v872
  %v874 = vpop.f32.mrb[0].mxu0
  %v875 = vpop.f32.mrb[0].mxu0
  %v876 = vadd.f32 %v628, %v875
  %v877 = vpop.f32.mrb[0].mxu0
  %878 = vmatprep.mubr.bf16.mxu0 0
  %879 = vmatmul.mubr.bf16.gmra.mrb[0].mxu0 %v613
  %v880 = vpop.f32.mrb[0].mxu0
  %v881 = vadd.f32 %v628, %v880
  %v882 = vpop.f32.mrb[0].mxu0
  %v883 = vpop.f32.mrb[0].mxu0
  %v884 = vadd.f32 %v628, %v883
  %v885 = vpop.f32.mrb[0].mxu0
  %886 = vmatprep.mubr.bf16.mxu0 0
  %887 = vmatmul.mubr.bf16.gmra.mrb[0].mxu0 %v614
  %v888 = vpop.f32.mrb[0].mxu0
  %v889 = vadd.f32 %v628, %v888
  %v890 = vpop.f32.mrb[0].mxu0
  %v891 = vpop.f32.mrb[0].mxu0
  %v892 = vadd.f32 %v628, %v891
  %v893 = vpop.f32.mrb[0].mxu0
  %894 = vmatprep.mubr.bf16.mxu0 0
  %895 = vmatmul.mubr.bf16.gmra.mrb[0].mxu0 %v615
  %v896 = vpop.f32.mrb[0].mxu0
  %v897 = vadd.f32 %v628, %v896
  %v898 = vpop.f32.mrb[0].mxu0
  %v899 = vpop.f32.mrb[0].mxu0
  %v900 = vadd.f32 %v628, %v899
  %v901 = vpop.f32.mrb[0].mxu0
  %902 = vmatprep.mubr.bf16.mxu0 0
  %903 = vmatmul.mubr.bf16.gmra.mrb[0].mxu0 %v616
  %v904 = vpop.f32.mrb[0].mxu0
  %v905 = vadd.f32 %v628, %v904
  %v906 = vpop.f32.mrb[0].mxu0
  %v907 = vpop.f32.mrb[0].mxu0
  %v908 = vadd.f32 %v628, %v907
  %v909 = vpop.f32.mrb[0].mxu0
  %910 = vmatprep.mubr.bf16.mxu0 0
  %911 = vmatmul.mubr.bf16.gmra.mrb[0].mxu0 %v617
  %v912 = vpop.f32.mrb[0].mxu0
  %v913 = vadd.f32 %v628, %v912
  %v914 = vpop.f32.mrb[0].mxu0
  %v915 = vpop.f32.mrb[0].mxu0
  %v916 = vadd.f32 %v628, %v915
  %v917 = vpop.f32.mrb[0].mxu0
  %918 = vmatprep.mubr.bf16.mxu0 0
  %919 = vmatmul.mubr.bf16.gmra.mrb[0].mxu0 %v618
  %v920 = vpop.f32.mrb[0].mxu0
  %v921 = vadd.f32 %v628, %v920
  %v922 = vpop.f32.mrb[0].mxu0
  %v923 = vpop.f32.mrb[0].mxu0
  %v924 = vadd.f32 %v628, %v923
  %v925 = vpop.f32.mrb[0].mxu0
  %926 = vmatprep.mubr.bf16.mxu0 0
  %927 = vmatmul.mubr.bf16.gmra.mrb[0].mxu0 %v619
  %v928 = vpop.f32.mrb[0].mxu0
  %v929 = vadd.f32 %v628, %v928
  %v930 = vpop.f32.mrb[0].mxu0
  %v931 = vpop.f32.mrb[0].mxu0
  %v932 = vadd.f32 %v628, %v931
  %v933 = vpop.f32.mrb[0].mxu0
  %934 = vmatprep.mubr.bf16.mxu0 0
  %935 = vmatmul.mubr.bf16.gmra.mrb[0].mxu0 %v620
  %v936 = vpop.f32.mrb[0].mxu0
  %v937 = vadd.f32 %v628, %v936
  %v938 = vpop.f32.mrb[0].mxu0
  %v939 = vpop.f32.mrb[0].mxu0
  %v940 = vadd.f32 %v628, %v939
  %v941 = vpop.f32.mrb[0].mxu0
  %942 = vmatprep.mubr.bf16.mxu0 0
  %943 = vmatmul.mubr.bf16.gmra.mrb[0].mxu0 %v621
  %v944 = vpop.f32.mrb[0].mxu0
  %v945 = vadd.f32 %v628, %v944
  %v946 = vpop.f32.mrb[0].mxu0
  %v947 = vpop.f32.mrb[0].mxu0
  %v948 = vadd.f32 %v628, %v947
  %v949 = vpop.f32.mrb[0].mxu0
  %950 = vmatprep.mubr.bf16.mxu0 0
  %951 = vmatmul.mubr.bf16.gmra.mrb[0].mxu0 %v622
  %v952 = vpop.f32.mrb[0].mxu0
  %v953 = vadd.f32 %v628, %v952
  %v954 = vpop.f32.mrb[0].mxu0
  %v955 = vpop.f32.mrb[0].mxu0
  %v956 = vadd.f32 %v628, %v955
  %v957 = vpop.f32.mrb[0].mxu0
  %958 = vmatprep.mubr.bf16.mxu0 0
  %959 = vmatmul.mubr.bf16.gmra.mrb[0].mxu0 %v623
  %v960 = vpop.f32.mrb[0].mxu0
  %v961 = vadd.f32 %v628, %v960
  %v962 = vpop.f32.mrb[0].mxu0
  %v963 = vpop.f32.mrb[0].mxu0
  %v964 = vadd.f32 %v628, %v963
  %v965 = vpop.f32.mrb[0].mxu0
  %966 = vdwg.mxu0
  %v967 = vlaneseq
  %v968 = vshrl.u32 %v967, 7
  %v969 = vadd.s32 %v968, 8
  %v970 = vadd.s32 %v968, 16
  %v971 = vadd.s32 %v968, 24
  %v972 = vadd.s32 %v968, 32
  %v973 = vadd.s32 %v968, 40
  %v974 = vadd.s32 %v968, 48
  %v975 = vadd.s32 %v968, 56
  %v976 = vadd.s32 %v968, 64
  %v977 = vadd.s32 %v968, 72
  %v978 = vadd.s32 %v968, 80
  %v979 = vadd.s32 %v968, 88
  %v980 = vadd.s32 %v968, 96
  %v981 = vadd.s32 %v968, 104
  %v982 = vadd.s32 %v968, 112
  %v983 = vadd.s32 %v968, 120
  %v984 = vadd.s32 %v968, 128
  %v985 = vadd.s32 %v968, 136
  %v986 = vadd.s32 %v968, 144
  %v987 = vadd.s32 %v968, 152
  %v988 = vadd.s32 %v968, 160
  %v989 = vadd.s32 %v968, 168
  %v990 = vadd.s32 %v968, 176
  %v991 = vadd.s32 %v968, 184
  %v992 = vadd.s32 %v968, 192
  %v993 = vadd.s32 %v968, 200
  %v994 = vadd.s32 %v968, 208
  %v995 = vadd.s32 %v968, 216
  %v996 = vadd.s32 %v968, 224
  %v997 = vadd.s32 %v968, 232
  %v998 = vadd.s32 %v968, 240
  %v999 = vadd.s32 %v968, 248
  %v1000 = vadd.s32 %v968, 256
  %v1001 = vadd.s32 %v968, 264
  %v1002 = vadd.s32 %v968, 272
  %v1003 = vadd.s32 %v968, 280
  %v1004 = vadd.s32 %v968, 288
  %v1005 = vadd.s32 %v968, 296
  %v1006 = vadd.s32 %v968, 304
  %v1007 = vadd.s32 %v968, 312
  %v1008 = vadd.s32 %v968, 320
  %v1009 = vadd.s32 %v968, 328
  %v1010 = vadd.s32 %v968, 336
  %v1011 = vadd.s32 %v968, 344
  %v1012 = vadd.s32 %v968, 352
  %v1013 = vadd.s32 %v968, 360
  %v1014 = vadd.s32 %v968, 368
  %v1015 = vadd.s32 %v968, 376
  %v1016 = vadd.s32 %v968, 384
  %v1017 = vadd.s32 %v968, 392
  %v1018 = vadd.s32 %v968, 400
  %v1019 = vadd.s32 %v968, 408
  %v1020 = vadd.s32 %v968, 416
  %v1021 = vadd.s32 %v968, 424
  %v1022 = vadd.s32 %v968, 432
  %v1023 = vadd.s32 %v968, 440
  %v1024 = vadd.s32 %v968, 448
  %v1025 = vadd.s32 %v968, 456
  %v1026 = vadd.s32 %v968, 464
  %v1027 = vadd.s32 %v968, 472
  %v1028 = vadd.s32 %v968, 480
  %v1029 = vadd.s32 %v968, 488
  %v1030 = vadd.s32 %v968, 496
  %v1031 = vadd.s32 %v968, 504
  %vm1032 = vcmp.lt.s32.totalorder %v968, 16
  %vm1033 = vcmp.lt.s32.totalorder %v969, 16
  %vm1034 = vcmp.lt.s32.totalorder %v970, 16
  %vm1035 = vcmp.lt.s32.totalorder %v971, 16
  %vm1036 = vcmp.lt.s32.totalorder %v972, 16
  %vm1037 = vcmp.lt.s32.totalorder %v973, 16
  %vm1038 = vcmp.lt.s32.totalorder %v974, 16
  %vm1039 = vcmp.lt.s32.totalorder %v975, 16
  %vm1040 = vcmp.lt.s32.totalorder %v976, 16
  %vm1041 = vcmp.lt.s32.totalorder %v977, 16
  %vm1042 = vcmp.lt.s32.totalorder %v978, 16
  %vm1043 = vcmp.lt.s32.totalorder %v979, 16
  %vm1044 = vcmp.lt.s32.totalorder %v980, 16
  %vm1045 = vcmp.lt.s32.totalorder %v981, 16
  %vm1046 = vcmp.lt.s32.totalorder %v982, 16
  %vm1047 = vcmp.lt.s32.totalorder %v983, 16
  %vm1048 = vcmp.lt.s32.totalorder %v984, 16
  %vm1049 = vcmp.lt.s32.totalorder %v985, 16
  %vm1050 = vcmp.lt.s32.totalorder %v986, 16
  %vm1051 = vcmp.lt.s32.totalorder %v987, 16
  %vm1052 = vcmp.lt.s32.totalorder %v988, 16
  %vm1053 = vcmp.lt.s32.totalorder %v989, 16
  %vm1054 = vcmp.lt.s32.totalorder %v990, 16
  %vm1055 = vcmp.lt.s32.totalorder %v991, 16
  %vm1056 = vcmp.lt.s32.totalorder %v992, 16
  %vm1057 = vcmp.lt.s32.totalorder %v993, 16
  %vm1058 = vcmp.lt.s32.totalorder %v994, 16
  %vm1059 = vcmp.lt.s32.totalorder %v995, 16
  %vm1060 = vcmp.lt.s32.totalorder %v996, 16
  %vm1061 = vcmp.lt.s32.totalorder %v997, 16
  %vm1062 = vcmp.lt.s32.totalorder %v998, 16
  %vm1063 = vcmp.lt.s32.totalorder %v999, 16
  %vm1064 = vcmp.lt.s32.totalorder %v1000, 16
  %vm1065 = vcmp.lt.s32.totalorder %v1001, 16
  %vm1066 = vcmp.lt.s32.totalorder %v1002, 16
  %vm1067 = vcmp.lt.s32.totalorder %v1003, 16
  %vm1068 = vcmp.lt.s32.totalorder %v1004, 16
  %vm1069 = vcmp.lt.s32.totalorder %v1005, 16
  %vm1070 = vcmp.lt.s32.totalorder %v1006, 16
  %vm1071 = vcmp.lt.s32.totalorder %v1007, 16
  %vm1072 = vcmp.lt.s32.totalorder %v1008, 16
  %vm1073 = vcmp.lt.s32.totalorder %v1009, 16
  %vm1074 = vcmp.lt.s32.totalorder %v1010, 16
  %vm1075 = vcmp.lt.s32.totalorder %v1011, 16
  %vm1076 = vcmp.lt.s32.totalorder %v1012, 16
  %vm1077 = vcmp.lt.s32.totalorder %v1013, 16
  %vm1078 = vcmp.lt.s32.totalorder %v1014, 16
  %vm1079 = vcmp.lt.s32.totalorder %v1015, 16
  %vm1080 = vcmp.lt.s32.totalorder %v1016, 16
  %vm1081 = vcmp.lt.s32.totalorder %v1017, 16
  %vm1082 = vcmp.lt.s32.totalorder %v1018, 16
  %vm1083 = vcmp.lt.s32.totalorder %v1019, 16
  %vm1084 = vcmp.lt.s32.totalorder %v1020, 16
  %vm1085 = vcmp.lt.s32.totalorder %v1021, 16
  %vm1086 = vcmp.lt.s32.totalorder %v1022, 16
  %vm1087 = vcmp.lt.s32.totalorder %v1023, 16
  %vm1088 = vcmp.lt.s32.totalorder %v1024, 16
  %vm1089 = vcmp.lt.s32.totalorder %v1025, 16
  %vm1090 = vcmp.lt.s32.totalorder %v1026, 16
  %vm1091 = vcmp.lt.s32.totalorder %v1027, 16
  %vm1092 = vcmp.lt.s32.totalorder %v1028, 16
  %vm1093 = vcmp.lt.s32.totalorder %v1029, 16
  %vm1094 = vcmp.lt.s32.totalorder %v1030, 16
  %vm1095 = vcmp.lt.s32.totalorder %v1031, 16
  %v1096 = vsel %vm1032, 1, 0
  %v1097 = vsel %vm1033, 1, 0
  %v1098 = vsel %vm1034, 1, 0
  %v1099 = vsel %vm1035, 1, 0
  %v1100 = vsel %vm1036, 1, 0
  %v1101 = vsel %vm1037, 1, 0
  %v1102 = vsel %vm1038, 1, 0
  %v1103 = vsel %vm1039, 1, 0
  %v1104 = vsel %vm1040, 1, 0
  %v1105 = vsel %vm1041, 1, 0
  %v1106 = vsel %vm1042, 1, 0
  %v1107 = vsel %vm1043, 1, 0
  %v1108 = vsel %vm1044, 1, 0
  %v1109 = vsel %vm1045, 1, 0
  %v1110 = vsel %vm1046, 1, 0
  %v1111 = vsel %vm1047, 1, 0
  %v1112 = vsel %vm1048, 1, 0
  %v1113 = vsel %vm1049, 1, 0
  %v1114 = vsel %vm1050, 1, 0
  %v1115 = vsel %vm1051, 1, 0
  %v1116 = vsel %vm1052, 1, 0
  %v1117 = vsel %vm1053, 1, 0
  %v1118 = vsel %vm1054, 1, 0
  %v1119 = vsel %vm1055, 1, 0
  %v1120 = vsel %vm1056, 1, 0
  %v1121 = vsel %vm1057, 1, 0
  %v1122 = vsel %vm1058, 1, 0
  %v1123 = vsel %vm1059, 1, 0
  %v1124 = vsel %vm1060, 1, 0
  %v1125 = vsel %vm1061, 1, 0
  %v1126 = vsel %vm1062, 1, 0
  %v1127 = vsel %vm1063, 1, 0
  %v1128 = vsel %vm1064, 1, 0
  %v1129 = vsel %vm1065, 1, 0
  %v1130 = vsel %vm1066, 1, 0
  %v1131 = vsel %vm1067, 1, 0
  %v1132 = vsel %vm1068, 1, 0
  %v1133 = vsel %vm1069, 1, 0
  %v1134 = vsel %vm1070, 1, 0
  %v1135 = vsel %vm1071, 1, 0
  %v1136 = vsel %vm1072, 1, 0
  %v1137 = vsel %vm1073, 1, 0
  %v1138 = vsel %vm1074, 1, 0
  %v1139 = vsel %vm1075, 1, 0
  %v1140 = vsel %vm1076, 1, 0
  %v1141 = vsel %vm1077, 1, 0
  %v1142 = vsel %vm1078, 1, 0
  %v1143 = vsel %vm1079, 1, 0
  %v1144 = vsel %vm1080, 1, 0
  %v1145 = vsel %vm1081, 1, 0
  %v1146 = vsel %vm1082, 1, 0
  %v1147 = vsel %vm1083, 1, 0
  %v1148 = vsel %vm1084, 1, 0
  %v1149 = vsel %vm1085, 1, 0
  %v1150 = vsel %vm1086, 1, 0
  %v1151 = vsel %vm1087, 1, 0
  %v1152 = vsel %vm1088, 1, 0
  %v1153 = vsel %vm1089, 1, 0
  %v1154 = vsel %vm1090, 1, 0
  %v1155 = vsel %vm1091, 1, 0
  %v1156 = vsel %vm1092, 1, 0
  %v1157 = vsel %vm1093, 1, 0
  %v1158 = vsel %vm1094, 1, 0
  %v1159 = vsel %vm1095, 1, 0
  %v1160 = vcvt.s32.f32 %v1096
  %v1161 = vcvt.s32.f32 %v1097
  %v1162 = vcvt.s32.f32 %v1098
  %v1163 = vcvt.s32.f32 %v1099
  %v1164 = vcvt.s32.f32 %v1100
  %v1165 = vcvt.s32.f32 %v1101
  %v1166 = vcvt.s32.f32 %v1102
  %v1167 = vcvt.s32.f32 %v1103
  %v1168 = vcvt.s32.f32 %v1104
  %v1169 = vcvt.s32.f32 %v1105
  %v1170 = vcvt.s32.f32 %v1106
  %v1171 = vcvt.s32.f32 %v1107
  %v1172 = vcvt.s32.f32 %v1108
  %v1173 = vcvt.s32.f32 %v1109
  %v1174 = vcvt.s32.f32 %v1110
  %v1175 = vcvt.s32.f32 %v1111
  %v1176 = vcvt.s32.f32 %v1112
  %v1177 = vcvt.s32.f32 %v1113
  %v1178 = vcvt.s32.f32 %v1114
  %v1179 = vcvt.s32.f32 %v1115
  %v1180 = vcvt.s32.f32 %v1116
  %v1181 = vcvt.s32.f32 %v1117
  %v1182 = vcvt.s32.f32 %v1118
  %v1183 = vcvt.s32.f32 %v1119
  %v1184 = vcvt.s32.f32 %v1120
  %v1185 = vcvt.s32.f32 %v1121
  %v1186 = vcvt.s32.f32 %v1122
  %v1187 = vcvt.s32.f32 %v1123
  %v1188 = vcvt.s32.f32 %v1124
  %v1189 = vcvt.s32.f32 %v1125
  %v1190 = vcvt.s32.f32 %v1126
  %v1191 = vcvt.s32.f32 %v1127
  %v1192 = vcvt.s32.f32 %v1128
  %v1193 = vcvt.s32.f32 %v1129
  %v1194 = vcvt.s32.f32 %v1130
  %v1195 = vcvt.s32.f32 %v1131
  %v1196 = vcvt.s32.f32 %v1132
  %v1197 = vcvt.s32.f32 %v1133
  %v1198 = vcvt.s32.f32 %v1134
  %v1199 = vcvt.s32.f32 %v1135
  %v1200 = vcvt.s32.f32 %v1136
  %v1201 = vcvt.s32.f32 %v1137
  %v1202 = vcvt.s32.f32 %v1138
  %v1203 = vcvt.s32.f32 %v1139
  %v1204 = vcvt.s32.f32 %v1140
  %v1205 = vcvt.s32.f32 %v1141
  %v1206 = vcvt.s32.f32 %v1142
  %v1207 = vcvt.s32.f32 %v1143
  %v1208 = vcvt.s32.f32 %v1144
  %v1209 = vcvt.s32.f32 %v1145
  %v1210 = vcvt.s32.f32 %v1146
  %v1211 = vcvt.s32.f32 %v1147
  %v1212 = vcvt.s32.f32 %v1148
  %v1213 = vcvt.s32.f32 %v1149
  %v1214 = vcvt.s32.f32 %v1150
  %v1215 = vcvt.s32.f32 %v1151
  %v1216 = vcvt.s32.f32 %v1152
  %v1217 = vcvt.s32.f32 %v1153
  %v1218 = vcvt.s32.f32 %v1154
  %v1219 = vcvt.s32.f32 %v1155
  %v1220 = vcvt.s32.f32 %v1156
  %v1221 = vcvt.s32.f32 %v1157
  %v1222 = vcvt.s32.f32 %v1158
  %v1223 = vcvt.s32.f32 %v1159
  %v1224 = vmul.f32 %v713, %v1160
  %v1225 = vmul.f32 %v716, %v1161
  %v1226 = vmul.f32 %v721, %v1162
  %v1227 = vmul.f32 %v724, %v1163
  %v1228 = vmul.f32 %v729, %v1164
  %v1229 = vmul.f32 %v732, %v1165
  %v1230 = vmul.f32 %v737, %v1166
  %v1231 = vmul.f32 %v740, %v1167
  %v1232 = vmul.f32 %v745, %v1168
  %v1233 = vmul.f32 %v748, %v1169
  %v1234 = vmul.f32 %v753, %v1170
  %v1235 = vmul.f32 %v756, %v1171
  %v1236 = vmul.f32 %v761, %v1172
  %v1237 = vmul.f32 %v764, %v1173
  %v1238 = vmul.f32 %v769, %v1174
  %v1239 = vmul.f32 %v772, %v1175
  %v1240 = vmul.f32 %v777, %v1176
  %v1241 = vmul.f32 %v780, %v1177
  %v1242 = vmul.f32 %v785, %v1178
  %v1243 = vmul.f32 %v788, %v1179
  %v1244 = vmul.f32 %v793, %v1180
  %v1245 = vmul.f32 %v796, %v1181
  %v1246 = vmul.f32 %v801, %v1182
  %v1247 = vmul.f32 %v804, %v1183
  %v1248 = vmul.f32 %v809, %v1184
  %v1249 = vmul.f32 %v812, %v1185
  %v1250 = vmul.f32 %v817, %v1186
  %v1251 = vmul.f32 %v820, %v1187
  %v1252 = vmul.f32 %v825, %v1188
  %v1253 = vmul.f32 %v828, %v1189
  %v1254 = vmul.f32 %v833, %v1190
  %v1255 = vmul.f32 %v836, %v1191
  %v1256 = vmul.f32 %v841, %v1192
  %v1257 = vmul.f32 %v844, %v1193
  %v1258 = vmul.f32 %v849, %v1194
  %v1259 = vmul.f32 %v852, %v1195
  %v1260 = vmul.f32 %v857, %v1196
  %v1261 = vmul.f32 %v860, %v1197
  %v1262 = vmul.f32 %v865, %v1198
  %v1263 = vmul.f32 %v868, %v1199
  %v1264 = vmul.f32 %v873, %v1200
  %v1265 = vmul.f32 %v876, %v1201
  %v1266 = vmul.f32 %v881, %v1202
  %v1267 = vmul.f32 %v884, %v1203
  %v1268 = vmul.f32 %v889, %v1204
  %v1269 = vmul.f32 %v892, %v1205
  %v1270 = vmul.f32 %v897, %v1206
  %v1271 = vmul.f32 %v900, %v1207
  %v1272 = vmul.f32 %v905, %v1208
  %v1273 = vmul.f32 %v908, %v1209
  %v1274 = vmul.f32 %v913, %v1210
  %v1275 = vmul.f32 %v916, %v1211
  %v1276 = vmul.f32 %v921, %v1212
  %v1277 = vmul.f32 %v924, %v1213
  %v1278 = vmul.f32 %v929, %v1214
  %v1279 = vmul.f32 %v932, %v1215
  %v1280 = vmul.f32 %v937, %v1216
  %v1281 = vmul.f32 %v940, %v1217
  %v1282 = vmul.f32 %v945, %v1218
  %v1283 = vmul.f32 %v948, %v1219
  %v1284 = vmul.f32 %v953, %v1220
  %v1285 = vmul.f32 %v956, %v1221
  %v1286 = vmul.f32 %v961, %v1222
  %v1287 = vmul.f32 %v964, %v1223
  %v1288 = vadd.f32 %v1224, %v1225
  %v1289 = vadd.f32 %v1288, %v1226
  %v1290 = vadd.f32 %v1289, %v1227
  %v1291 = vadd.f32 %v1290, %v1228
  %v1292 = vadd.f32 %v1291, %v1229
  %v1293 = vadd.f32 %v1292, %v1230
  %v1294 = vadd.f32 %v1293, %v1231
  %v1295 = vadd.f32 %v1294, %v1232
  %v1296 = vadd.f32 %v1295, %v1233
  %v1297 = vadd.f32 %v1296, %v1234
  %v1298 = vadd.f32 %v1297, %v1235
  %v1299 = vadd.f32 %v1298, %v1236
  %v1300 = vadd.f32 %v1299, %v1237
  %v1301 = vadd.f32 %v1300, %v1238
  %v1302 = vadd.f32 %v1301, %v1239
  %v1303 = vadd.f32 %v1302, %v1240
  %v1304 = vadd.f32 %v1303, %v1241
  %v1305 = vadd.f32 %v1304, %v1242
  %v1306 = vadd.f32 %v1305, %v1243
  %v1307 = vadd.f32 %v1306, %v1244
  %v1308 = vadd.f32 %v1307, %v1245
  %v1309 = vadd.f32 %v1308, %v1246
  %v1310 = vadd.f32 %v1309, %v1247
  %v1311 = vadd.f32 %v1310, %v1248
  %v1312 = vadd.f32 %v1311, %v1249
  %v1313 = vadd.f32 %v1312, %v1250
  %v1314 = vadd.f32 %v1313, %v1251
  %v1315 = vadd.f32 %v1314, %v1252
  %v1316 = vadd.f32 %v1315, %v1253
  %v1317 = vadd.f32 %v1316, %v1254
  %v1318 = vadd.f32 %v1317, %v1255
  %v1319 = vadd.f32 %v1318, %v1256
  %v1320 = vadd.f32 %v1319, %v1257
  %v1321 = vadd.f32 %v1320, %v1258
  %v1322 = vadd.f32 %v1321, %v1259
  %v1323 = vadd.f32 %v1322, %v1260
  %v1324 = vadd.f32 %v1323, %v1261
  %v1325 = vadd.f32 %v1324, %v1262
  %v1326 = vadd.f32 %v1325, %v1263
  %v1327 = vadd.f32 %v1326, %v1264
  %v1328 = vadd.f32 %v1327, %v1265
  %v1329 = vadd.f32 %v1328, %v1266
  %v1330 = vadd.f32 %v1329, %v1267
  %v1331 = vadd.f32 %v1330, %v1268
  %v1332 = vadd.f32 %v1331, %v1269
  %v1333 = vadd.f32 %v1332, %v1270
  %v1334 = vadd.f32 %v1333, %v1271
  %v1335 = vadd.f32 %v1334, %v1272
  %v1336 = vadd.f32 %v1335, %v1273
  %v1337 = vadd.f32 %v1336, %v1274
  %v1338 = vadd.f32 %v1337, %v1275
  %v1339 = vadd.f32 %v1338, %v1276
  %v1340 = vadd.f32 %v1339, %v1277
  %v1341 = vadd.f32 %v1340, %v1278
  %v1342 = vadd.f32 %v1341, %v1279
  %v1343 = vadd.f32 %v1342, %v1280
  %v1344 = vadd.f32 %v1343, %v1281
  %v1345 = vadd.f32 %v1344, %v1282
  %v1346 = vadd.f32 %v1345, %v1283
  %v1347 = vadd.f32 %v1346, %v1284
  %v1348 = vadd.f32 %v1347, %v1285
  %v1349 = vadd.f32 %v1348, %v1286
  %v1350 = vadd.f32 %v1349, %v1287
  %v1351 = vrot.slane %v1350, 4
  %v1352 = vadd.f32 %v1350, %v1351
  %v1353 = vrot.slane %v1352, 2
  %v1354 = vadd.f32 %v1352, %v1353
  %v1355 = vrot.slane %v1354, 1
  %v1356 = vadd.f32 %v1354, %v1355
  %v1357 = vmul.f32 %v1356, 0.0625
  %v1358 = vsub.f32 %v713, %v1357
  %v1359 = vsub.f32 %v716, %v1357
  %v1360 = vsub.f32 %v721, %v1357
  %v1361 = vsub.f32 %v724, %v1357
  %v1362 = vsub.f32 %v729, %v1357
  %v1363 = vsub.f32 %v732, %v1357
  %v1364 = vsub.f32 %v737, %v1357
  %v1365 = vsub.f32 %v740, %v1357
  %v1366 = vsub.f32 %v745, %v1357
  %v1367 = vsub.f32 %v748, %v1357
  %v1368 = vsub.f32 %v753, %v1357
  %v1369 = vsub.f32 %v756, %v1357
  %v1370 = vsub.f32 %v761, %v1357
  %v1371 = vsub.f32 %v764, %v1357
  %v1372 = vsub.f32 %v769, %v1357
  %v1373 = vsub.f32 %v772, %v1357
  %v1374 = vsub.f32 %v777, %v1357
  %v1375 = vsub.f32 %v780, %v1357
  %v1376 = vsub.f32 %v785, %v1357
  %v1377 = vsub.f32 %v788, %v1357
  %v1378 = vsub.f32 %v793, %v1357
  %v1379 = vsub.f32 %v796, %v1357
  %v1380 = vsub.f32 %v801, %v1357
  %v1381 = vsub.f32 %v804, %v1357
  %v1382 = vsub.f32 %v809, %v1357
  %v1383 = vsub.f32 %v812, %v1357
  %v1384 = vsub.f32 %v817, %v1357
  %v1385 = vsub.f32 %v820, %v1357
  %v1386 = vsub.f32 %v825, %v1357
  %v1387 = vsub.f32 %v828, %v1357
  %v1388 = vsub.f32 %v833, %v1357
  %v1389 = vsub.f32 %v836, %v1357
  %v1390 = vsub.f32 %v841, %v1357
  %v1391 = vsub.f32 %v844, %v1357
  %v1392 = vsub.f32 %v849, %v1357
  %v1393 = vsub.f32 %v852, %v1357
  %v1394 = vsub.f32 %v857, %v1357
  %v1395 = vsub.f32 %v860, %v1357
  %v1396 = vsub.f32 %v865, %v1357
  %v1397 = vsub.f32 %v868, %v1357
  %v1398 = vsub.f32 %v873, %v1357
  %v1399 = vsub.f32 %v876, %v1357
  %v1400 = vsub.f32 %v881, %v1357
  %v1401 = vsub.f32 %v884, %v1357
  %v1402 = vsub.f32 %v889, %v1357
  %v1403 = vsub.f32 %v892, %v1357
  %v1404 = vsub.f32 %v897, %v1357
  %v1405 = vsub.f32 %v900, %v1357
  %v1406 = vsub.f32 %v905, %v1357
  %v1407 = vsub.f32 %v908, %v1357
  %v1408 = vsub.f32 %v913, %v1357
  %v1409 = vsub.f32 %v916, %v1357
  %v1410 = vsub.f32 %v921, %v1357
  %v1411 = vsub.f32 %v924, %v1357
  %v1412 = vsub.f32 %v929, %v1357
  %v1413 = vsub.f32 %v932, %v1357
  %v1414 = vsub.f32 %v937, %v1357
  %v1415 = vsub.f32 %v940, %v1357
  %v1416 = vsub.f32 %v945, %v1357
  %v1417 = vsub.f32 %v948, %v1357
  %v1418 = vsub.f32 %v953, %v1357
  %v1419 = vsub.f32 %v956, %v1357
  %v1420 = vsub.f32 %v961, %v1357
  %v1421 = vsub.f32 %v964, %v1357
  %v1422 = vmul.f32 %v1358, %v1160
  %v1423 = vmul.f32 %v1359, %v1161
  %v1424 = vmul.f32 %v1360, %v1162
  %v1425 = vmul.f32 %v1361, %v1163
  %v1426 = vmul.f32 %v1362, %v1164
  %v1427 = vmul.f32 %v1363, %v1165
  %v1428 = vmul.f32 %v1364, %v1166
  %v1429 = vmul.f32 %v1365, %v1167
  %v1430 = vmul.f32 %v1366, %v1168
  %v1431 = vmul.f32 %v1367, %v1169
  %v1432 = vmul.f32 %v1368, %v1170
  %v1433 = vmul.f32 %v1369, %v1171
  %v1434 = vmul.f32 %v1370, %v1172
  %v1435 = vmul.f32 %v1371, %v1173
  %v1436 = vmul.f32 %v1372, %v1174
  %v1437 = vmul.f32 %v1373, %v1175
  %v1438 = vmul.f32 %v1374, %v1176
  %v1439 = vmul.f32 %v1375, %v1177
  %v1440 = vmul.f32 %v1376, %v1178
  %v1441 = vmul.f32 %v1377, %v1179
  %v1442 = vmul.f32 %v1378, %v1180
  %v1443 = vmul.f32 %v1379, %v1181
  %v1444 = vmul.f32 %v1380, %v1182
  %v1445 = vmul.f32 %v1381, %v1183
  %v1446 = vmul.f32 %v1382, %v1184
  %v1447 = vmul.f32 %v1383, %v1185
  %v1448 = vmul.f32 %v1384, %v1186
  %v1449 = vmul.f32 %v1385, %v1187
  %v1450 = vmul.f32 %v1386, %v1188
  %v1451 = vmul.f32 %v1387, %v1189
  %v1452 = vmul.f32 %v1388, %v1190
  %v1453 = vmul.f32 %v1389, %v1191
  %v1454 = vmul.f32 %v1390, %v1192
  %v1455 = vmul.f32 %v1391, %v1193
  %v1456 = vmul.f32 %v1392, %v1194
  %v1457 = vmul.f32 %v1393, %v1195
  %v1458 = vmul.f32 %v1394, %v1196
  %v1459 = vmul.f32 %v1395, %v1197
  %v1460 = vmul.f32 %v1396, %v1198
  %v1461 = vmul.f32 %v1397, %v1199
  %v1462 = vmul.f32 %v1398, %v1200
  %v1463 = vmul.f32 %v1399, %v1201
  %v1464 = vmul.f32 %v1400, %v1202
  %v1465 = vmul.f32 %v1401, %v1203
  %v1466 = vmul.f32 %v1402, %v1204
  %v1467 = vmul.f32 %v1403, %v1205
  %v1468 = vmul.f32 %v1404, %v1206
  %v1469 = vmul.f32 %v1405, %v1207
  %v1470 = vmul.f32 %v1406, %v1208
  %v1471 = vmul.f32 %v1407, %v1209
  %v1472 = vmul.f32 %v1408, %v1210
  %v1473 = vmul.f32 %v1409, %v1211
  %v1474 = vmul.f32 %v1410, %v1212
  %v1475 = vmul.f32 %v1411, %v1213
  %v1476 = vmul.f32 %v1412, %v1214
  %v1477 = vmul.f32 %v1413, %v1215
  %v1478 = vmul.f32 %v1414, %v1216
  %v1479 = vmul.f32 %v1415, %v1217
  %v1480 = vmul.f32 %v1416, %v1218
  %v1481 = vmul.f32 %v1417, %v1219
  %v1482 = vmul.f32 %v1418, %v1220
  %v1483 = vmul.f32 %v1419, %v1221
  %v1484 = vmul.f32 %v1420, %v1222
  %v1485 = vmul.f32 %v1421, %v1223
  %v1486 = vmul.f32 %v1422, %v1422
  %v1487 = vmul.f32 %v1423, %v1423
  %v1488 = vmul.f32 %v1424, %v1424
  %v1489 = vmul.f32 %v1425, %v1425
  %v1490 = vmul.f32 %v1426, %v1426
  %v1491 = vmul.f32 %v1427, %v1427
  %v1492 = vmul.f32 %v1428, %v1428
  %v1493 = vmul.f32 %v1429, %v1429
  %v1494 = vmul.f32 %v1430, %v1430
  %v1495 = vmul.f32 %v1431, %v1431
  %v1496 = vmul.f32 %v1432, %v1432
  %v1497 = vmul.f32 %v1433, %v1433
  %v1498 = vmul.f32 %v1434, %v1434
  %v1499 = vmul.f32 %v1435, %v1435
  %v1500 = vmul.f32 %v1436, %v1436
  %v1501 = vmul.f32 %v1437, %v1437
  %v1502 = vmul.f32 %v1438, %v1438
  %v1503 = vmul.f32 %v1439, %v1439
  %v1504 = vmul.f32 %v1440, %v1440
  %v1505 = vmul.f32 %v1441, %v1441
  %v1506 = vmul.f32 %v1442, %v1442
  %v1507 = vmul.f32 %v1443, %v1443
  %v1508 = vmul.f32 %v1444, %v1444
  %v1509 = vmul.f32 %v1445, %v1445
  %v1510 = vmul.f32 %v1446, %v1446
  %v1511 = vmul.f32 %v1447, %v1447
  %v1512 = vmul.f32 %v1448, %v1448
  %v1513 = vmul.f32 %v1449, %v1449
  %v1514 = vmul.f32 %v1450, %v1450
  %v1515 = vmul.f32 %v1451, %v1451
  %v1516 = vmul.f32 %v1452, %v1452
  %v1517 = vmul.f32 %v1453, %v1453
  %v1518 = vmul.f32 %v1454, %v1454
  %v1519 = vmul.f32 %v1455, %v1455
  %v1520 = vmul.f32 %v1456, %v1456
  %v1521 = vmul.f32 %v1457, %v1457
  %v1522 = vmul.f32 %v1458, %v1458
  %v1523 = vmul.f32 %v1459, %v1459
  %v1524 = vmul.f32 %v1460, %v1460
  %v1525 = vmul.f32 %v1461, %v1461
  %v1526 = vmul.f32 %v1462, %v1462
  %v1527 = vmul.f32 %v1463, %v1463
  %v1528 = vmul.f32 %v1464, %v1464
  %v1529 = vmul.f32 %v1465, %v1465
  %v1530 = vmul.f32 %v1466, %v1466
  %v1531 = vmul.f32 %v1467, %v1467
  %v1532 = vmul.f32 %v1468, %v1468
  %v1533 = vmul.f32 %v1469, %v1469
  %v1534 = vmul.f32 %v1470, %v1470
  %v1535 = vmul.f32 %v1471, %v1471
  %v1536 = vmul.f32 %v1472, %v1472
  %v1537 = vmul.f32 %v1473, %v1473
  %v1538 = vmul.f32 %v1474, %v1474
  %v1539 = vmul.f32 %v1475, %v1475
  %v1540 = vmul.f32 %v1476, %v1476
  %v1541 = vmul.f32 %v1477, %v1477
  %v1542 = vmul.f32 %v1478, %v1478
  %v1543 = vmul.f32 %v1479, %v1479
  %v1544 = vmul.f32 %v1480, %v1480
  %v1545 = vmul.f32 %v1481, %v1481
  %v1546 = vmul.f32 %v1482, %v1482
  %v1547 = vmul.f32 %v1483, %v1483
  %v1548 = vmul.f32 %v1484, %v1484
  %v1549 = vmul.f32 %v1485, %v1485
  %v1550 = vadd.f32 %v1486, %v1487
  %v1551 = vadd.f32 %v1550, %v1488
  %v1552 = vadd.f32 %v1551, %v1489
  %v1553 = vadd.f32 %v1552, %v1490
  %v1554 = vadd.f32 %v1553, %v1491
  %v1555 = vadd.f32 %v1554, %v1492
  %v1556 = vadd.f32 %v1555, %v1493
  %v1557 = vadd.f32 %v1556, %v1494
  %v1558 = vadd.f32 %v1557, %v1495
  %v1559 = vadd.f32 %v1558, %v1496
  %v1560 = vadd.f32 %v1559, %v1497
  %v1561 = vadd.f32 %v1560, %v1498
  %v1562 = vadd.f32 %v1561, %v1499
  %v1563 = vadd.f32 %v1562, %v1500
  %v1564 = vadd.f32 %v1563, %v1501
  %v1565 = vadd.f32 %v1564, %v1502
  %v1566 = vadd.f32 %v1565, %v1503
  %v1567 = vadd.f32 %v1566, %v1504
  %v1568 = vadd.f32 %v1567, %v1505
  %v1569 = vadd.f32 %v1568, %v1506
  %v1570 = vadd.f32 %v1569, %v1507
  %v1571 = vadd.f32 %v1570, %v1508
  %v1572 = vadd.f32 %v1571, %v1509
  %v1573 = vadd.f32 %v1572, %v1510
  %v1574 = vadd.f32 %v1573, %v1511
  %v1575 = vadd.f32 %v1574, %v1512
  %v1576 = vadd.f32 %v1575, %v1513
  %v1577 = vadd.f32 %v1576, %v1514
  %v1578 = vadd.f32 %v1577, %v1515
  %v1579 = vadd.f32 %v1578, %v1516
  %v1580 = vadd.f32 %v1579, %v1517
  %v1581 = vadd.f32 %v1580, %v1518
  %v1582 = vadd.f32 %v1581, %v1519
  %v1583 = vadd.f32 %v1582, %v1520
  %v1584 = vadd.f32 %v1583, %v1521
  %v1585 = vadd.f32 %v1584, %v1522
  %v1586 = vadd.f32 %v1585, %v1523
  %v1587 = vadd.f32 %v1586, %v1524
  %v1588 = vadd.f32 %v1587, %v1525
  %v1589 = vadd.f32 %v1588, %v1526
  %v1590 = vadd.f32 %v1589, %v1527
  %v1591 = vadd.f32 %v1590, %v1528
  %v1592 = vadd.f32 %v1591, %v1529
  %v1593 = vadd.f32 %v1592, %v1530
  %v1594 = vadd.f32 %v1593, %v1531
  %v1595 = vadd.f32 %v1594, %v1532
  %v1596 = vadd.f32 %v1595, %v1533
  %v1597 = vadd.f32 %v1596, %v1534
  %v1598 = vadd.f32 %v1597, %v1535
  %v1599 = vadd.f32 %v1598, %v1536
  %v1600 = vadd.f32 %v1599, %v1537
  %v1601 = vadd.f32 %v1600, %v1538
  %v1602 = vadd.f32 %v1601, %v1539
  %v1603 = vadd.f32 %v1602, %v1540
  %v1604 = vadd.f32 %v1603, %v1541
  %v1605 = vadd.f32 %v1604, %v1542
  %v1606 = vadd.f32 %v1605, %v1543
  %v1607 = vadd.f32 %v1606, %v1544
  %v1608 = vadd.f32 %v1607, %v1545
  %v1609 = vadd.f32 %v1608, %v1546
  %v1610 = vadd.f32 %v1609, %v1547
  %v1611 = vadd.f32 %v1610, %v1548
  %v1612 = vadd.f32 %v1611, %v1549
  %v1613 = vrot.slane %v1612, 4
  %v1614 = vadd.f32 %v1612, %v1613
  %v1615 = vrot.slane %v1614, 2
  %v1616 = vadd.f32 %v1614, %v1615
  %v1617 = vrot.slane %v1616, 1
  %v1618 = vadd.f32 %v1616, %v1617
  %v1619 = vmul.f32 %v1618, 0.0625
  %v1620 = vadd.f32 %v1619, 1e-05
  %v1621 = vrsqrt.pop %v1620
  %v1622 = vmul.f32 %v1358, %v1621
  %v1623 = vmul.f32 %v1359, %v1621
  %v1624 = vmul.f32 %v1360, %v1621
  %v1625 = vmul.f32 %v1361, %v1621
  %v1626 = vmul.f32 %v1362, %v1621
  %v1627 = vmul.f32 %v1363, %v1621
  %v1628 = vmul.f32 %v1364, %v1621
  %v1629 = vmul.f32 %v1365, %v1621
  %v1630 = vmul.f32 %v1366, %v1621
  %v1631 = vmul.f32 %v1367, %v1621
  %v1632 = vmul.f32 %v1368, %v1621
  %v1633 = vmul.f32 %v1369, %v1621
  %v1634 = vmul.f32 %v1370, %v1621
  %v1635 = vmul.f32 %v1371, %v1621
  %v1636 = vmul.f32 %v1372, %v1621
  %v1637 = vmul.f32 %v1373, %v1621
  %v1638 = vmul.f32 %v1374, %v1621
  %v1639 = vmul.f32 %v1375, %v1621
  %v1640 = vmul.f32 %v1376, %v1621
  %v1641 = vmul.f32 %v1377, %v1621
  %v1642 = vmul.f32 %v1378, %v1621
  %v1643 = vmul.f32 %v1379, %v1621
  %v1644 = vmul.f32 %v1380, %v1621
  %v1645 = vmul.f32 %v1381, %v1621
  %v1646 = vmul.f32 %v1382, %v1621
  %v1647 = vmul.f32 %v1383, %v1621
  %v1648 = vmul.f32 %v1384, %v1621
  %v1649 = vmul.f32 %v1385, %v1621
  %v1650 = vmul.f32 %v1386, %v1621
  %v1651 = vmul.f32 %v1387, %v1621
  %v1652 = vmul.f32 %v1388, %v1621
  %v1653 = vmul.f32 %v1389, %v1621
  %v1654 = vmul.f32 %v1390, %v1621
  %v1655 = vmul.f32 %v1391, %v1621
  %v1656 = vmul.f32 %v1392, %v1621
  %v1657 = vmul.f32 %v1393, %v1621
  %v1658 = vmul.f32 %v1394, %v1621
  %v1659 = vmul.f32 %v1395, %v1621
  %v1660 = vmul.f32 %v1396, %v1621
  %v1661 = vmul.f32 %v1397, %v1621
  %v1662 = vmul.f32 %v1398, %v1621
  %v1663 = vmul.f32 %v1399, %v1621
  %v1664 = vmul.f32 %v1400, %v1621
  %v1665 = vmul.f32 %v1401, %v1621
  %v1666 = vmul.f32 %v1402, %v1621
  %v1667 = vmul.f32 %v1403, %v1621
  %v1668 = vmul.f32 %v1404, %v1621
  %v1669 = vmul.f32 %v1405, %v1621
  %v1670 = vmul.f32 %v1406, %v1621
  %v1671 = vmul.f32 %v1407, %v1621
  %v1672 = vmul.f32 %v1408, %v1621
  %v1673 = vmul.f32 %v1409, %v1621
  %v1674 = vmul.f32 %v1410, %v1621
  %v1675 = vmul.f32 %v1411, %v1621
  %v1676 = vmul.f32 %v1412, %v1621
  %v1677 = vmul.f32 %v1413, %v1621
  %v1678 = vmul.f32 %v1414, %v1621
  %v1679 = vmul.f32 %v1415, %v1621
  %v1680 = vmul.f32 %v1416, %v1621
  %v1681 = vmul.f32 %v1417, %v1621
  %v1682 = vmul.f32 %v1418, %v1621
  %v1683 = vmul.f32 %v1419, %v1621
  %v1684 = vmul.f32 %v1420, %v1621
  %v1685 = vmul.f32 %v1421, %v1621
  %v1687 = vlaneseq
  %v1688 = vshrl.u32 %v1687, 7
  %v1689 = vsub.s32 0, %v1688
  %v1690 = vrot.slane %v151, %v1689
  %v1692 = vmul.f32 %v1622, %v1690
  %v1693 = vmul.f32 %v1623, %v1690
  %v1694 = vmul.f32 %v1624, %v1690
  %v1695 = vmul.f32 %v1625, %v1690
  %v1696 = vmul.f32 %v1626, %v1690
  %v1697 = vmul.f32 %v1627, %v1690
  %v1698 = vmul.f32 %v1628, %v1690
  %v1699 = vmul.f32 %v1629, %v1690
  %v1700 = vmul.f32 %v1630, %v1690
  %v1701 = vmul.f32 %v1631, %v1690
  %v1702 = vmul.f32 %v1632, %v1690
  %v1703 = vmul.f32 %v1633, %v1690
  %v1704 = vmul.f32 %v1634, %v1690
  %v1705 = vmul.f32 %v1635, %v1690
  %v1706 = vmul.f32 %v1636, %v1690
  %v1707 = vmul.f32 %v1637, %v1690
  %v1708 = vmul.f32 %v1638, %v1690
  %v1709 = vmul.f32 %v1639, %v1690
  %v1710 = vmul.f32 %v1640, %v1690
  %v1711 = vmul.f32 %v1641, %v1690
  %v1712 = vmul.f32 %v1642, %v1690
  %v1713 = vmul.f32 %v1643, %v1690
  %v1714 = vmul.f32 %v1644, %v1690
  %v1715 = vmul.f32 %v1645, %v1690
  %v1716 = vmul.f32 %v1646, %v1690
  %v1717 = vmul.f32 %v1647, %v1690
  %v1718 = vmul.f32 %v1648, %v1690
  %v1719 = vmul.f32 %v1649, %v1690
  %v1720 = vmul.f32 %v1650, %v1690
  %v1721 = vmul.f32 %v1651, %v1690
  %v1722 = vmul.f32 %v1652, %v1690
  %v1723 = vmul.f32 %v1653, %v1690
  %v1724 = vmul.f32 %v1654, %v1690
  %v1725 = vmul.f32 %v1655, %v1690
  %v1726 = vmul.f32 %v1656, %v1690
  %v1727 = vmul.f32 %v1657, %v1690
  %v1728 = vmul.f32 %v1658, %v1690
  %v1729 = vmul.f32 %v1659, %v1690
  %v1730 = vmul.f32 %v1660, %v1690
  %v1731 = vmul.f32 %v1661, %v1690
  %v1732 = vmul.f32 %v1662, %v1690
  %v1733 = vmul.f32 %v1663, %v1690
  %v1734 = vmul.f32 %v1664, %v1690
  %v1735 = vmul.f32 %v1665, %v1690
  %v1736 = vmul.f32 %v1666, %v1690
  %v1737 = vmul.f32 %v1667, %v1690
  %v1738 = vmul.f32 %v1668, %v1690
  %v1739 = vmul.f32 %v1669, %v1690
  %v1740 = vmul.f32 %v1670, %v1690
  %v1741 = vmul.f32 %v1671, %v1690
  %v1742 = vmul.f32 %v1672, %v1690
  %v1743 = vmul.f32 %v1673, %v1690
  %v1744 = vmul.f32 %v1674, %v1690
  %v1745 = vmul.f32 %v1675, %v1690
  %v1746 = vmul.f32 %v1676, %v1690
  %v1747 = vmul.f32 %v1677, %v1690
  %v1748 = vmul.f32 %v1678, %v1690
  %v1749 = vmul.f32 %v1679, %v1690
  %v1750 = vmul.f32 %v1680, %v1690
  %v1751 = vmul.f32 %v1681, %v1690
  %v1752 = vmul.f32 %v1682, %v1690
  %v1753 = vmul.f32 %v1683, %v1690
  %v1754 = vmul.f32 %v1684, %v1690
  %v1755 = vmul.f32 %v1685, %v1690
  %v1757 = vlaneseq
  %v1758 = vshrl.u32 %v1757, 7
  %v1759 = vsub.s32 0, %v1758
  %v1760 = vrot.slane %v152, %v1759
  %v1762 = vadd.f32 %v1692, %v1760
  %v1763 = vadd.f32 %v1693, %v1760
  %v1764 = vadd.f32 %v1694, %v1760
  %v1765 = vadd.f32 %v1695, %v1760
  %v1766 = vadd.f32 %v1696, %v1760
  %v1767 = vadd.f32 %v1697, %v1760
  %v1768 = vadd.f32 %v1698, %v1760
  %v1769 = vadd.f32 %v1699, %v1760
  %v1770 = vadd.f32 %v1700, %v1760
  %v1771 = vadd.f32 %v1701, %v1760
  %v1772 = vadd.f32 %v1702, %v1760
  %v1773 = vadd.f32 %v1703, %v1760
  %v1774 = vadd.f32 %v1704, %v1760
  %v1775 = vadd.f32 %v1705, %v1760
  %v1776 = vadd.f32 %v1706, %v1760
  %v1777 = vadd.f32 %v1707, %v1760
  %v1778 = vadd.f32 %v1708, %v1760
  %v1779 = vadd.f32 %v1709, %v1760
  %v1780 = vadd.f32 %v1710, %v1760
  %v1781 = vadd.f32 %v1711, %v1760
  %v1782 = vadd.f32 %v1712, %v1760
  %v1783 = vadd.f32 %v1713, %v1760
  %v1784 = vadd.f32 %v1714, %v1760
  %v1785 = vadd.f32 %v1715, %v1760
  %v1786 = vadd.f32 %v1716, %v1760
  %v1787 = vadd.f32 %v1717, %v1760
  %v1788 = vadd.f32 %v1718, %v1760
  %v1789 = vadd.f32 %v1719, %v1760
  %v1790 = vadd.f32 %v1720, %v1760
  %v1791 = vadd.f32 %v1721, %v1760
  %v1792 = vadd.f32 %v1722, %v1760
  %v1793 = vadd.f32 %v1723, %v1760
  %v1794 = vadd.f32 %v1724, %v1760
  %v1795 = vadd.f32 %v1725, %v1760
  %v1796 = vadd.f32 %v1726, %v1760
  %v1797 = vadd.f32 %v1727, %v1760
  %v1798 = vadd.f32 %v1728, %v1760
  %v1799 = vadd.f32 %v1729, %v1760
  %v1800 = vadd.f32 %v1730, %v1760
  %v1801 = vadd.f32 %v1731, %v1760
  %v1802 = vadd.f32 %v1732, %v1760
  %v1803 = vadd.f32 %v1733, %v1760
  %v1804 = vadd.f32 %v1734, %v1760
  %v1805 = vadd.f32 %v1735, %v1760
  %v1806 = vadd.f32 %v1736, %v1760
  %v1807 = vadd.f32 %v1737, %v1760
  %v1808 = vadd.f32 %v1738, %v1760
  %v1809 = vadd.f32 %v1739, %v1760
  %v1810 = vadd.f32 %v1740, %v1760
  %v1811 = vadd.f32 %v1741, %v1760
  %v1812 = vadd.f32 %v1742, %v1760
  %v1813 = vadd.f32 %v1743, %v1760
  %v1814 = vadd.f32 %v1744, %v1760
  %v1815 = vadd.f32 %v1745, %v1760
  %v1816 = vadd.f32 %v1746, %v1760
  %v1817 = vadd.f32 %v1747, %v1760
  %v1818 = vadd.f32 %v1748, %v1760
  %v1819 = vadd.f32 %v1749, %v1760
  %v1820 = vadd.f32 %v1750, %v1760
  %v1821 = vadd.f32 %v1751, %v1760
  %v1822 = vadd.f32 %v1752, %v1760
  %v1823 = vadd.f32 %v1753, %v1760
  %v1824 = vadd.f32 %v1754, %v1760
  %v1825 = vadd.f32 %v1755, %v1760
  %v1826 = vmax.f32 %v1762, 0.0
  %v1827 = vmax.f32 %v1763, 0.0
  %v1828 = vmax.f32 %v1764, 0.0
  %v1829 = vmax.f32 %v1765, 0.0
  %v1830 = vmax.f32 %v1766, 0.0
  %v1831 = vmax.f32 %v1767, 0.0
  %v1832 = vmax.f32 %v1768, 0.0
  %v1833 = vmax.f32 %v1769, 0.0
  %v1834 = vmax.f32 %v1770, 0.0
  %v1835 = vmax.f32 %v1771, 0.0
  %v1836 = vmax.f32 %v1772, 0.0
  %v1837 = vmax.f32 %v1773, 0.0
  %v1838 = vmax.f32 %v1774, 0.0
  %v1839 = vmax.f32 %v1775, 0.0
  %v1840 = vmax.f32 %v1776, 0.0
  %v1841 = vmax.f32 %v1777, 0.0
  %v1842 = vmax.f32 %v1778, 0.0
  %v1843 = vmax.f32 %v1779, 0.0
  %v1844 = vmax.f32 %v1780, 0.0
  %v1845 = vmax.f32 %v1781, 0.0
  %v1846 = vmax.f32 %v1782, 0.0
  %v1847 = vmax.f32 %v1783, 0.0
  %v1848 = vmax.f32 %v1784, 0.0
  %v1849 = vmax.f32 %v1785, 0.0
  %v1850 = vmax.f32 %v1786, 0.0
  %v1851 = vmax.f32 %v1787, 0.0
  %v1852 = vmax.f32 %v1788, 0.0
  %v1853 = vmax.f32 %v1789, 0.0
  %v1854 = vmax.f32 %v1790, 0.0
  %v1855 = vmax.f32 %v1791, 0.0
  %v1856 = vmax.f32 %v1792, 0.0
  %v1857 = vmax.f32 %v1793, 0.0
  %v1858 = vmax.f32 %v1794, 0.0
  %v1859 = vmax.f32 %v1795, 0.0
  %v1860 = vmax.f32 %v1796, 0.0
  %v1861 = vmax.f32 %v1797, 0.0
  %v1862 = vmax.f32 %v1798, 0.0
  %v1863 = vmax.f32 %v1799, 0.0
  %v1864 = vmax.f32 %v1800, 0.0
  %v1865 = vmax.f32 %v1801, 0.0
  %v1866 = vmax.f32 %v1802, 0.0
  %v1867 = vmax.f32 %v1803, 0.0
  %v1868 = vmax.f32 %v1804, 0.0
  %v1869 = vmax.f32 %v1805, 0.0
  %v1870 = vmax.f32 %v1806, 0.0
  %v1871 = vmax.f32 %v1807, 0.0
  %v1872 = vmax.f32 %v1808, 0.0
  %v1873 = vmax.f32 %v1809, 0.0
  %v1874 = vmax.f32 %v1810, 0.0
  %v1875 = vmax.f32 %v1811, 0.0
  %v1876 = vmax.f32 %v1812, 0.0
  %v1877 = vmax.f32 %v1813, 0.0
  %v1878 = vmax.f32 %v1814, 0.0
  %v1879 = vmax.f32 %v1815, 0.0
  %v1880 = vmax.f32 %v1816, 0.0
  %v1881 = vmax.f32 %v1817, 0.0
  %v1882 = vmax.f32 %v1818, 0.0
  %v1883 = vmax.f32 %v1819, 0.0
  %v1884 = vmax.f32 %v1820, 0.0
  %v1885 = vmax.f32 %v1821, 0.0
  %v1886 = vmax.f32 %v1822, 0.0
  %v1887 = vmax.f32 %v1823, 0.0
  %v1888 = vmax.f32 %v1824, 0.0
  %v1889 = vmax.f32 %v1825, 0.0
  %v1890 = vmul.f32 %v1826, %v1160
  %v1891 = vmul.f32 %v1827, %v1161
  %v1892 = vmul.f32 %v1828, %v1162
  %v1893 = vmul.f32 %v1829, %v1163
  %v1894 = vmul.f32 %v1830, %v1164
  %v1895 = vmul.f32 %v1831, %v1165
  %v1896 = vmul.f32 %v1832, %v1166
  %v1897 = vmul.f32 %v1833, %v1167
  %v1898 = vmul.f32 %v1834, %v1168
  %v1899 = vmul.f32 %v1835, %v1169
  %v1900 = vmul.f32 %v1836, %v1170
  %v1901 = vmul.f32 %v1837, %v1171
  %v1902 = vmul.f32 %v1838, %v1172
  %v1903 = vmul.f32 %v1839, %v1173
  %v1904 = vmul.f32 %v1840, %v1174
  %v1905 = vmul.f32 %v1841, %v1175
  %v1906 = vmul.f32 %v1842, %v1176
  %v1907 = vmul.f32 %v1843, %v1177
  %v1908 = vmul.f32 %v1844, %v1178
  %v1909 = vmul.f32 %v1845, %v1179
  %v1910 = vmul.f32 %v1846, %v1180
  %v1911 = vmul.f32 %v1847, %v1181
  %v1912 = vmul.f32 %v1848, %v1182
  %v1913 = vmul.f32 %v1849, %v1183
  %v1914 = vmul.f32 %v1850, %v1184
  %v1915 = vmul.f32 %v1851, %v1185
  %v1916 = vmul.f32 %v1852, %v1186
  %v1917 = vmul.f32 %v1853, %v1187
  %v1918 = vmul.f32 %v1854, %v1188
  %v1919 = vmul.f32 %v1855, %v1189
  %v1920 = vmul.f32 %v1856, %v1190
  %v1921 = vmul.f32 %v1857, %v1191
  %v1922 = vmul.f32 %v1858, %v1192
  %v1923 = vmul.f32 %v1859, %v1193
  %v1924 = vmul.f32 %v1860, %v1194
  %v1925 = vmul.f32 %v1861, %v1195
  %v1926 = vmul.f32 %v1862, %v1196
  %v1927 = vmul.f32 %v1863, %v1197
  %v1928 = vmul.f32 %v1864, %v1198
  %v1929 = vmul.f32 %v1865, %v1199
  %v1930 = vmul.f32 %v1866, %v1200
  %v1931 = vmul.f32 %v1867, %v1201
  %v1932 = vmul.f32 %v1868, %v1202
  %v1933 = vmul.f32 %v1869, %v1203
  %v1934 = vmul.f32 %v1870, %v1204
  %v1935 = vmul.f32 %v1871, %v1205
  %v1936 = vmul.f32 %v1872, %v1206
  %v1937 = vmul.f32 %v1873, %v1207
  %v1938 = vmul.f32 %v1874, %v1208
  %v1939 = vmul.f32 %v1875, %v1209
  %v1940 = vmul.f32 %v1876, %v1210
  %v1941 = vmul.f32 %v1877, %v1211
  %v1942 = vmul.f32 %v1878, %v1212
  %v1943 = vmul.f32 %v1879, %v1213
  %v1944 = vmul.f32 %v1880, %v1214
  %v1945 = vmul.f32 %v1881, %v1215
  %v1946 = vmul.f32 %v1882, %v1216
  %v1947 = vmul.f32 %v1883, %v1217
  %v1948 = vmul.f32 %v1884, %v1218
  %v1949 = vmul.f32 %v1885, %v1219
  %v1950 = vmul.f32 %v1886, %v1220
  %v1951 = vmul.f32 %v1887, %v1221
  %v1952 = vmul.f32 %v1888, %v1222
  %v1953 = vmul.f32 %v1889, %v1223
  %1954 = vst [vmem:[%s15] sm:$0xff] %v1890
  %1955 = vst [vmem:[%s15 + $0x8] sm:$0xff] %v1891
  %1956 = vst [vmem:[%s15 + $0x10] sm:$0xff] %v1892
  %1957 = vst [vmem:[%s15 + $0x18] sm:$0xff] %v1893
  %1958 = vst [vmem:[%s15 + $0x20] sm:$0xff] %v1894
  %1959 = vst [vmem:[%s15 + $0x28] sm:$0xff] %v1895
  %1960 = vst [vmem:[%s15 + $0x30] sm:$0xff] %v1896
  %1961 = vst [vmem:[%s15 + $0x38] sm:$0xff] %v1897
  %1962 = vst [vmem:[%s15 + $0x40] sm:$0xff] %v1898
  %1963 = vst [vmem:[%s15 + $0x48] sm:$0xff] %v1899
  %1964 = vst [vmem:[%s15 + $0x50] sm:$0xff] %v1900
  %1965 = vst [vmem:[%s15 + $0x58] sm:$0xff] %v1901
  %1966 = vst [vmem:[%s15 + $0x60] sm:$0xff] %v1902
  %1967 = vst [vmem:[%s15 + $0x68] sm:$0xff] %v1903
  %1968 = vst [vmem:[%s15 + $0x70] sm:$0xff] %v1904
  %1969 = vst [vmem:[%s15 + $0x78] sm:$0xff] %v1905
  %1970 = vst [vmem:[%s15 + $0x80] sm:$0xff] %v1906
  %1971 = vst [vmem:[%s15 + $0x88] sm:$0xff] %v1907
  %1972 = vst [vmem:[%s15 + $0x90] sm:$0xff] %v1908
  %1973 = vst [vmem:[%s15 + $0x98] sm:$0xff] %v1909
  %1974 = vst [vmem:[%s15 + $0xa0] sm:$0xff] %v1910
  %1975 = vst [vmem:[%s15 + $0xa8] sm:$0xff] %v1911
  %1976 = vst [vmem:[%s15 + $0xb0] sm:$0xff] %v1912
  %1977 = vst [vmem:[%s15 + $0xb8] sm:$0xff] %v1913
  %1978 = vst [vmem:[%s15 + $0xc0] sm:$0xff] %v1914
  %1979 = vst [vmem:[%s15 + $0xc8] sm:$0xff] %v1915
  %1980 = vst [vmem:[%s15 + $0xd0] sm:$0xff] %v1916
  %1981 = vst [vmem:[%s15 + $0xd8] sm:$0xff] %v1917
  %1982 = vst [vmem:[%s15 + $0xe0] sm:$0xff] %v1918
  %1983 = vst [vmem:[%s15 + $0xe8] sm:$0xff] %v1919
  %1984 = vst [vmem:[%s15 + $0xf0] sm:$0xff] %v1920
  %1985 = vst [vmem:[%s15 + $0xf8] sm:$0xff] %v1921
  %1986 = vst [vmem:[%s15 + $0x100] sm:$0xff] %v1922
  %1987 = vst [vmem:[%s15 + $0x108] sm:$0xff] %v1923
  %1988 = vst [vmem:[%s15 + $0x110] sm:$0xff] %v1924
  %1989 = vst [vmem:[%s15 + $0x118] sm:$0xff] %v1925
  %1990 = vst [vmem:[%s15 + $0x120] sm:$0xff] %v1926
  %1991 = vst [vmem:[%s15 + $0x128] sm:$0xff] %v1927
  %1992 = vst [vmem:[%s15 + $0x130] sm:$0xff] %v1928
  %1993 = vst [vmem:[%s15 + $0x138] sm:$0xff] %v1929
  %1994 = vst [vmem:[%s15 + $0x140] sm:$0xff] %v1930
  %1995 = vst [vmem:[%s15 + $0x148] sm:$0xff] %v1931
  %1996 = vst [vmem:[%s15 + $0x150] sm:$0xff] %v1932
  %1997 = vst [vmem:[%s15 + $0x158] sm:$0xff] %v1933
  %1998 = vst [vmem:[%s15 + $0x160] sm:$0xff] %v1934
  %1999 = vst [vmem:[%s15 + $0x168] sm:$0xff] %v1935
  %2000 = vst [vmem:[%s15 + $0x170] sm:$0xff] %v1936
  %2001 = vst [vmem:[%s15 + $0x178] sm:$0xff] %v1937
  %2002 = vst [vmem:[%s15 + $0x180] sm:$0xff] %v1938
  %2003 = vst [vmem:[%s15 + $0x188] sm:$0xff] %v1939
  %2004 = vst [vmem:[%s15 + $0x190] sm:$0xff] %v1940
  %2005 = vst [vmem:[%s15 + $0x198] sm:$0xff] %v1941
  %2006 = vst [vmem:[%s15 + $0x1a0] sm:$0xff] %v1942
  %2007 = vst [vmem:[%s15 + $0x1a8] sm:$0xff] %v1943
  %2008 = vst [vmem:[%s15 + $0x1b0] sm:$0xff] %v1944
  %2009 = vst [vmem:[%s15 + $0x1b8] sm:$0xff] %v1945
  %2010 = vst [vmem:[%s15 + $0x1c0] sm:$0xff] %v1946
  %2011 = vst [vmem:[%s15 + $0x1c8] sm:$0xff] %v1947
  %2012 = vst [vmem:[%s15 + $0x1d0] sm:$0xff] %v1948
  %2013 = vst [vmem:[%s15 + $0x1d8] sm:$0xff] %v1949
  %2014 = vst [vmem:[%s15 + $0x1e0] sm:$0xff] %v1950
  %2015 = vst [vmem:[%s15 + $0x1e8] sm:$0xff] %v1951
  %2016 = vst [vmem:[%s15 + $0x1f0] sm:$0xff] %v1952
  %2017 = vst [vmem:[%s15 + $0x1f8] sm:$0xff] %v1953
  %v2018 = vld [vmem:[%s0 + $0x200] sm:$0xff]
  %v2019 = vld [vmem:[%s0 + $0x208] sm:$0xff]
  %v2020 = vpack.c.bf16 %v2019, %v2018
  %v2021 = vld [vmem:[%s7] sm:$0xf]
  %v2022 = vld [vmem:[%s7 + $0x4] sm:$0xf]
  %v2023 = vld [vmem:[%s7 + $0x8] sm:$0xf]
  %v2024 = vld [vmem:[%s7 + $0xc] sm:$0xf]
  %v2025 = vld [vmem:[%s7 + $0x10] sm:$0xf]
  %v2026 = vld [vmem:[%s7 + $0x14] sm:$0xf]
  %v2027 = vld [vmem:[%s7 + $0x18] sm:$0xf]
  %v2028 = vld [vmem:[%s7 + $0x1c] sm:$0xf]
  %v2029 = vld [vmem:[%s7 + $0x20] sm:$0xf]
  %v2030 = vld [vmem:[%s7 + $0x24] sm:$0xf]
  %v2031 = vld [vmem:[%s7 + $0x28] sm:$0xf]
  %v2032 = vld [vmem:[%s7 + $0x2c] sm:$0xf]
  %v2033 = vld [vmem:[%s7 + $0x30] sm:$0xf]
  %v2034 = vld [vmem:[%s7 + $0x34] sm:$0xf]
  %v2035 = vld [vmem:[%s7 + $0x38] sm:$0xf]
  %v2036 = vld [vmem:[%s7 + $0x3c] sm:$0xf]
  %v2037 = vld [vmem:[%s8] sm:$0x1]
  %v2039 = vlaneseq
  %v2040 = vshrl.u32 %v2039, 7
  %v2041 = vsub.s32 0, %v2040
  %v2042 = vrot.slane %v2037, %v2041
  %v2060 = vunpack.c.l.b16 %v2021
  %v2061 = vunpack.c.l.b16 %v2022
  %v2062 = vunpack.c.l.b16 %v2023
  %v2063 = vunpack.c.l.b16 %v2024
  %v2064 = vunpack.c.l.b16 %v2025
  %v2065 = vunpack.c.l.b16 %v2026
  %v2066 = vunpack.c.l.b16 %v2027
  %v2067 = vunpack.c.l.b16 %v2028
  %v2068 = vunpack.c.l.b16 %v2029
  %v2069 = vunpack.c.l.b16 %v2030
  %v2070 = vunpack.c.l.b16 %v2031
  %v2071 = vunpack.c.l.b16 %v2032
  %v2072 = vunpack.c.l.b16 %v2033
  %v2073 = vunpack.c.l.b16 %v2034
  %v2074 = vunpack.c.l.b16 %v2035
  %v2075 = vunpack.c.l.b16 %v2036
  %v2076 = vpack.c.b16 %v2061, %v2060
  %v2077 = vpack.c.b16 %v2063, %v2062
  %v2078 = vpack.c.b16 %v2065, %v2064
  %v2079 = vpack.c.b16 %v2067, %v2066
  %v2080 = vpack.c.b16 %v2069, %v2068
  %v2081 = vpack.c.b16 %v2071, %v2070
  %v2082 = vpack.c.b16 %v2073, %v2072
  %v2083 = vpack.c.b16 %v2075, %v2074
  %2092 = vmatprep.subr.bf16.mxu0 0
  %2093 = vmatpush1.bf16.msra.mxu0 %v2076
  %2094 = vmatprep.subr.bf16.mxu0 0
  %2095 = vmatpush1.bf16.msra.mxu0 %v2077
  %2096 = vmatprep.subr.bf16.mxu0 0
  %2097 = vmatpush1.bf16.msra.mxu0 %v2078
  %2098 = vmatprep.subr.bf16.mxu0 0
  %2099 = vmatpush1.bf16.msra.mxu0 %v2079
  %2100 = vmatprep.subr.bf16.mxu0 0
  %2101 = vmatpush1.bf16.msra.mxu0 %v2080
  %2102 = vmatprep.subr.bf16.mxu0 0
  %2103 = vmatpush1.bf16.msra.mxu0 %v2081
  %2104 = vmatprep.subr.bf16.mxu0 0
  %2105 = vmatpush1.bf16.msra.mxu0 %v2082
  %2106 = vmatprep.subr.bf16.mxu0 0
  %2107 = vmatpush1.bf16.msra.mxu0 %v2083
  %2108 = vmatprep.subr.bf16.mxu0 0
  %2109 = vmatpush1.bf16.msra.mxu0 0
  %2110 = vmatprep.subr.bf16.mxu0 0
  %2111 = vmatpush1.bf16.msra.mxu0 0
  %2112 = vmatprep.subr.bf16.mxu0 0
  %2113 = vmatpush1.bf16.msra.mxu0 0
  %2114 = vmatprep.subr.bf16.mxu0 0
  %2115 = vmatpush1.bf16.msra.mxu0 0
  %2116 = vmatprep.subr.bf16.mxu0 0
  %2117 = vmatpush1.bf16.msra.mxu0 0
  %2118 = vmatprep.subr.bf16.mxu0 0
  %2119 = vmatpush1.bf16.msra.mxu0 0
  %2120 = vmatprep.subr.bf16.mxu0 0
  %2121 = vmatpush1.bf16.msra.mxu0 0
  %2122 = vmatprep.subr.bf16.mxu0 0
  %2123 = vmatpush1.bf16.msra.mxu0 0
  %2124 = vmatprep.mubr.bf16.mxu0 0
  %2125 = vmatmul.mubr.bf16.gmra.mrb[0].mxu0 %v2020
  %v2126 = vpop.f32.mrb[0].mxu0
  %v2127 = vadd.f32 %v2042, %v2126
  %v2128 = vpop.f32.mrb[0].mxu0
  %v2129 = vpop.f32.mrb[0].mxu0
  %v2130 = vadd.f32 %v2042, %v2129
  %v2131 = vpop.f32.mrb[0].mxu0
  %2132 = vdwg.mxu0
  %v2133 = vld [vmem:[%s9] sm:$0x1]
  %v2134 = vld [vmem:[%s10] sm:$0x1]
  %vm2135 = vcmp.lt.s32.totalorder %v968, 2
  %vm2136 = vcmp.lt.s32.totalorder %v969, 2
  %v2137 = vsel %vm2135, 1, 0
  %v2138 = vsel %vm2136, 1, 0
  %v2139 = vcvt.s32.f32 %v2137
  %v2140 = vcvt.s32.f32 %v2138
  %v2141 = vmul.f32 %v2127, %v2139
  %v2142 = vmul.f32 %v2130, %v2140
  %v2143 = vadd.f32 %v2141, %v2142
  %v2144 = vrot.slane %v2143, 4
  %v2145 = vadd.f32 %v2143, %v2144
  %v2146 = vrot.slane %v2145, 2
  %v2147 = vadd.f32 %v2145, %v2146
  %v2148 = vrot.slane %v2147, 1
  %v2149 = vadd.f32 %v2147, %v2148
  %v2150 = vmul.f32 %v2149, 0.5
  %v2151 = vsub.f32 %v2127, %v2150
  %v2152 = vsub.f32 %v2130, %v2150
  %v2153 = vmul.f32 %v2151, %v2139
  %v2154 = vmul.f32 %v2152, %v2140
  %v2155 = vmul.f32 %v2153, %v2153
  %v2156 = vmul.f32 %v2154, %v2154
  %v2157 = vadd.f32 %v2155, %v2156
  %v2158 = vrot.slane %v2157, 4
  %v2159 = vadd.f32 %v2157, %v2158
  %v2160 = vrot.slane %v2159, 2
  %v2161 = vadd.f32 %v2159, %v2160
  %v2162 = vrot.slane %v2161, 1
  %v2163 = vadd.f32 %v2161, %v2162
  %v2164 = vmul.f32 %v2163, 0.5
  %v2165 = vadd.f32 %v2164, 1e-05
  %v2166 = vrsqrt.pop %v2165
  %v2167 = vmul.f32 %v2151, %v2166
  %v2168 = vmul.f32 %v2152, %v2166
  %v2170 = vlaneseq
  %v2171 = vshrl.u32 %v2170, 7
  %v2172 = vsub.s32 0, %v2171
  %v2173 = vrot.slane %v2133, %v2172
  %v2175 = vmul.f32 %v2167, %v2173
  %v2176 = vmul.f32 %v2168, %v2173
  %v2178 = vlaneseq
  %v2179 = vshrl.u32 %v2178, 7
  %v2180 = vsub.s32 0, %v2179
  %v2181 = vrot.slane %v2134, %v2180
  %v2183 = vadd.f32 %v2175, %v2181
  %v2184 = vadd.f32 %v2176, %v2181
  %v2185 = vmax.f32 %v2183, 0.0
  %v2186 = vmax.f32 %v2184, 0.0
  %v2187 = vpack.c.bf16 %v2186, %v2185
  %v2188 = vld [vmem:[%s11] sm:$0xf]
  %v2189 = vld [vmem:[%s11 + $0x4] sm:$0xf]
  %v2190 = vld [vmem:[%s11 + $0x8] sm:$0xf]
  %v2191 = vld [vmem:[%s11 + $0xc] sm:$0xf]
  %v2192 = vld [vmem:[%s11 + $0x10] sm:$0xf]
  %v2193 = vld [vmem:[%s11 + $0x14] sm:$0xf]
  %v2194 = vld [vmem:[%s11 + $0x18] sm:$0xf]
  %v2195 = vld [vmem:[%s11 + $0x1c] sm:$0xf]
  %v2196 = vld [vmem:[%s11 + $0x20] sm:$0xf]
  %v2197 = vld [vmem:[%s11 + $0x24] sm:$0xf]
  %v2198 = vld [vmem:[%s11 + $0x28] sm:$0xf]
  %v2199 = vld [vmem:[%s11 + $0x2c] sm:$0xf]
  %v2200 = vld [vmem:[%s11 + $0x30] sm:$0xf]
  %v2201 = vld [vmem:[%s11 + $0x34] sm:$0xf]
  %v2202 = vld [vmem:[%s11 + $0x38] sm:$0xf]
  %v2203 = vld [vmem:[%s11 + $0x3c] sm:$0xf]
  %v2204 = vld [vmem:[%s12] sm:$0x1]
  %v2206 = vlaneseq
  %v2207 = vshrl.u32 %v2206, 7
  %v2208 = vsub.s32 0, %v2207
  %v2209 = vrot.slane %v2204, %v2208
  %v2227 = vunpack.c.l.b16 %v2188
  %v2228 = vunpack.c.l.b16 %v2189
  %v2229 = vunpack.c.l.b16 %v2190
  %v2230 = vunpack.c.l.b16 %v2191
  %v2231 = vunpack.c.l.b16 %v2192
  %v2232 = vunpack.c.l.b16 %v2193
  %v2233 = vunpack.c.l.b16 %v2194
  %v2234 = vunpack.c.l.b16 %v2195
  %v2235 = vunpack.c.l.b16 %v2196
  %v2236 = vunpack.c.l.b16 %v2197
  %v2237 = vunpack.c.l.b16 %v2198
  %v2238 = vunpack.c.l.b16 %v2199
  %v2239 = vunpack.c.l.b16 %v2200
  %v2240 = vunpack.c.l.b16 %v2201
  %v2241 = vunpack.c.l.b16 %v2202
  %v2242 = vunpack.c.l.b16 %v2203
  %v2243 = vpack.c.b16 %v2228, %v2227
  %v2244 = vpack.c.b16 %v2230, %v2229
  %v2245 = vpack.c.b16 %v2232, %v2231
  %v2246 = vpack.c.b16 %v2234, %v2233
  %v2247 = vpack.c.b16 %v2236, %v2235
  %v2248 = vpack.c.b16 %v2238, %v2237
  %v2249 = vpack.c.b16 %v2240, %v2239
  %v2250 = vpack.c.b16 %v2242, %v2241
  %2259 = vmatprep.subr.bf16.mxu0 0
  %2260 = vmatpush1.bf16.msra.mxu0 %v2243
  %2261 = vmatprep.subr.bf16.mxu0 0
  %2262 = vmatpush1.bf16.msra.mxu0 %v2244
  %2263 = vmatprep.subr.bf16.mxu0 0
  %2264 = vmatpush1.bf16.msra.mxu0 %v2245
  %2265 = vmatprep.subr.bf16.mxu0 0
  %2266 = vmatpush1.bf16.msra.mxu0 %v2246
  %2267 = vmatprep.subr.bf16.mxu0 0
  %2268 = vmatpush1.bf16.msra.mxu0 %v2247
  %2269 = vmatprep.subr.bf16.mxu0 0
  %2270 = vmatpush1.bf16.msra.mxu0 %v2248
  %2271 = vmatprep.subr.bf16.mxu0 0
  %2272 = vmatpush1.bf16.msra.mxu0 %v2249
  %2273 = vmatprep.subr.bf16.mxu0 0
  %2274 = vmatpush1.bf16.msra.mxu0 %v2250
  %2275 = vmatprep.subr.bf16.mxu0 0
  %2276 = vmatpush1.bf16.msra.mxu0 0
  %2277 = vmatprep.subr.bf16.mxu0 0
  %2278 = vmatpush1.bf16.msra.mxu0 0
  %2279 = vmatprep.subr.bf16.mxu0 0
  %2280 = vmatpush1.bf16.msra.mxu0 0
  %2281 = vmatprep.subr.bf16.mxu0 0
  %2282 = vmatpush1.bf16.msra.mxu0 0
  %2283 = vmatprep.subr.bf16.mxu0 0
  %2284 = vmatpush1.bf16.msra.mxu0 0
  %2285 = vmatprep.subr.bf16.mxu0 0
  %2286 = vmatpush1.bf16.msra.mxu0 0
  %2287 = vmatprep.subr.bf16.mxu0 0
  %2288 = vmatpush1.bf16.msra.mxu0 0
  %2289 = vmatprep.subr.bf16.mxu0 0
  %2290 = vmatpush1.bf16.msra.mxu0 0
  %2291 = vmatprep.mubr.bf16.mxu0 0
  %2292 = vmatmul.mubr.bf16.gmra.mrb[0].mxu0 %v2187
  %v2293 = vpop.f32.mrb[0].mxu0
  %v2294 = vadd.f32 %v2209, %v2293
  %v2295 = vpop.f32.mrb[0].mxu0
  %v2296 = vpop.f32.mrb[0].mxu0
  %v2297 = vadd.f32 %v2209, %v2296
  %v2298 = vpop.f32.mrb[0].mxu0
  %2299 = vdwg.mxu0
  %v2300 = vld [vmem:[%s13] sm:$0x1]
  %v2301 = vld [vmem:[%s14] sm:$0x1]
  %v2302 = vmul.f32 %v2294, %v2139
  %v2303 = vmul.f32 %v2297, %v2140
  %v2304 = vadd.f32 %v2302, %v2303
  %v2305 = vrot.slane %v2304, 4
  %v2306 = vadd.f32 %v2304, %v2305
  %v2307 = vrot.slane %v2306, 2
  %v2308 = vadd.f32 %v2306, %v2307
  %v2309 = vrot.slane %v2308, 1
  %v2310 = vadd.f32 %v2308, %v2309
  %v2311 = vmul.f32 %v2310, 0.5
  %v2312 = vsub.f32 %v2294, %v2311
  %v2313 = vsub.f32 %v2297, %v2311
  %v2314 = vmul.f32 %v2312, %v2139
  %v2315 = vmul.f32 %v2313, %v2140
  %v2316 = vmul.f32 %v2314, %v2314
  %v2317 = vmul.f32 %v2315, %v2315
  %v2318 = vadd.f32 %v2316, %v2317
  %v2319 = vrot.slane %v2318, 4
  %v2320 = vadd.f32 %v2318, %v2319
  %v2321 = vrot.slane %v2320, 2
  %v2322 = vadd.f32 %v2320, %v2321
  %v2323 = vrot.slane %v2322, 1
  %v2324 = vadd.f32 %v2322, %v2323
  %v2325 = vmul.f32 %v2324, 0.5
  %v2326 = vadd.f32 %v2325, 1e-05
  %v2327 = vrsqrt.pop %v2326
  %v2328 = vmul.f32 %v2312, %v2327
  %v2329 = vmul.f32 %v2313, %v2327
  %v2331 = vlaneseq
  %v2332 = vshrl.u32 %v2331, 7
  %v2333 = vsub.s32 0, %v2332
  %v2334 = vrot.slane %v2300, %v2333
  %v2336 = vmul.f32 %v2328, %v2334
  %v2337 = vmul.f32 %v2329, %v2334
  %v2339 = vlaneseq
  %v2340 = vshrl.u32 %v2339, 7
  %v2341 = vsub.s32 0, %v2340
  %v2342 = vrot.slane %v2301, %v2341
  %v2344 = vadd.f32 %v2336, %v2342
  %v2345 = vadd.f32 %v2337, %v2342
  %v2346 = vmax.f32 %v2344, 0.0
  %v2347 = vmax.f32 %v2345, 0.0
  %v2348 = vmul.f32 %v2346, %v2139
  %v2349 = vmul.f32 %v2347, %v2140
  %2350 = vst [vmem:[%s16] sm:$0xff] %v2348
  %2351 = vst [vmem:[%s16 + $0x8] sm:$0xff] %v2349
  // Predicated region
  $region62: #{gnn_virtualnode_forward.5} parent=0 // pred_check
    _
  $region63: #{gnn_virtualnode_forward.5} parent=0 // pred_check_branch
    %2353 = sbr.rel (0) target = $region65
  $region64: #{gnn_virtualnode_forward.5} parent=0 // pred_region
    _
  $region65: #{gnn_virtualnode_forward.5} parent=0 // pred_fallthru
    _
  // Predicated region
  $region66: #{gnn_virtualnode_forward.5} parent=0 // pred_check
    _
  $region67: #{gnn_virtualnode_forward.5} parent=0 // pred_check_branch
    %2355 = sbr.rel (0) target = $region69
  $region68: #{gnn_virtualnode_forward.5} parent=0 // pred_region
    _
  $region69: #{gnn_virtualnode_forward.5} parent=0 // pred_fallthru
    _
  // Predicated region
  $region70: #{gnn_virtualnode_forward.5} parent=0 // pred_check
    _
  $region71: #{gnn_virtualnode_forward.5} parent=0 // pred_check_branch
    %2357 = sbr.rel (0) target = $region73
  $region72: #{gnn_virtualnode_forward.5} parent=0 // pred_region
    _
  $region73: #{gnn_virtualnode_forward.5} parent=0 // pred_fallthru
    _
  // Predicated region
  $region74: #{gnn_virtualnode_forward.5} parent=0 // pred_check
    _
  $region75: #{gnn_virtualnode_forward.5} parent=0 // pred_check_branch
    %2359 = sbr.rel (0) target = $region77
  $region76: #{gnn_virtualnode_forward.5} parent=0 // pred_region
    _
  $region77: #{gnn_virtualnode_forward.5} parent=0 // pred_fallthru
    _

</llo_original>
